<compile_context>
chip_gen: v7x
topology: tpu7x:2x2x1
jax: 0.10.0
libtpu: 0.0.40
codegen_flags: <defaults>
</compile_context>

<pallas_src>
import jax
import jax.numpy as jnp
from jax.experimental import pallas as pl
from jax.experimental.pallas import tpu as pltpu

HIDDEN = 600
LANE = 128
SUBLANE = 8


def _round_up(x, m):
    return (x + m - 1) // m * m


def _mlp_kernel(x_ref, w1_ref, b1_ref, w2_ref, b2_ref, w3_ref, b3_ref,
                w4_ref, b4_ref, o_ref):
    # One batch tile per grid step; all four Linear+ReLU layers fused in VMEM.
    # Activations travel as bf16 between layers (halves spill traffic on the scarce vst slot),
    # the MXU accumulates in f32, bias add + ReLU run in f32 on the VPU.
    def layer(h_bf16, w_ref, b_ref, keep_bf16):
        acc = jnp.dot(h_bf16, w_ref[...], preferred_element_type=jnp.float32)
        act = jnp.maximum(acc + b_ref[...], 0.0)
        return act.astype(jnp.bfloat16) if keep_bf16 else act

    h = x_ref[...]                                  # already bf16 (cast in the wrapper)
    h = layer(h, w1_ref, b1_ref, True)
    h = layer(h, w2_ref, b2_ref, True)
    h = layer(h, w3_ref, b3_ref, True)
    h = layer(h, w4_ref, b4_ref, False)             # final layer stays f32
    o_ref[...] = h.astype(o_ref.dtype)


def _pick_tile_b(B):
    # Tiny batches: one sublane-aligned tile (the weight DMA dominates anyway).
    if B <= 128:
        return _round_up(B, SUBLANE)
    if B <= 512:
        # Least batch-padding waste; on ties take the SMALLER tile so the grid has >= 2 batch
        # tiles and both of v7x's TensorCores get work.
        return min((128, 256), key=lambda t: (_round_up(B, t) - B, t))
    # Large batches: least waste; on ties take the BIGGER tile to amortise per-step overhead.
    return min((256, 512), key=lambda t: (_round_up(B, t) - B, -t))


def sensor_nn_forward(x, packed_params, output_shape, *, tile_b=None):
    """x: (B, H, W) float32.  packed_params: lane-padded bf16 weights / f32 biases
    (see pack_params).  output_shape: (outH, outW).  Returns (B, outH, outW) float32."""
    B = x.shape[0]
    in_size = x.shape[-1] * x.shape[-2]
    out_size = output_shape[-1] * output_shape[-2]

    w1, b1 = packed_params["w1"], packed_params["b1"]
    w2, b2 = packed_params["w2"], packed_params["b2"]
    w3, b3 = packed_params["w3"], packed_params["b3"]
    w4, b4 = packed_params["w4"], packed_params["b4"]

    in_pad = w1.shape[0]        # in_size rounded up to a multiple of 128
    out_pad = w4.shape[1]       # out_size rounded up to a multiple of 128

    if tile_b is None:
        tile_b = _pick_tile_b(B)
    b_pad = _round_up(B, tile_b)

    # Flatten exactly like torch.nn.Flatten(start_dim=1); cast to bf16 here (the matmul input
    # dtype) so the per-tile x DMA moves half the bytes, then zero-pad batch/features.
    x_flat = x.reshape(B, in_size).astype(jnp.bfloat16)
    x_flat = jnp.pad(x_flat, ((0, b_pad - B), (0, in_pad - in_size)))

    grid = (b_pad // tile_b,)

    def resident(shape):
        # Constant block index -> loaded once, stays VMEM-resident across batch tiles.
        # (bf16 weights total ~2.1 MB; even double-buffered they sit well inside scoped VMEM,
        #  so single-buffering them via pipeline_mode would be a negligible win.)
        return pl.BlockSpec(shape, lambda i: (0,) * len(shape))

    out_padded = pl.pallas_call(
        _mlp_kernel,
        out_shape=jax.ShapeDtypeStruct((b_pad, out_pad), jnp.float32),
        grid_spec=pltpu.PrefetchScalarGridSpec(
            num_scalar_prefetch=0,
            grid=grid,
            in_specs=[
                pl.BlockSpec((tile_b, in_pad), lambda i: (i, 0)),
                resident(w1.shape), resident(b1.shape),
                resident(w2.shape), resident(b2.shape),
                resident(w3.shape), resident(b3.shape),
                resident(w4.shape), resident(b4.shape),
            ],
            out_specs=pl.BlockSpec((tile_b, out_pad), lambda i: (i, 0)),
        ),
        compiler_params=pltpu.CompilerParams(
            # Batch tiles are independent -> shard across v7x's 2 TensorCores.
            dimension_semantics=("parallel",)),
    )(x_flat, w1, b1, w2, b2, w3, b3, w4, b4)

    out = out_padded[:B, :out_size]
    return out.reshape(B, output_shape[-2], output_shape[-1])


def init_params(key, in_size, out_size, hidden=HIDDEN):
    """Deterministic init mimicking PyTorch's default Linear init (uniform +-1/sqrt(fan_in)).
    Weights stored transposed as (in, out), float32."""
    dims = [(in_size, hidden), (hidden, hidden), (hidden, hidden), (hidden, out_size)]
    params = {}
    for idx, (fan_in, fan_out) in enumerate(dims, start=1):
        key, kw, kb = jax.random.split(key, 3)
        bound = 1.0 / jnp.sqrt(float(fan_in))
        params[f"w{idx}"] = jax.random.uniform(
            kw, (fan_in, fan_out), jnp.float32, minval=-bound, maxval=bound)
        params[f"b{idx}"] = jax.random.uniform(
            kb, (1, fan_out), jnp.float32, minval=-bound, maxval=bound)
    return params


def pack_params(params, lane=LANE):
    """Zero-pad every feature dim up to a multiple of 128 lanes and cast weights to bf16.
    Padded weight rows/cols and bias entries are exactly zero, so padded lanes stay 0 after ReLU."""
    packed = {}
    for idx in range(1, 5):
        w = params[f"w{idx}"].astype(jnp.float32)
        b = params[f"b{idx}"].astype(jnp.float32)
        kin, kout = w.shape
        kin_p, kout_p = _round_up(kin, lane), _round_up(kout, lane)
        w = jnp.pad(w, ((0, kin_p - kin), (0, kout_p - kout)))
        b = jnp.pad(b, ((0, 0), (0, kout_p - kout)))
        packed[f"w{idx}"] = w.astype(jnp.bfloat16)   # streamed weights: bf16
        packed[f"b{idx}"] = b                         # biases: f32
    return packed


def reference_forward_matched(x, packed_params, output_shape, out_size):
    """JAX reference with the same bf16 weights/activations and f32 accumulation as the kernel."""
    B = x.shape[0]
    in_pad = packed_params["w1"].shape[0]
    h = x.reshape(B, -1).astype(jnp.bfloat16)
    h = jnp.pad(h, ((0, 0), (0, in_pad - h.shape[1])))
    for idx in range(1, 5):
        w = packed_params[f"w{idx}"]
        b = packed_params[f"b{idx}"]
        h = jnp.maximum(jnp.dot(h, w, preferred_element_type=jnp.float32) + b, 0.0)
        if idx < 4:
            h = h.astype(jnp.bfloat16)
    return h[:, :out_size].reshape(B, output_shape[-2], output_shape[-1])


def reference_forward_f32(x, params, output_shape):
    """Full-f32 reference equal to the original PyTorch module's math."""
    B = x.shape[0]
    h = x.reshape(B, -1)
    for idx in range(1, 5):
        h = jnp.maximum(h @ params[f"w{idx}"] + params[f"b{idx}"], 0.0)
    return h.reshape(B, output_shape[-2], output_shape[-1])


if __name__ == "__main__":
    # input_shape = (B, 16, 16) -> input_size = 256 ; output_shape = (8, 4) -> 32
    input_shape = (2, 16, 16)
    output_shape = (8, 4)
    in_size = input_shape[-1] * input_shape[-2]
    out_size = output_shape[-1] * output_shape[-2]

    key = jax.random.PRNGKey(0)
    key, kx = jax.random.split(key)
    x = jax.random.normal(kx, input_shape, dtype=jnp.float32)

    params = init_params(key, in_size, out_size)
    packed = pack_params(params)

    out = sensor_nn_forward(x, packed, output_shape)
    out = jax.block_until_ready(out)
    assert out.shape == (input_shape[0], output_shape[0], output_shape[1])

    # Tight check against a precision-matched reference (same bf16 weights/activations,
    # f32 accumulation).
    ref_bf16 = reference_forward_matched(x, packed, output_shape, out_size)
    assert jnp.allclose(out, ref_bf16, atol=1e-3, rtol=1e-3)

    # Loose sanity check against the full-f32 (PyTorch-equivalent) math:
    # only bf16 weight/activation rounding separates the two.
    ref_f32 = reference_forward_f32(x, params, output_shape)
    assert jnp.allclose(out, ref_f32, atol=5e-2, rtol=5e-2)

    # Exercise the multi-tile path (tile_b=128, grid=(2,), padded remainder rows sliced off).
    xb = jax.random.normal(jax.random.PRNGKey(1), (160,) + input_shape[1:], jnp.float32)
    outb = jax.block_until_ready(sensor_nn_forward(xb, packed, output_shape))
    refb = reference_forward_matched(xb, packed, output_shape, out_size)
    assert outb.shape == (160, output_shape[0], output_shape[1])
    assert jnp.allclose(outb, refb, atol=1e-3, rtol=1e-3)

    print("KERNEL_OK")
</pallas_src>

<mosaic_0001>
module attributes {stable_mosaic.version = 11 : i64} {
  func.func @_mlp_kernel(%arg0: i32, %arg1: memref<8x256xbf16, #tpu.memory_space<vmem>>, %arg2: memref<256x640xbf16, #tpu.memory_space<vmem>>, %arg3: memref<1x640xf32, #tpu.memory_space<vmem>>, %arg4: memref<640x640xbf16, #tpu.memory_space<vmem>>, %arg5: memref<1x640xf32, #tpu.memory_space<vmem>>, %arg6: memref<640x640xbf16, #tpu.memory_space<vmem>>, %arg7: memref<1x640xf32, #tpu.memory_space<vmem>>, %arg8: memref<640x128xbf16, #tpu.memory_space<vmem>>, %arg9: memref<1x128xf32, #tpu.memory_space<vmem>>, %arg10: memref<8x128xf32, #tpu.memory_space<vmem>>) attributes {dimension_semantics = [#tpu.dimension_semantics<parallel>], iteration_bounds = array<i64: 1>, scalar_prefetch = 0 : i64, scratch_operands = 0 : i64, tpu.core_type = #tpu.core_type<tc>, window_params = [{transform_indices = @transform_0, window_bounds = array<i64: 8, 256>}, {pipeline_mode = #tpu.pipeline_mode<synchronous>, transform_indices = @transform_1, window_bounds = array<i64: 256, 640>}, {pipeline_mode = #tpu.pipeline_mode<synchronous>, transform_indices = @transform_2, window_bounds = array<i64: 1, 640>}, {pipeline_mode = #tpu.pipeline_mode<synchronous>, transform_indices = @transform_3, window_bounds = array<i64: 640, 640>}, {pipeline_mode = #tpu.pipeline_mode<synchronous>, transform_indices = @transform_4, window_bounds = array<i64: 1, 640>}, {pipeline_mode = #tpu.pipeline_mode<synchronous>, transform_indices = @transform_5, window_bounds = array<i64: 640, 640>}, {pipeline_mode = #tpu.pipeline_mode<synchronous>, transform_indices = @transform_6, window_bounds = array<i64: 1, 640>}, {pipeline_mode = #tpu.pipeline_mode<synchronous>, transform_indices = @transform_7, window_bounds = array<i64: 640, 128>}, {pipeline_mode = #tpu.pipeline_mode<synchronous>, transform_indices = @transform_8, window_bounds = array<i64: 1, 128>}, {transform_indices = @transform_9, window_bounds = array<i64: 8, 128>}]} {
    %c0 = arith.constant 0 : index
    %c0_0 = arith.constant 0 : index
    %0 = vector.load %arg1[%c0, %c0_0] : memref<8x256xbf16, #tpu.memory_space<vmem>>, vector<8x256xbf16>
    %c0_1 = arith.constant 0 : index
    %c0_2 = arith.constant 0 : index
    %1 = vector.load %arg2[%c0_1, %c0_2] : memref<256x640xbf16, #tpu.memory_space<vmem>>, vector<256x640xbf16>
    %cst = arith.constant dense<0.000000e+00> : vector<8x640xf32>
    %2 = tpu.matmul %0, %1, %cst {dimension_numbers = #tpu.dot_dimension_numbers<[1], [0], [0], [1], [0, 0, 1, 1], [], []>} : vector<8x256xbf16>, vector<256x640xbf16>, vector<8x640xf32> -> vector<8x640xf32>
    %c0_3 = arith.constant 0 : index
    %c0_4 = arith.constant 0 : index
    %3 = vector.load %arg3[%c0_3, %c0_4] : memref<1x640xf32, #tpu.memory_space<vmem>>, vector<1x640xf32>
    %4 = vector.broadcast %3 : vector<1x640xf32> to vector<8x640xf32>
    %5 = arith.addf %2, %4 : vector<8x640xf32>
    %cst_5 = arith.constant 0.000000e+00 : f32
    %6 = vector.broadcast %cst_5 : f32 to vector<8x640xf32>
    %7 = arith.maximumf %5, %6 : vector<8x640xf32>
    %8 = arith.truncf %7 : vector<8x640xf32> to vector<8x640xbf16>
    %c0_6 = arith.constant 0 : index
    %c0_7 = arith.constant 0 : index
    %9 = vector.load %arg4[%c0_6, %c0_7] : memref<640x640xbf16, #tpu.memory_space<vmem>>, vector<640x640xbf16>
    %cst_8 = arith.constant dense<0.000000e+00> : vector<8x640xf32>
    %10 = tpu.matmul %8, %9, %cst_8 {dimension_numbers = #tpu.dot_dimension_numbers<[1], [0], [0], [1], [0, 0, 1, 1], [], []>} : vector<8x640xbf16>, vector<640x640xbf16>, vector<8x640xf32> -> vector<8x640xf32>
    %c0_9 = arith.constant 0 : index
    %c0_10 = arith.constant 0 : index
    %11 = vector.load %arg5[%c0_9, %c0_10] : memref<1x640xf32, #tpu.memory_space<vmem>>, vector<1x640xf32>
    %12 = vector.broadcast %11 : vector<1x640xf32> to vector<8x640xf32>
    %13 = arith.addf %10, %12 : vector<8x640xf32>
    %cst_11 = arith.constant 0.000000e+00 : f32
    %14 = vector.broadcast %cst_11 : f32 to vector<8x640xf32>
    %15 = arith.maximumf %13, %14 : vector<8x640xf32>
    %16 = arith.truncf %15 : vector<8x640xf32> to vector<8x640xbf16>
    %c0_12 = arith.constant 0 : index
    %c0_13 = arith.constant 0 : index
    %17 = vector.load %arg6[%c0_12, %c0_13] : memref<640x640xbf16, #tpu.memory_space<vmem>>, vector<640x640xbf16>
    %cst_14 = arith.constant dense<0.000000e+00> : vector<8x640xf32>
    %18 = tpu.matmul %16, %17, %cst_14 {dimension_numbers = #tpu.dot_dimension_numbers<[1], [0], [0], [1], [0, 0, 1, 1], [], []>} : vector<8x640xbf16>, vector<640x640xbf16>, vector<8x640xf32> -> vector<8x640xf32>
    %c0_15 = arith.constant 0 : index
    %c0_16 = arith.constant 0 : index
    %19 = vector.load %arg7[%c0_15, %c0_16] : memref<1x640xf32, #tpu.memory_space<vmem>>, vector<1x640xf32>
    %20 = vector.broadcast %19 : vector<1x640xf32> to vector<8x640xf32>
    %21 = arith.addf %18, %20 : vector<8x640xf32>
    %cst_17 = arith.constant 0.000000e+00 : f32
    %22 = vector.broadcast %cst_17 : f32 to vector<8x640xf32>
    %23 = arith.maximumf %21, %22 : vector<8x640xf32>
    %24 = arith.truncf %23 : vector<8x640xf32> to vector<8x640xbf16>
    %c0_18 = arith.constant 0 : index
    %c0_19 = arith.constant 0 : index
    %25 = vector.load %arg8[%c0_18, %c0_19] : memref<640x128xbf16, #tpu.memory_space<vmem>>, vector<640x128xbf16>
    %cst_20 = arith.constant dense<0.000000e+00> : vector<8x128xf32>
    %26 = tpu.matmul %24, %25, %cst_20 {dimension_numbers = #tpu.dot_dimension_numbers<[1], [0], [0], [1], [0, 0, 1, 1], [], []>} : vector<8x640xbf16>, vector<640x128xbf16>, vector<8x128xf32> -> vector<8x128xf32>
    %c0_21 = arith.constant 0 : index
    %c0_22 = arith.constant 0 : index
    %27 = vector.load %arg9[%c0_21, %c0_22] : memref<1x128xf32, #tpu.memory_space<vmem>>, vector<1x128xf32>
    %28 = vector.broadcast %27 : vector<1x128xf32> to vector<8x128xf32>
    %29 = arith.addf %26, %28 : vector<8x128xf32>
    %cst_23 = arith.constant 0.000000e+00 : f32
    %30 = vector.broadcast %cst_23 : f32 to vector<8x128xf32>
    %31 = arith.maximumf %29, %30 : vector<8x128xf32>
    %c0_24 = arith.constant 0 : index
    %c0_25 = arith.constant 0 : index
    %32 = vector.load %arg10[%c0_24, %c0_25] : memref<8x128xf32, #tpu.memory_space<vmem>>, vector<8x128xf32>
    tpu.vector_store %arg10[%c0_24, %c0_25], %31 {strides = array<i32>} : memref<8x128xf32, #tpu.memory_space<vmem>>, vector<8x128xf32>,
    return
  }
  func.func @transform_0(%arg0: i32) -> (i32, i32) {
    %c0_i32 = arith.constant 0 : i32
    %c0_i32_0 = arith.constant 0 : i32
    return %arg0, %c0_i32 : i32, i32
  }
  func.func @transform_1(%arg0: i32) -> (i32, i32) {
    %c0_i32 = arith.constant 0 : i32
    %c0_i32_0 = arith.constant 0 : i32
    %c0_i32_1 = arith.constant 0 : i32
    return %c0_i32, %c0_i32_0 : i32, i32
  }
  func.func @transform_2(%arg0: i32) -> (i32, i32) {
    %c0_i32 = arith.constant 0 : i32
    %c0_i32_0 = arith.constant 0 : i32
    %c0_i32_1 = arith.constant 0 : i32
    return %c0_i32, %c0_i32_0 : i32, i32
  }
  func.func @transform_3(%arg0: i32) -> (i32, i32) {
    %c0_i32 = arith.constant 0 : i32
    %c0_i32_0 = arith.constant 0 : i32
    %c0_i32_1 = arith.constant 0 : i32
    return %c0_i32, %c0_i32_0 : i32, i32
  }
  func.func @transform_4(%arg0: i32) -> (i32, i32) {
    %c0_i32 = arith.constant 0 : i32
    %c0_i32_0 = arith.constant 0 : i32
    %c0_i32_1 = arith.constant 0 : i32
    return %c0_i32, %c0_i32_0 : i32, i32
  }
  func.func @transform_5(%arg0: i32) -> (i32, i32) {
    %c0_i32 = arith.constant 0 : i32
    %c0_i32_0 = arith.constant 0 : i32
    %c0_i32_1 = arith.constant 0 : i32
    return %c0_i32, %c0_i32_0 : i32, i32
  }
  func.func @transform_6(%arg0: i32) -> (i32, i32) {
    %c0_i32 = arith.constant 0 : i32
    %c0_i32_0 = arith.constant 0 : i32
    %c0_i32_1 = arith.constant 0 : i32
    return %c0_i32, %c0_i32_0 : i32, i32
  }
  func.func @transform_7(%arg0: i32) -> (i32, i32) {
    %c0_i32 = arith.constant 0 : i32
    %c0_i32_0 = arith.constant 0 : i32
    %c0_i32_1 = arith.constant 0 : i32
    return %c0_i32, %c0_i32_0 : i32, i32
  }
  func.func @transform_8(%arg0: i32) -> (i32, i32) {
    %c0_i32 = arith.constant 0 : i32
    %c0_i32_0 = arith.constant 0 : i32
    %c0_i32_1 = arith.constant 0 : i32
    return %c0_i32, %c0_i32_0 : i32, i32
  }
  func.func @transform_9(%arg0: i32) -> (i32, i32) {
    %c0_i32 = arith.constant 0 : i32
    %c0_i32_0 = arith.constant 0 : i32
    return %arg0, %c0_i32 : i32, i32
  }
}

</mosaic_0001>

<llo_original>
// kernel: tpu_custom_call.1
$region0: #{tpu_custom_call.1}
  #allocation0 [shape = 'u32[]', space=smem, size = 0x4, offset = 0x4, fixed_abs, tag = 'smem constant byte address 0x4 - core index']
  #allocation1 [shape = 'u32[144,128]{1,0:T(1,128)}', space=vmem, size = 0x12000, scoped, tag = 'internal scratch']
  %s0 = inlined_call_operand.hbm [shape: bf16[8,256], index: 0, kind: input, shape index: {}]
  %s1 = inlined_call_operand.hbm [shape: bf16[256,640], index: 1, kind: input, shape index: {}]
  %s2 = inlined_call_operand.vmem [shape: f32[1,640], index: 2, kind: input, shape index: {}]
  %s3 = inlined_call_operand.hbm [shape: bf16[640,640], index: 3, kind: input, shape index: {}]
  %s4 = inlined_call_operand.vmem [shape: f32[1,640], index: 4, kind: input, shape index: {}]
  %s5 = inlined_call_operand.hbm [shape: bf16[640,640], index: 5, kind: input, shape index: {}]
  %s6 = inlined_call_operand.vmem [shape: f32[1,640], index: 6, kind: input, shape index: {}]
  %s7 = inlined_call_operand.hbm [shape: bf16[640,128], index: 7, kind: input, shape index: {}]
  %s8 = inlined_call_operand.vmem [shape: f32[1,128], index: 8, kind: input, shape index: {}]
  %s9 = inlined_call_operand.hbm [shape: f32[8,128], index: 9, kind: output, shape index: {}]
  %s10 = sld [smem:[#allocation0]]
  $region66: #{tpu_custom_call.1} parent=0
    _
  %s12 = ssub.s32 1, %s10
  %s13 = scalar_select 0, %s12, %s10
  $region1: #{tpu_custom_call.1} parent=0
    #allocation2 [shape = 'u8[4096]{0}', space=vmem, size = 0x1000, scoped, tag = 'input window, operand 0, single buffered']
    #allocation3 [shape = 's32[1]{0}', space=sflag, size = 0x4, scoped, tag = 'scoped memory for tpu_custom_call.1']
    #allocation4 [shape = 's32[1]{0}', space=sflag, size = 0x4, scoped, tag = 'scoped memory for tpu_custom_call.1']
    #allocation5 [shape = 'u8[327680]{0}', space=vmem, size = 0x50000, scoped, tag = 'input window, operand 1, single buffered']
    #allocation6 [shape = 's32[1]{0}', space=sflag, size = 0x4, scoped, tag = 'scoped memory for tpu_custom_call.1']
    #allocation7 [shape = 'u8[819200]{0}', space=vmem, size = 0xc8000, scoped, tag = 'input window, operand 3, single buffered']
    #allocation8 [shape = 'u8[819200]{0}', space=vmem, size = 0xc8000, scoped, tag = 'input window, operand 5, single buffered']
    #allocation9 [shape = 's32[1]{0}', space=sflag, size = 0x4, scoped, tag = 'scoped memory for tpu_custom_call.1']
    #allocation10 [shape = 'u8[163840]{0}', space=vmem, size = 0x28000, scoped, tag = 'input window, operand 7, single buffered']
    #allocation11 [shape = 'u8[4096]{0}', space=vmem, size = 0x1000, scoped, tag = 'output window, operand 0, single buffered']
    %14 = vsyncpa [#allocation3], 0
    %15 = vsyncpa [#allocation6], 0
    %16 = vsyncpa [#allocation9], 0
    %17 = vsyncpa [#allocation4], 0
    // Predicated region
    $region2: #{tpu_custom_call.1} parent=1 // pred_check
      _
    $region3: #{tpu_custom_call.1} parent=1 // pred_check_branch
      %19 = sbr.rel (0) target = $region5
    $region4: #{tpu_custom_call.1} parent=1 // pred_region
      %s21 = ssub.s32 128, 128
      %22 = vsyncadd [#allocation3], %s21
      %s24 = sshll.u32 [#allocation2], 4
      %s25 = int_to_ptr.vmem [resolvable:$true] %s24
      %27 = dma.hbm_to_vmem [thread:$0]  %s0, 128, %s25, [#allocation3]
    $region5: #{tpu_custom_call.1} parent=1 // pred_fallthru
      _
    // Predicated region
    $region6: #{tpu_custom_call.1} parent=1 // pred_check
      _
    $region7: #{tpu_custom_call.1} parent=1 // pred_check_branch
      %29 = sbr.rel (0) target = $region9
    $region8: #{tpu_custom_call.1} parent=1 // pred_region
      %s31 = ssub.s32 10240, 10240
      %32 = vsyncadd [#allocation6], %s31
      %s33 = sshll.u32 [#allocation5], 4
      %s34 = int_to_ptr.vmem [resolvable:$true] %s33
      %39 = dma.hbm_to_vmem [thread:$0]  %s1, 10240, %s34, [#allocation6], 320, 320, 20
    $region9: #{tpu_custom_call.1} parent=1 // pred_fallthru
      _
    // Predicated region
    $region10: #{tpu_custom_call.1} parent=1 // pred_check
      _
    $region11: #{tpu_custom_call.1} parent=1 // pred_check_branch
      %41 = sbr.rel (0) target = $region13
    $region12: #{tpu_custom_call.1} parent=1 // pred_region
      _
    $region13: #{tpu_custom_call.1} parent=1 // pred_fallthru
      _
    // Predicated region
    $region14: #{tpu_custom_call.1} parent=1 // pred_check
      _
    $region15: #{tpu_custom_call.1} parent=1 // pred_check_branch
      %43 = sbr.rel (0) target = $region17
    $region16: #{tpu_custom_call.1} parent=1 // pred_region
      %s45 = ssub.s32 25600, 25600
      %46 = vsyncadd [#allocation6], %s45
      %s47 = sshll.u32 [#allocation7], 4
      %s48 = int_to_ptr.vmem [resolvable:$true] %s47
      %53 = dma.hbm_to_vmem [thread:$0]  %s3, 25600, %s48, [#allocation6], 320, 320, 20
    $region17: #{tpu_custom_call.1} parent=1 // pred_fallthru
      _
    // Predicated region
    $region18: #{tpu_custom_call.1} parent=1 // pred_check
      _
    $region19: #{tpu_custom_call.1} parent=1 // pred_check_branch
      %55 = sbr.rel (0) target = $region21
    $region20: #{tpu_custom_call.1} parent=1 // pred_region
      _
    $region21: #{tpu_custom_call.1} parent=1 // pred_fallthru
      _
    // Predicated region
    $region22: #{tpu_custom_call.1} parent=1 // pred_check
      _
    $region23: #{tpu_custom_call.1} parent=1 // pred_check_branch
      %57 = sbr.rel (0) target = $region25
    $region24: #{tpu_custom_call.1} parent=1 // pred_region
      %s59 = ssub.s32 25600, 25600
      %60 = vsyncadd [#allocation9], %s59
      %s61 = sshll.u32 [#allocation8], 4
      %s62 = int_to_ptr.vmem [resolvable:$true] %s61
      %67 = dma.hbm_to_vmem [thread:$0]  %s5, 25600, %s62, [#allocation9], 320, 320, 20
    $region25: #{tpu_custom_call.1} parent=1 // pred_fallthru
      _
    // Predicated region
    $region26: #{tpu_custom_call.1} parent=1 // pred_check
      _
    $region27: #{tpu_custom_call.1} parent=1 // pred_check_branch
      %69 = sbr.rel (0) target = $region29
    $region28: #{tpu_custom_call.1} parent=1 // pred_region
      _
    $region29: #{tpu_custom_call.1} parent=1 // pred_fallthru
      _
    // Predicated region
    $region30: #{tpu_custom_call.1} parent=1 // pred_check
      _
    $region31: #{tpu_custom_call.1} parent=1 // pred_check_branch
      %71 = sbr.rel (0) target = $region33
    $region32: #{tpu_custom_call.1} parent=1 // pred_region
      %s73 = ssub.s32 5120, 5120
      %74 = vsyncadd [#allocation9], %s73
      %s75 = sshll.u32 [#allocation10], 4
      %s76 = int_to_ptr.vmem [resolvable:$true] %s75
      %81 = dma.hbm_to_vmem [thread:$0]  %s7, 5120, %s76, [#allocation9], 64, 64, 4
    $region33: #{tpu_custom_call.1} parent=1 // pred_fallthru
      _
    // Predicated region
    $region34: #{tpu_custom_call.1} parent=1 // pred_check
      _
    $region35: #{tpu_custom_call.1} parent=1 // pred_check_branch
      %83 = sbr.rel (0) target = $region37
    $region36: #{tpu_custom_call.1} parent=1 // pred_region
      _
    $region37: #{tpu_custom_call.1} parent=1 // pred_fallthru
      _
    // Predicated region
    $region38: #{tpu_custom_call.1} parent=1 // pred_check
      _
    $region39: #{tpu_custom_call.1} parent=1 // pred_check_branch
      %85 = sbr.rel (0) target = $region41
    $region40: #{tpu_custom_call.1} parent=1 // pred_region
      %86 = dma.done [#allocation3], 128
    $region41: #{tpu_custom_call.1} parent=1 // pred_fallthru
      _
    // Predicated region
    $region42: #{tpu_custom_call.1} parent=1 // pred_check
      _
    $region43: #{tpu_custom_call.1} parent=1 // pred_check_branch
      %88 = sbr.rel (0) target = $region45
    $region44: #{tpu_custom_call.1} parent=1 // pred_region
      %89 = dma.done [#allocation6], 10240
    $region45: #{tpu_custom_call.1} parent=1 // pred_fallthru
      _
    // Predicated region
    $region46: #{tpu_custom_call.1} parent=1 // pred_check
      _
    $region47: #{tpu_custom_call.1} parent=1 // pred_check_branch
      %91 = sbr.rel (0) target = $region49
    $region48: #{tpu_custom_call.1} parent=1 // pred_region
      %92 = dma.done [#allocation6], 25600
    $region49: #{tpu_custom_call.1} parent=1 // pred_fallthru
      _
    // Predicated region
    $region50: #{tpu_custom_call.1} parent=1 // pred_check
      _
    $region51: #{tpu_custom_call.1} parent=1 // pred_check_branch
      %94 = sbr.rel (0) target = $region53
    $region52: #{tpu_custom_call.1} parent=1 // pred_region
      %95 = dma.done [#allocation9], 25600
    $region53: #{tpu_custom_call.1} parent=1 // pred_fallthru
      _
    // Predicated region
    $region54: #{tpu_custom_call.1} parent=1 // pred_check
      _
    $region55: #{tpu_custom_call.1} parent=1 // pred_check_branch
      %97 = sbr.rel (0) target = $region57
    $region56: #{tpu_custom_call.1} parent=1 // pred_region
      %98 = dma.done [#allocation9], 5120
    $region57: #{tpu_custom_call.1} parent=1 // pred_fallthru
      _
    %v100 = vld [vmem:[#allocation2] sm:$0xff]
    %v101 = vld [vmem:[#allocation5] sm:$0xff]
    %v102 = vld [vmem:[#allocation5 + $0x8] sm:$0xff]
    %v103 = vld [vmem:[#allocation5 + $0x10] sm:$0xf]
    %v104 = vld [vmem:[#allocation5 + $0x14] sm:$0xff]
    %v105 = vld [vmem:[#allocation5 + $0x1c] sm:$0xff]
    %v106 = vld [vmem:[#allocation5 + $0x24] sm:$0xf]
    %v107 = vld [vmem:[#allocation5 + $0x28] sm:$0xff]
    %v108 = vld [vmem:[#allocation5 + $0x30] sm:$0xff]
    %v109 = vld [vmem:[#allocation5 + $0x38] sm:$0xf]
    %v110 = vld [vmem:[#allocation5 + $0x3c] sm:$0xff]
    %v111 = vld [vmem:[#allocation5 + $0x44] sm:$0xff]
    %v112 = vld [vmem:[#allocation5 + $0x4c] sm:$0xf]
    %v113 = vld [vmem:[#allocation5 + $0x50] sm:$0xff]
    %v114 = vld [vmem:[#allocation5 + $0x58] sm:$0xff]
    %v115 = vld [vmem:[#allocation5 + $0x60] sm:$0xf]
    %v116 = vld [vmem:[#allocation5 + $0x64] sm:$0xff]
    %v117 = vld [vmem:[#allocation5 + $0x6c] sm:$0xff]
    %v118 = vld [vmem:[#allocation5 + $0x74] sm:$0xf]
    %v119 = vld [vmem:[#allocation5 + $0x78] sm:$0xff]
    %v120 = vld [vmem:[#allocation5 + $0x80] sm:$0xff]
    %v121 = vld [vmem:[#allocation5 + $0x88] sm:$0xf]
    %v122 = vld [vmem:[#allocation5 + $0x8c] sm:$0xff]
    %v123 = vld [vmem:[#allocation5 + $0x94] sm:$0xff]
    %v124 = vld [vmem:[#allocation5 + $0x9c] sm:$0xf]
    %v125 = vld [vmem:[#allocation5 + $0xa0] sm:$0xff]
    %v126 = vld [vmem:[#allocation5 + $0xa8] sm:$0xff]
    %v127 = vld [vmem:[#allocation5 + $0xb0] sm:$0xf]
    %v128 = vld [vmem:[#allocation5 + $0xb4] sm:$0xff]
    %v129 = vld [vmem:[#allocation5 + $0xbc] sm:$0xff]
    %v130 = vld [vmem:[#allocation5 + $0xc4] sm:$0xf]
    %v131 = vld [vmem:[#allocation5 + $0xc8] sm:$0xff]
    %v132 = vld [vmem:[#allocation5 + $0xd0] sm:$0xff]
    %v133 = vld [vmem:[#allocation5 + $0xd8] sm:$0xf]
    %v134 = vld [vmem:[#allocation5 + $0xdc] sm:$0xff]
    %v135 = vld [vmem:[#allocation5 + $0xe4] sm:$0xff]
    %v136 = vld [vmem:[#allocation5 + $0xec] sm:$0xf]
    %v137 = vld [vmem:[#allocation5 + $0xf0] sm:$0xff]
    %v138 = vld [vmem:[#allocation5 + $0xf8] sm:$0xff]
    %v139 = vld [vmem:[#allocation5 + $0x100] sm:$0xf]
    %v140 = vld [vmem:[#allocation5 + $0x104] sm:$0xff]
    %v141 = vld [vmem:[#allocation5 + $0x10c] sm:$0xff]
    %v142 = vld [vmem:[#allocation5 + $0x114] sm:$0xf]
    %v143 = vld [vmem:[#allocation5 + $0x118] sm:$0xff]
    %v144 = vld [vmem:[#allocation5 + $0x120] sm:$0xff]
    %v145 = vld [vmem:[#allocation5 + $0x128] sm:$0xf]
    %v146 = vld [vmem:[#allocation5 + $0x12c] sm:$0xff]
    %v147 = vld [vmem:[#allocation5 + $0x134] sm:$0xff]
    %v148 = vld [vmem:[#allocation5 + $0x13c] sm:$0xf]
    %v149 = vld [vmem:[#allocation5 + $0x140] sm:$0xff]
    %v150 = vld [vmem:[#allocation5 + $0x148] sm:$0xff]
    %v151 = vld [vmem:[#allocation5 + $0x150] sm:$0xf]
    %v152 = vld [vmem:[#allocation5 + $0x154] sm:$0xff]
    %v153 = vld [vmem:[#allocation5 + $0x15c] sm:$0xff]
    %v154 = vld [vmem:[#allocation5 + $0x164] sm:$0xf]
    %v155 = vld [vmem:[#allocation5 + $0x168] sm:$0xff]
    %v156 = vld [vmem:[#allocation5 + $0x170] sm:$0xff]
    %v157 = vld [vmem:[#allocation5 + $0x178] sm:$0xf]
    %v158 = vld [vmem:[#allocation5 + $0x17c] sm:$0xff]
    %v159 = vld [vmem:[#allocation5 + $0x184] sm:$0xff]
    %v160 = vld [vmem:[#allocation5 + $0x18c] sm:$0xf]
    %v161 = vld [vmem:[#allocation5 + $0x190] sm:$0xff]
    %v162 = vld [vmem:[#allocation5 + $0x198] sm:$0xff]
    %v163 = vld [vmem:[#allocation5 + $0x1a0] sm:$0xf]
    %v164 = vld [vmem:[#allocation5 + $0x1a4] sm:$0xff]
    %v165 = vld [vmem:[#allocation5 + $0x1ac] sm:$0xff]
    %v166 = vld [vmem:[#allocation5 + $0x1b4] sm:$0xf]
    %v167 = vld [vmem:[#allocation5 + $0x1b8] sm:$0xff]
    %v168 = vld [vmem:[#allocation5 + $0x1c0] sm:$0xff]
    %v169 = vld [vmem:[#allocation5 + $0x1c8] sm:$0xf]
    %v170 = vld [vmem:[#allocation5 + $0x1cc] sm:$0xff]
    %v171 = vld [vmem:[#allocation5 + $0x1d4] sm:$0xff]
    %v172 = vld [vmem:[#allocation5 + $0x1dc] sm:$0xf]
    %v173 = vld [vmem:[#allocation5 + $0x1e0] sm:$0xff]
    %v174 = vld [vmem:[#allocation5 + $0x1e8] sm:$0xff]
    %v175 = vld [vmem:[#allocation5 + $0x1f0] sm:$0xf]
    %v176 = vld [vmem:[#allocation5 + $0x1f4] sm:$0xff]
    %v177 = vld [vmem:[#allocation5 + $0x1fc] sm:$0xff]
    %v178 = vld [vmem:[#allocation5 + $0x204] sm:$0xf]
    %v179 = vld [vmem:[#allocation5 + $0x208] sm:$0xff]
    %v180 = vld [vmem:[#allocation5 + $0x210] sm:$0xff]
    %v181 = vld [vmem:[#allocation5 + $0x218] sm:$0xf]
    %v182 = vld [vmem:[#allocation5 + $0x21c] sm:$0xff]
    %v183 = vld [vmem:[#allocation5 + $0x224] sm:$0xff]
    %v184 = vld [vmem:[#allocation5 + $0x22c] sm:$0xf]
    %v185 = vld [vmem:[#allocation5 + $0x230] sm:$0xff]
    %v186 = vld [vmem:[#allocation5 + $0x238] sm:$0xff]
    %v187 = vld [vmem:[#allocation5 + $0x240] sm:$0xf]
    %v188 = vld [vmem:[#allocation5 + $0x244] sm:$0xff]
    %v189 = vld [vmem:[#allocation5 + $0x24c] sm:$0xff]
    %v190 = vld [vmem:[#allocation5 + $0x254] sm:$0xf]
    %v191 = vld [vmem:[#allocation5 + $0x258] sm:$0xff]
    %v192 = vld [vmem:[#allocation5 + $0x260] sm:$0xff]
    %v193 = vld [vmem:[#allocation5 + $0x268] sm:$0xf]
    %v194 = vld [vmem:[#allocation5 + $0x26c] sm:$0xff]
    %v195 = vld [vmem:[#allocation5 + $0x274] sm:$0xff]
    %v196 = vld [vmem:[#allocation5 + $0x27c] sm:$0xf]
    %v197 = vld [vmem:[%s2] sm:$0x1f]
    %v199 = vlaneseq
    %v200 = vshrl.u32 %v199, 7
    %v201 = vsub.s32 0, %v200
    %v202 = vrot.slane %v197, %v201
    %v203 = vlaneseq
    %v204 = vshrl.u32 %v203, 7
    %v205 = vsub.s32 1, %v204
    %v206 = vrot.slane %v197, %v205
    %v207 = vlaneseq
    %v208 = vshrl.u32 %v207, 7
    %v209 = vsub.s32 2, %v208
    %v210 = vrot.slane %v197, %v209
    %v211 = vlaneseq
    %v212 = vshrl.u32 %v211, 7
    %v213 = vsub.s32 3, %v212
    %v214 = vrot.slane %v197, %v213
    %v215 = vlaneseq
    %v216 = vshrl.u32 %v215, 7
    %v217 = vsub.s32 4, %v216
    %v218 = vrot.slane %v197, %v217
    %v225 = vunpack.c.l.b16 %v100
    %v226 = vunpack.c.h.b16 %v100
    %v227 = vpack.c.b16 %v225, %v225
    %v228 = vpack.c.b16 %v226, %v226
    %v327 = vunpack.c.l.b16 %v101
    %v328 = vunpack.c.h.b16 %v101
    %v329 = vunpack.c.l.b16 %v102
    %v330 = vunpack.c.h.b16 %v102
    %v331 = vunpack.c.l.b16 %v103
    %v332 = vunpack.c.l.b16 %v104
    %v333 = vunpack.c.h.b16 %v104
    %v334 = vunpack.c.l.b16 %v105
    %v335 = vunpack.c.h.b16 %v105
    %v336 = vunpack.c.l.b16 %v106
    %v337 = vunpack.c.l.b16 %v107
    %v338 = vunpack.c.h.b16 %v107
    %v339 = vunpack.c.l.b16 %v108
    %v340 = vunpack.c.h.b16 %v108
    %v341 = vunpack.c.l.b16 %v109
    %v342 = vunpack.c.l.b16 %v110
    %v343 = vunpack.c.h.b16 %v110
    %v344 = vunpack.c.l.b16 %v111
    %v345 = vunpack.c.h.b16 %v111
    %v346 = vunpack.c.l.b16 %v112
    %v347 = vunpack.c.l.b16 %v113
    %v348 = vunpack.c.h.b16 %v113
    %v349 = vunpack.c.l.b16 %v114
    %v350 = vunpack.c.h.b16 %v114
    %v351 = vunpack.c.l.b16 %v115
    %v352 = vunpack.c.l.b16 %v116
    %v353 = vunpack.c.h.b16 %v116
    %v354 = vunpack.c.l.b16 %v117
    %v355 = vunpack.c.h.b16 %v117
    %v356 = vunpack.c.l.b16 %v118
    %v357 = vunpack.c.l.b16 %v119
    %v358 = vunpack.c.h.b16 %v119
    %v359 = vunpack.c.l.b16 %v120
    %v360 = vunpack.c.h.b16 %v120
    %v361 = vunpack.c.l.b16 %v121
    %v362 = vunpack.c.l.b16 %v122
    %v363 = vunpack.c.h.b16 %v122
    %v364 = vunpack.c.l.b16 %v123
    %v365 = vunpack.c.h.b16 %v123
    %v366 = vunpack.c.l.b16 %v124
    %v367 = vunpack.c.l.b16 %v125
    %v368 = vunpack.c.h.b16 %v125
    %v369 = vunpack.c.l.b16 %v126
    %v370 = vunpack.c.h.b16 %v126
    %v371 = vunpack.c.l.b16 %v127
    %v372 = vunpack.c.l.b16 %v128
    %v373 = vunpack.c.h.b16 %v128
    %v374 = vunpack.c.l.b16 %v129
    %v375 = vunpack.c.h.b16 %v129
    %v376 = vunpack.c.l.b16 %v130
    %v377 = vunpack.c.l.b16 %v131
    %v378 = vunpack.c.h.b16 %v131
    %v379 = vunpack.c.l.b16 %v132
    %v380 = vunpack.c.h.b16 %v132
    %v381 = vunpack.c.l.b16 %v133
    %v382 = vunpack.c.l.b16 %v134
    %v383 = vunpack.c.h.b16 %v134
    %v384 = vunpack.c.l.b16 %v135
    %v385 = vunpack.c.h.b16 %v135
    %v386 = vunpack.c.l.b16 %v136
    %v387 = vunpack.c.l.b16 %v137
    %v388 = vunpack.c.h.b16 %v137
    %v389 = vunpack.c.l.b16 %v138
    %v390 = vunpack.c.h.b16 %v138
    %v391 = vunpack.c.l.b16 %v139
    %v392 = vunpack.c.l.b16 %v140
    %v393 = vunpack.c.h.b16 %v140
    %v394 = vunpack.c.l.b16 %v141
    %v395 = vunpack.c.h.b16 %v141
    %v396 = vunpack.c.l.b16 %v142
    %v397 = vunpack.c.l.b16 %v143
    %v398 = vunpack.c.h.b16 %v143
    %v399 = vunpack.c.l.b16 %v144
    %v400 = vunpack.c.h.b16 %v144
    %v401 = vunpack.c.l.b16 %v145
    %v402 = vunpack.c.l.b16 %v146
    %v403 = vunpack.c.h.b16 %v146
    %v404 = vunpack.c.l.b16 %v147
    %v405 = vunpack.c.h.b16 %v147
    %v406 = vunpack.c.l.b16 %v148
    %v407 = vunpack.c.l.b16 %v149
    %v408 = vunpack.c.h.b16 %v149
    %v409 = vunpack.c.l.b16 %v150
    %v410 = vunpack.c.h.b16 %v150
    %v411 = vunpack.c.l.b16 %v151
    %v412 = vunpack.c.l.b16 %v152
    %v413 = vunpack.c.h.b16 %v152
    %v414 = vunpack.c.l.b16 %v153
    %v415 = vunpack.c.h.b16 %v153
    %v416 = vunpack.c.l.b16 %v154
    %v417 = vunpack.c.l.b16 %v155
    %v418 = vunpack.c.h.b16 %v155
    %v419 = vunpack.c.l.b16 %v156
    %v420 = vunpack.c.h.b16 %v156
    %v421 = vunpack.c.l.b16 %v157
    %v422 = vunpack.c.l.b16 %v158
    %v423 = vunpack.c.h.b16 %v158
    %v424 = vunpack.c.l.b16 %v159
    %v425 = vunpack.c.h.b16 %v159
    %v426 = vunpack.c.l.b16 %v160
    %v427 = vunpack.c.l.b16 %v161
    %v428 = vunpack.c.h.b16 %v161
    %v429 = vunpack.c.l.b16 %v162
    %v430 = vunpack.c.h.b16 %v162
    %v431 = vunpack.c.l.b16 %v163
    %v432 = vunpack.c.l.b16 %v164
    %v433 = vunpack.c.h.b16 %v164
    %v434 = vunpack.c.l.b16 %v165
    %v435 = vunpack.c.h.b16 %v165
    %v436 = vunpack.c.l.b16 %v166
    %v437 = vunpack.c.l.b16 %v167
    %v438 = vunpack.c.h.b16 %v167
    %v439 = vunpack.c.l.b16 %v168
    %v440 = vunpack.c.h.b16 %v168
    %v441 = vunpack.c.l.b16 %v169
    %v442 = vunpack.c.l.b16 %v170
    %v443 = vunpack.c.h.b16 %v170
    %v444 = vunpack.c.l.b16 %v171
    %v445 = vunpack.c.h.b16 %v171
    %v446 = vunpack.c.l.b16 %v172
    %v447 = vunpack.c.l.b16 %v173
    %v448 = vunpack.c.h.b16 %v173
    %v449 = vunpack.c.l.b16 %v174
    %v450 = vunpack.c.h.b16 %v174
    %v451 = vunpack.c.l.b16 %v175
    %v452 = vunpack.c.l.b16 %v176
    %v453 = vunpack.c.h.b16 %v176
    %v454 = vunpack.c.l.b16 %v177
    %v455 = vunpack.c.h.b16 %v177
    %v456 = vunpack.c.l.b16 %v178
    %v457 = vunpack.c.l.b16 %v179
    %v458 = vunpack.c.h.b16 %v179
    %v459 = vunpack.c.l.b16 %v180
    %v460 = vunpack.c.h.b16 %v180
    %v461 = vunpack.c.l.b16 %v181
    %v462 = vunpack.c.l.b16 %v182
    %v463 = vunpack.c.h.b16 %v182
    %v464 = vunpack.c.l.b16 %v183
    %v465 = vunpack.c.h.b16 %v183
    %v466 = vunpack.c.l.b16 %v184
    %v467 = vunpack.c.l.b16 %v185
    %v468 = vunpack.c.h.b16 %v185
    %v469 = vunpack.c.l.b16 %v186
    %v470 = vunpack.c.h.b16 %v186
    %v471 = vunpack.c.l.b16 %v187
    %v472 = vunpack.c.l.b16 %v188
    %v473 = vunpack.c.h.b16 %v188
    %v474 = vunpack.c.l.b16 %v189
    %v475 = vunpack.c.h.b16 %v189
    %v476 = vunpack.c.l.b16 %v190
    %v477 = vunpack.c.l.b16 %v191
    %v478 = vunpack.c.h.b16 %v191
    %v479 = vunpack.c.l.b16 %v192
    %v480 = vunpack.c.h.b16 %v192
    %v481 = vunpack.c.l.b16 %v193
    %v482 = vunpack.c.l.b16 %v194
    %v483 = vunpack.c.h.b16 %v194
    %v484 = vunpack.c.l.b16 %v195
    %v485 = vunpack.c.h.b16 %v195
    %v486 = vunpack.c.l.b16 %v196
    %v487 = vpack.c.b16 %v332, %v327
    %v488 = vpack.c.b16 %v333, %v328
    %v489 = vpack.c.b16 %v334, %v329
    %v490 = vpack.c.b16 %v335, %v330
    %v491 = vpack.c.b16 %v336, %v331
    %v492 = vpack.c.b16 %v342, %v337
    %v493 = vpack.c.b16 %v343, %v338
    %v494 = vpack.c.b16 %v344, %v339
    %v495 = vpack.c.b16 %v345, %v340
    %v496 = vpack.c.b16 %v346, %v341
    %v497 = vpack.c.b16 %v352, %v347
    %v498 = vpack.c.b16 %v353, %v348
    %v499 = vpack.c.b16 %v354, %v349
    %v500 = vpack.c.b16 %v355, %v350
    %v501 = vpack.c.b16 %v356, %v351
    %v502 = vpack.c.b16 %v362, %v357
    %v503 = vpack.c.b16 %v363, %v358
    %v504 = vpack.c.b16 %v364, %v359
    %v505 = vpack.c.b16 %v365, %v360
    %v506 = vpack.c.b16 %v366, %v361
    %v507 = vpack.c.b16 %v372, %v367
    %v508 = vpack.c.b16 %v373, %v368
    %v509 = vpack.c.b16 %v374, %v369
    %v510 = vpack.c.b16 %v375, %v370
    %v511 = vpack.c.b16 %v376, %v371
    %v512 = vpack.c.b16 %v382, %v377
    %v513 = vpack.c.b16 %v383, %v378
    %v514 = vpack.c.b16 %v384, %v379
    %v515 = vpack.c.b16 %v385, %v380
    %v516 = vpack.c.b16 %v386, %v381
    %v517 = vpack.c.b16 %v392, %v387
    %v518 = vpack.c.b16 %v393, %v388
    %v519 = vpack.c.b16 %v394, %v389
    %v520 = vpack.c.b16 %v395, %v390
    %v521 = vpack.c.b16 %v396, %v391
    %v522 = vpack.c.b16 %v402, %v397
    %v523 = vpack.c.b16 %v403, %v398
    %v524 = vpack.c.b16 %v404, %v399
    %v525 = vpack.c.b16 %v405, %v400
    %v526 = vpack.c.b16 %v406, %v401
    %v527 = vpack.c.b16 %v412, %v407
    %v528 = vpack.c.b16 %v413, %v408
    %v529 = vpack.c.b16 %v414, %v409
    %v530 = vpack.c.b16 %v415, %v410
    %v531 = vpack.c.b16 %v416, %v411
    %v532 = vpack.c.b16 %v422, %v417
    %v533 = vpack.c.b16 %v423, %v418
    %v534 = vpack.c.b16 %v424, %v419
    %v535 = vpack.c.b16 %v425, %v420
    %v536 = vpack.c.b16 %v426, %v421
    %v537 = vpack.c.b16 %v432, %v427
    %v538 = vpack.c.b16 %v433, %v428
    %v539 = vpack.c.b16 %v434, %v429
    %v540 = vpack.c.b16 %v435, %v430
    %v541 = vpack.c.b16 %v436, %v431
    %v542 = vpack.c.b16 %v442, %v437
    %v543 = vpack.c.b16 %v443, %v438
    %v544 = vpack.c.b16 %v444, %v439
    %v545 = vpack.c.b16 %v445, %v440
    %v546 = vpack.c.b16 %v446, %v441
    %v547 = vpack.c.b16 %v452, %v447
    %v548 = vpack.c.b16 %v453, %v448
    %v549 = vpack.c.b16 %v454, %v449
    %v550 = vpack.c.b16 %v455, %v450
    %v551 = vpack.c.b16 %v456, %v451
    %v552 = vpack.c.b16 %v462, %v457
    %v553 = vpack.c.b16 %v463, %v458
    %v554 = vpack.c.b16 %v464, %v459
    %v555 = vpack.c.b16 %v465, %v460
    %v556 = vpack.c.b16 %v466, %v461
    %v557 = vpack.c.b16 %v472, %v467
    %v558 = vpack.c.b16 %v473, %v468
    %v559 = vpack.c.b16 %v474, %v469
    %v560 = vpack.c.b16 %v475, %v470
    %v561 = vpack.c.b16 %v476, %v471
    %v562 = vpack.c.b16 %v482, %v477
    %v563 = vpack.c.b16 %v483, %v478
    %v564 = vpack.c.b16 %v484, %v479
    %v565 = vpack.c.b16 %v485, %v480
    %v566 = vpack.c.b16 %v486, %v481
    %647 = vmatprep.subr.bf16.mxu0 %v488
    %648 = vmatpush1.bf16.msra.mxu0 %v487
    %649 = vmatprep.subr.bf16.mxu0 %v493
    %650 = vmatpush1.bf16.msra.mxu0 %v492
    %651 = vmatprep.subr.bf16.mxu0 %v498
    %652 = vmatpush1.bf16.msra.mxu0 %v497
    %653 = vmatprep.subr.bf16.mxu0 %v503
    %654 = vmatpush1.bf16.msra.mxu0 %v502
    %655 = vmatprep.subr.bf16.mxu0 %v508
    %656 = vmatpush1.bf16.msra.mxu0 %v507
    %657 = vmatprep.subr.bf16.mxu0 %v513
    %658 = vmatpush1.bf16.msra.mxu0 %v512
    %659 = vmatprep.subr.bf16.mxu0 %v518
    %660 = vmatpush1.bf16.msra.mxu0 %v517
    %661 = vmatprep.subr.bf16.mxu0 %v523
    %662 = vmatpush1.bf16.msra.mxu0 %v522
    %663 = vmatprep.subr.bf16.mxu0 %v528
    %664 = vmatpush1.bf16.msra.mxu0 %v527
    %665 = vmatprep.subr.bf16.mxu0 %v533
    %666 = vmatpush1.bf16.msra.mxu0 %v532
    %667 = vmatprep.subr.bf16.mxu0 %v538
    %668 = vmatpush1.bf16.msra.mxu0 %v537
    %669 = vmatprep.subr.bf16.mxu0 %v543
    %670 = vmatpush1.bf16.msra.mxu0 %v542
    %671 = vmatprep.subr.bf16.mxu0 %v548
    %672 = vmatpush1.bf16.msra.mxu0 %v547
    %673 = vmatprep.subr.bf16.mxu0 %v553
    %674 = vmatpush1.bf16.msra.mxu0 %v552
    %675 = vmatprep.subr.bf16.mxu0 %v558
    %676 = vmatpush1.bf16.msra.mxu0 %v557
    %677 = vmatprep.subr.bf16.mxu0 %v563
    %678 = vmatpush1.bf16.msra.mxu0 %v562
    %679 = vmatprep.mubr.bf16.mxu0 %v228
    %680 = vmatmul.mubr.bf16.gmra.mrb[0].mxu0 %v227
    %v681 = vpop.f32.mrb[0].mxu0
    %v682 = vadd.f32 %v202, %v681
    %v683 = vpop.f32.mrb[0].mxu0
    %v684 = vadd.f32 %v206, %v683
    %v685 = vpop.f32.mrb[0].mxu0
    %v686 = vpop.f32.mrb[0].mxu0
    %687 = vdwg.mxu0
    %688 = vmatprep.subr.bf16.mxu0 %v490
    %689 = vmatpush1.bf16.msra.mxu0 %v489
    %690 = vmatprep.subr.bf16.mxu0 %v495
    %691 = vmatpush1.bf16.msra.mxu0 %v494
    %692 = vmatprep.subr.bf16.mxu0 %v500
    %693 = vmatpush1.bf16.msra.mxu0 %v499
    %694 = vmatprep.subr.bf16.mxu0 %v505
    %695 = vmatpush1.bf16.msra.mxu0 %v504
    %696 = vmatprep.subr.bf16.mxu0 %v510
    %697 = vmatpush1.bf16.msra.mxu0 %v509
    %698 = vmatprep.subr.bf16.mxu0 %v515
    %699 = vmatpush1.bf16.msra.mxu0 %v514
    %700 = vmatprep.subr.bf16.mxu0 %v520
    %701 = vmatpush1.bf16.msra.mxu0 %v519
    %702 = vmatprep.subr.bf16.mxu0 %v525
    %703 = vmatpush1.bf16.msra.mxu0 %v524
    %704 = vmatprep.subr.bf16.mxu0 %v530
    %705 = vmatpush1.bf16.msra.mxu0 %v529
    %706 = vmatprep.subr.bf16.mxu0 %v535
    %707 = vmatpush1.bf16.msra.mxu0 %v534
    %708 = vmatprep.subr.bf16.mxu0 %v540
    %709 = vmatpush1.bf16.msra.mxu0 %v539
    %710 = vmatprep.subr.bf16.mxu0 %v545
    %711 = vmatpush1.bf16.msra.mxu0 %v544
    %712 = vmatprep.subr.bf16.mxu0 %v550
    %713 = vmatpush1.bf16.msra.mxu0 %v549
    %714 = vmatprep.subr.bf16.mxu0 %v555
    %715 = vmatpush1.bf16.msra.mxu0 %v554
    %716 = vmatprep.subr.bf16.mxu0 %v560
    %717 = vmatpush1.bf16.msra.mxu0 %v559
    %718 = vmatprep.subr.bf16.mxu0 %v565
    %719 = vmatpush1.bf16.msra.mxu0 %v564
    %720 = vmatprep.mubr.bf16.mxu0 %v228
    %721 = vmatmul.mubr.bf16.gmra.mrb[0].mxu0 %v227
    %v722 = vpop.f32.mrb[0].mxu0
    %v723 = vadd.f32 %v210, %v722
    %v724 = vpop.f32.mrb[0].mxu0
    %v725 = vadd.f32 %v214, %v724
    %v726 = vpop.f32.mrb[0].mxu0
    %v727 = vpop.f32.mrb[0].mxu0
    %728 = vdwg.mxu0
    %729 = vmatprep.subr.bf16.mxu0 0
    %730 = vmatpush1.bf16.msra.mxu0 %v491
    %731 = vmatprep.subr.bf16.mxu0 0
    %732 = vmatpush1.bf16.msra.mxu0 %v496
    %733 = vmatprep.subr.bf16.mxu0 0
    %734 = vmatpush1.bf16.msra.mxu0 %v501
    %735 = vmatprep.subr.bf16.mxu0 0
    %736 = vmatpush1.bf16.msra.mxu0 %v506
    %737 = vmatprep.subr.bf16.mxu0 0
    %738 = vmatpush1.bf16.msra.mxu0 %v511
    %739 = vmatprep.subr.bf16.mxu0 0
    %740 = vmatpush1.bf16.msra.mxu0 %v516
    %741 = vmatprep.subr.bf16.mxu0 0
    %742 = vmatpush1.bf16.msra.mxu0 %v521
    %743 = vmatprep.subr.bf16.mxu0 0
    %744 = vmatpush1.bf16.msra.mxu0 %v526
    %745 = vmatprep.subr.bf16.mxu0 0
    %746 = vmatpush1.bf16.msra.mxu0 %v531
    %747 = vmatprep.subr.bf16.mxu0 0
    %748 = vmatpush1.bf16.msra.mxu0 %v536
    %749 = vmatprep.subr.bf16.mxu0 0
    %750 = vmatpush1.bf16.msra.mxu0 %v541
    %751 = vmatprep.subr.bf16.mxu0 0
    %752 = vmatpush1.bf16.msra.mxu0 %v546
    %753 = vmatprep.subr.bf16.mxu0 0
    %754 = vmatpush1.bf16.msra.mxu0 %v551
    %755 = vmatprep.subr.bf16.mxu0 0
    %756 = vmatpush1.bf16.msra.mxu0 %v556
    %757 = vmatprep.subr.bf16.mxu0 0
    %758 = vmatpush1.bf16.msra.mxu0 %v561
    %759 = vmatprep.subr.bf16.mxu0 0
    %760 = vmatpush1.bf16.msra.mxu0 %v566
    %761 = vmatprep.mubr.bf16.mxu0 %v228
    %762 = vmatmul.mubr.bf16.gmra.mrb[0].mxu0 %v227
    %v763 = vpop.f32.mrb[0].mxu0
    %v764 = vadd.f32 %v218, %v763
    %v765 = vpop.f32.mrb[0].mxu0
    %v766 = vpop.f32.mrb[0].mxu0
    %v767 = vpop.f32.mrb[0].mxu0
    %768 = vdwg.mxu0
    %v769 = vmax.f32 %v682, 0.0
    %v770 = vmax.f32 %v684, 0.0
    %v771 = vmax.f32 %v723, 0.0
    %v772 = vmax.f32 %v725, 0.0
    %v773 = vmax.f32 %v764, 0.0
    %v774 = vpack.c.bf16 %v769, %v769
    %v775 = vpack.c.bf16 %v770, %v770
    %v776 = vpack.c.bf16 %v771, %v771
    %v777 = vpack.c.bf16 %v772, %v772
    %v778 = vpack.c.bf16 %v773, %v773
    %v779 = vld [vmem:[#allocation7] sm:$0xff]
    %v780 = vld [vmem:[#allocation7 + $0x8] sm:$0xff]
    %v781 = vld [vmem:[#allocation7 + $0x10] sm:$0xf]
    %v782 = vld [vmem:[#allocation7 + $0x14] sm:$0xff]
    %v783 = vld [vmem:[#allocation7 + $0x1c] sm:$0xff]
    %v784 = vld [vmem:[#allocation7 + $0x24] sm:$0xf]
    %v785 = vld [vmem:[#allocation7 + $0x28] sm:$0xff]
    %v786 = vld [vmem:[#allocation7 + $0x30] sm:$0xff]
    %v787 = vld [vmem:[#allocation7 + $0x38] sm:$0xf]
    %v788 = vld [vmem:[#allocation7 + $0x3c] sm:$0xff]
    %v789 = vld [vmem:[#allocation7 + $0x44] sm:$0xff]
    %v790 = vld [vmem:[#allocation7 + $0x4c] sm:$0xf]
    %v791 = vld [vmem:[#allocation7 + $0x50] sm:$0xff]
    %v792 = vld [vmem:[#allocation7 + $0x58] sm:$0xff]
    %v793 = vld [vmem:[#allocation7 + $0x60] sm:$0xf]
    %v794 = vld [vmem:[#allocation7 + $0x64] sm:$0xff]
    %v795 = vld [vmem:[#allocation7 + $0x6c] sm:$0xff]
    %v796 = vld [vmem:[#allocation7 + $0x74] sm:$0xf]
    %v797 = vld [vmem:[#allocation7 + $0x78] sm:$0xff]
    %v798 = vld [vmem:[#allocation7 + $0x80] sm:$0xff]
    %v799 = vld [vmem:[#allocation7 + $0x88] sm:$0xf]
    %v800 = vld [vmem:[#allocation7 + $0x8c] sm:$0xff]
    %v801 = vld [vmem:[#allocation7 + $0x94] sm:$0xff]
    %v802 = vld [vmem:[#allocation7 + $0x9c] sm:$0xf]
    %v803 = vld [vmem:[#allocation7 + $0xa0] sm:$0xff]
    %v804 = vld [vmem:[#allocation7 + $0xa8] sm:$0xff]
    %v805 = vld [vmem:[#allocation7 + $0xb0] sm:$0xf]
    %v806 = vld [vmem:[#allocation7 + $0xb4] sm:$0xff]
    %v807 = vld [vmem:[#allocation7 + $0xbc] sm:$0xff]
    %v808 = vld [vmem:[#allocation7 + $0xc4] sm:$0xf]
    %v809 = vld [vmem:[#allocation7 + $0xc8] sm:$0xff]
    %v810 = vld [vmem:[#allocation7 + $0xd0] sm:$0xff]
    %v811 = vld [vmem:[#allocation7 + $0xd8] sm:$0xf]
    %v812 = vld [vmem:[#allocation7 + $0xdc] sm:$0xff]
    %v813 = vld [vmem:[#allocation7 + $0xe4] sm:$0xff]
    %v814 = vld [vmem:[#allocation7 + $0xec] sm:$0xf]
    %v815 = vld [vmem:[#allocation7 + $0xf0] sm:$0xff]
    %v816 = vld [vmem:[#allocation7 + $0xf8] sm:$0xff]
    %v817 = vld [vmem:[#allocation7 + $0x100] sm:$0xf]
    %v818 = vld [vmem:[#allocation7 + $0x104] sm:$0xff]
    %v819 = vld [vmem:[#allocation7 + $0x10c] sm:$0xff]
    %v820 = vld [vmem:[#allocation7 + $0x114] sm:$0xf]
    %v821 = vld [vmem:[#allocation7 + $0x118] sm:$0xff]
    %v822 = vld [vmem:[#allocation7 + $0x120] sm:$0xff]
    %v823 = vld [vmem:[#allocation7 + $0x128] sm:$0xf]
    %v824 = vld [vmem:[#allocation7 + $0x12c] sm:$0xff]
    %v825 = vld [vmem:[#allocation7 + $0x134] sm:$0xff]
    %v826 = vld [vmem:[#allocation7 + $0x13c] sm:$0xf]
    %v827 = vld [vmem:[#allocation7 + $0x140] sm:$0xff]
    %v828 = vld [vmem:[#allocation7 + $0x148] sm:$0xff]
    %v829 = vld [vmem:[#allocation7 + $0x150] sm:$0xf]
    %v830 = vld [vmem:[#allocation7 + $0x154] sm:$0xff]
    %v831 = vld [vmem:[#allocation7 + $0x15c] sm:$0xff]
    %v832 = vld [vmem:[#allocation7 + $0x164] sm:$0xf]
    %v833 = vld [vmem:[#allocation7 + $0x168] sm:$0xff]
    %v834 = vld [vmem:[#allocation7 + $0x170] sm:$0xff]
    %v835 = vld [vmem:[#allocation7 + $0x178] sm:$0xf]
    %v836 = vld [vmem:[#allocation7 + $0x17c] sm:$0xff]
    %v837 = vld [vmem:[#allocation7 + $0x184] sm:$0xff]
    %v838 = vld [vmem:[#allocation7 + $0x18c] sm:$0xf]
    %v839 = vld [vmem:[#allocation7 + $0x190] sm:$0xff]
    %v840 = vld [vmem:[#allocation7 + $0x198] sm:$0xff]
    %v841 = vld [vmem:[#allocation7 + $0x1a0] sm:$0xf]
    %v842 = vld [vmem:[#allocation7 + $0x1a4] sm:$0xff]
    %v843 = vld [vmem:[#allocation7 + $0x1ac] sm:$0xff]
    %v844 = vld [vmem:[#allocation7 + $0x1b4] sm:$0xf]
    %v845 = vld [vmem:[#allocation7 + $0x1b8] sm:$0xff]
    %v846 = vld [vmem:[#allocation7 + $0x1c0] sm:$0xff]
    %v847 = vld [vmem:[#allocation7 + $0x1c8] sm:$0xf]
    %v848 = vld [vmem:[#allocation7 + $0x1cc] sm:$0xff]
    %v849 = vld [vmem:[#allocation7 + $0x1d4] sm:$0xff]
    %v850 = vld [vmem:[#allocation7 + $0x1dc] sm:$0xf]
    %v851 = vld [vmem:[#allocation7 + $0x1e0] sm:$0xff]
    %v852 = vld [vmem:[#allocation7 + $0x1e8] sm:$0xff]
    %v853 = vld [vmem:[#allocation7 + $0x1f0] sm:$0xf]
    %v854 = vld [vmem:[#allocation7 + $0x1f4] sm:$0xff]
    %v855 = vld [vmem:[#allocation7 + $0x1fc] sm:$0xff]
    %v856 = vld [vmem:[#allocation7 + $0x204] sm:$0xf]
    %v857 = vld [vmem:[#allocation7 + $0x208] sm:$0xff]
    %v858 = vld [vmem:[#allocation7 + $0x210] sm:$0xff]
    %v859 = vld [vmem:[#allocation7 + $0x218] sm:$0xf]
    %v860 = vld [vmem:[#allocation7 + $0x21c] sm:$0xff]
    %v861 = vld [vmem:[#allocation7 + $0x224] sm:$0xff]
    %v862 = vld [vmem:[#allocation7 + $0x22c] sm:$0xf]
    %v863 = vld [vmem:[#allocation7 + $0x230] sm:$0xff]
    %v864 = vld [vmem:[#allocation7 + $0x238] sm:$0xff]
    %v865 = vld [vmem:[#allocation7 + $0x240] sm:$0xf]
    %v866 = vld [vmem:[#allocation7 + $0x244] sm:$0xff]
    %v867 = vld [vmem:[#allocation7 + $0x24c] sm:$0xff]
    %v868 = vld [vmem:[#allocation7 + $0x254] sm:$0xf]
    %v869 = vld [vmem:[#allocation7 + $0x258] sm:$0xff]
    %v870 = vld [vmem:[#allocation7 + $0x260] sm:$0xff]
    %v871 = vld [vmem:[#allocation7 + $0x268] sm:$0xf]
    %v872 = vld [vmem:[#allocation7 + $0x26c] sm:$0xff]
    %v873 = vld [vmem:[#allocation7 + $0x274] sm:$0xff]
    %v874 = vld [vmem:[#allocation7 + $0x27c] sm:$0xf]
    %v875 = vld [vmem:[#allocation7 + $0x280] sm:$0xff]
    %v876 = vld [vmem:[#allocation7 + $0x288] sm:$0xff]
    %v877 = vld [vmem:[#allocation7 + $0x290] sm:$0xf]
    %v878 = vld [vmem:[#allocation7 + $0x294] sm:$0xff]
    %v879 = vld [vmem:[#allocation7 + $0x29c] sm:$0xff]
    %v880 = vld [vmem:[#allocation7 + $0x2a4] sm:$0xf]
    %v881 = vld [vmem:[#allocation7 + $0x2a8] sm:$0xff]
    %v882 = vld [vmem:[#allocation7 + $0x2b0] sm:$0xff]
    %v883 = vld [vmem:[#allocation7 + $0x2b8] sm:$0xf]
    %v884 = vld [vmem:[#allocation7 + $0x2bc] sm:$0xff]
    %v885 = vld [vmem:[#allocation7 + $0x2c4] sm:$0xff]
    %v886 = vld [vmem:[#allocation7 + $0x2cc] sm:$0xf]
    %v887 = vld [vmem:[#allocation7 + $0x2d0] sm:$0xff]
    %v888 = vld [vmem:[#allocation7 + $0x2d8] sm:$0xff]
    %v889 = vld [vmem:[#allocation7 + $0x2e0] sm:$0xf]
    %v890 = vld [vmem:[#allocation7 + $0x2e4] sm:$0xff]
    %v891 = vld [vmem:[#allocation7 + $0x2ec] sm:$0xff]
    %v892 = vld [vmem:[#allocation7 + $0x2f4] sm:$0xf]
    %v893 = vld [vmem:[#allocation7 + $0x2f8] sm:$0xff]
    %v894 = vld [vmem:[#allocation7 + $0x300] sm:$0xff]
    %v895 = vld [vmem:[#allocation7 + $0x308] sm:$0xf]
    %v896 = vld [vmem:[#allocation7 + $0x30c] sm:$0xff]
    %v897 = vld [vmem:[#allocation7 + $0x314] sm:$0xff]
    %v898 = vld [vmem:[#allocation7 + $0x31c] sm:$0xf]
    %v899 = vld [vmem:[#allocation7 + $0x320] sm:$0xff]
    %v900 = vld [vmem:[#allocation7 + $0x328] sm:$0xff]
    %v901 = vld [vmem:[#allocation7 + $0x330] sm:$0xf]
    %v902 = vld [vmem:[#allocation7 + $0x334] sm:$0xff]
    %v903 = vld [vmem:[#allocation7 + $0x33c] sm:$0xff]
    %v904 = vld [vmem:[#allocation7 + $0x344] sm:$0xf]
    %v905 = vld [vmem:[#allocation7 + $0x348] sm:$0xff]
    %v906 = vld [vmem:[#allocation7 + $0x350] sm:$0xff]
    %v907 = vld [vmem:[#allocation7 + $0x358] sm:$0xf]
    %v908 = vld [vmem:[#allocation7 + $0x35c] sm:$0xff]
    %v909 = vld [vmem:[#allocation7 + $0x364] sm:$0xff]
    %v910 = vld [vmem:[#allocation7 + $0x36c] sm:$0xf]
    %v911 = vld [vmem:[#allocation7 + $0x370] sm:$0xff]
    %v912 = vld [vmem:[#allocation7 + $0x378] sm:$0xff]
    %v913 = vld [vmem:[#allocation7 + $0x380] sm:$0xf]
    %v914 = vld [vmem:[#allocation7 + $0x384] sm:$0xff]
    %v915 = vld [vmem:[#allocation7 + $0x38c] sm:$0xff]
    %v916 = vld [vmem:[#allocation7 + $0x394] sm:$0xf]
    %v917 = vld [vmem:[#allocation7 + $0x398] sm:$0xff]
    %v918 = vld [vmem:[#allocation7 + $0x3a0] sm:$0xff]
    %v919 = vld [vmem:[#allocation7 + $0x3a8] sm:$0xf]
    %v920 = vld [vmem:[#allocation7 + $0x3ac] sm:$0xff]
    %v921 = vld [vmem:[#allocation7 + $0x3b4] sm:$0xff]
    %v922 = vld [vmem:[#allocation7 + $0x3bc] sm:$0xf]
    %v923 = vld [vmem:[#allocation7 + $0x3c0] sm:$0xff]
    %v924 = vld [vmem:[#allocation7 + $0x3c8] sm:$0xff]
    %v925 = vld [vmem:[#allocation7 + $0x3d0] sm:$0xf]
    %v926 = vld [vmem:[#allocation7 + $0x3d4] sm:$0xff]
    %v927 = vld [vmem:[#allocation7 + $0x3dc] sm:$0xff]
    %v928 = vld [vmem:[#allocation7 + $0x3e4] sm:$0xf]
    %v929 = vld [vmem:[#allocation7 + $0x3e8] sm:$0xff]
    %v930 = vld [vmem:[#allocation7 + $0x3f0] sm:$0xff]
    %v931 = vld [vmem:[#allocation7 + $0x3f8] sm:$0xf]
    %v932 = vld [vmem:[#allocation7 + $0x3fc] sm:$0xff]
    %v933 = vld [vmem:[#allocation7 + $0x404] sm:$0xff]
    %v934 = vld [vmem:[#allocation7 + $0x40c] sm:$0xf]
    %v935 = vld [vmem:[#allocation7 + $0x410] sm:$0xff]
    %v936 = vld [vmem:[#allocation7 + $0x418] sm:$0xff]
    %v937 = vld [vmem:[#allocation7 + $0x420] sm:$0xf]
    %v938 = vld [vmem:[#allocation7 + $0x424] sm:$0xff]
    %v939 = vld [vmem:[#allocation7 + $0x42c] sm:$0xff]
    %v940 = vld [vmem:[#allocation7 + $0x434] sm:$0xf]
    %v941 = vld [vmem:[#allocation7 + $0x438] sm:$0xff]
    %v942 = vld [vmem:[#allocation7 + $0x440] sm:$0xff]
    %v943 = vld [vmem:[#allocation7 + $0x448] sm:$0xf]
    %v944 = vld [vmem:[#allocation7 + $0x44c] sm:$0xff]
    %v945 = vld [vmem:[#allocation7 + $0x454] sm:$0xff]
    %v946 = vld [vmem:[#allocation7 + $0x45c] sm:$0xf]
    %v947 = vld [vmem:[#allocation7 + $0x460] sm:$0xff]
    %v948 = vld [vmem:[#allocation7 + $0x468] sm:$0xff]
    %v949 = vld [vmem:[#allocation7 + $0x470] sm:$0xf]
    %v950 = vld [vmem:[#allocation7 + $0x474] sm:$0xff]
    %v951 = vld [vmem:[#allocation7 + $0x47c] sm:$0xff]
    %v952 = vld [vmem:[#allocation7 + $0x484] sm:$0xf]
    %v953 = vld [vmem:[#allocation7 + $0x488] sm:$0xff]
    %v954 = vld [vmem:[#allocation7 + $0x490] sm:$0xff]
    %v955 = vld [vmem:[#allocation7 + $0x498] sm:$0xf]
    %v956 = vld [vmem:[#allocation7 + $0x49c] sm:$0xff]
    %v957 = vld [vmem:[#allocation7 + $0x4a4] sm:$0xff]
    %v958 = vld [vmem:[#allocation7 + $0x4ac] sm:$0xf]
    %v959 = vld [vmem:[#allocation7 + $0x4b0] sm:$0xff]
    %v960 = vld [vmem:[#allocation7 + $0x4b8] sm:$0xff]
    %v961 = vld [vmem:[#allocation7 + $0x4c0] sm:$0xf]
    %v962 = vld [vmem:[#allocation7 + $0x4c4] sm:$0xff]
    %v963 = vld [vmem:[#allocation7 + $0x4cc] sm:$0xff]
    %v964 = vld [vmem:[#allocation7 + $0x4d4] sm:$0xf]
    %v965 = vld [vmem:[#allocation7 + $0x4d8] sm:$0xff]
    %v966 = vld [vmem:[#allocation7 + $0x4e0] sm:$0xff]
    %v967 = vld [vmem:[#allocation7 + $0x4e8] sm:$0xf]
    %v968 = vld [vmem:[#allocation7 + $0x4ec] sm:$0xff]
    %v969 = vld [vmem:[#allocation7 + $0x4f4] sm:$0xff]
    %v970 = vld [vmem:[#allocation7 + $0x4fc] sm:$0xf]
    %v971 = vld [vmem:[#allocation7 + $0x500] sm:$0xff]
    %v972 = vld [vmem:[#allocation7 + $0x508] sm:$0xff]
    %v973 = vld [vmem:[#allocation7 + $0x510] sm:$0xf]
    %v974 = vld [vmem:[#allocation7 + $0x514] sm:$0xff]
    %v975 = vld [vmem:[#allocation7 + $0x51c] sm:$0xff]
    %v976 = vld [vmem:[#allocation7 + $0x524] sm:$0xf]
    %v977 = vld [vmem:[#allocation7 + $0x528] sm:$0xff]
    %v978 = vld [vmem:[#allocation7 + $0x530] sm:$0xff]
    %v979 = vld [vmem:[#allocation7 + $0x538] sm:$0xf]
    %v980 = vld [vmem:[#allocation7 + $0x53c] sm:$0xff]
    %v981 = vld [vmem:[#allocation7 + $0x544] sm:$0xff]
    %v982 = vld [vmem:[#allocation7 + $0x54c] sm:$0xf]
    %v983 = vld [vmem:[#allocation7 + $0x550] sm:$0xff]
    %v984 = vld [vmem:[#allocation7 + $0x558] sm:$0xff]
    %v985 = vld [vmem:[#allocation7 + $0x560] sm:$0xf]
    %v986 = vld [vmem:[#allocation7 + $0x564] sm:$0xff]
    %v987 = vld [vmem:[#allocation7 + $0x56c] sm:$0xff]
    %v988 = vld [vmem:[#allocation7 + $0x574] sm:$0xf]
    %v989 = vld [vmem:[#allocation7 + $0x578] sm:$0xff]
    %v990 = vld [vmem:[#allocation7 + $0x580] sm:$0xff]
    %v991 = vld [vmem:[#allocation7 + $0x588] sm:$0xf]
    %v992 = vld [vmem:[#allocation7 + $0x58c] sm:$0xff]
    %v993 = vld [vmem:[#allocation7 + $0x594] sm:$0xff]
    %v994 = vld [vmem:[#allocation7 + $0x59c] sm:$0xf]
    %v995 = vld [vmem:[#allocation7 + $0x5a0] sm:$0xff]
    %v996 = vld [vmem:[#allocation7 + $0x5a8] sm:$0xff]
    %v997 = vld [vmem:[#allocation7 + $0x5b0] sm:$0xf]
    %v998 = vld [vmem:[#allocation7 + $0x5b4] sm:$0xff]
    %v999 = vld [vmem:[#allocation7 + $0x5bc] sm:$0xff]
    %v1000 = vld [vmem:[#allocation7 + $0x5c4] sm:$0xf]
    %v1001 = vld [vmem:[#allocation7 + $0x5c8] sm:$0xff]
    %v1002 = vld [vmem:[#allocation7 + $0x5d0] sm:$0xff]
    %v1003 = vld [vmem:[#allocation7 + $0x5d8] sm:$0xf]
    %v1004 = vld [vmem:[#allocation7 + $0x5dc] sm:$0xff]
    %v1005 = vld [vmem:[#allocation7 + $0x5e4] sm:$0xff]
    %v1006 = vld [vmem:[#allocation7 + $0x5ec] sm:$0xf]
    %v1007 = vld [vmem:[#allocation7 + $0x5f0] sm:$0xff]
    %v1008 = vld [vmem:[#allocation7 + $0x5f8] sm:$0xff]
    %v1009 = vld [vmem:[#allocation7 + $0x600] sm:$0xf]
    %v1010 = vld [vmem:[#allocation7 + $0x604] sm:$0xff]
    %v1011 = vld [vmem:[#allocation7 + $0x60c] sm:$0xff]
    %v1012 = vld [vmem:[#allocation7 + $0x614] sm:$0xf]
    %v1013 = vld [vmem:[#allocation7 + $0x618] sm:$0xff]
    %v1014 = vld [vmem:[#allocation7 + $0x620] sm:$0xff]
    %v1015 = vld [vmem:[#allocation7 + $0x628] sm:$0xf]
    %v1016 = vld [vmem:[#allocation7 + $0x62c] sm:$0xff]
    %v1017 = vld [vmem:[#allocation7 + $0x634] sm:$0xff]
    %v1018 = vld [vmem:[#allocation7 + $0x63c] sm:$0xf]
    %v1019 = vld [vmem:[%s4] sm:$0x1f]
    %v1021 = vlaneseq
    %v1022 = vshrl.u32 %v1021, 7
    %v1023 = vsub.s32 0, %v1022
    %v1024 = vrot.slane %v1019, %v1023
    %v1025 = vlaneseq
    %v1026 = vshrl.u32 %v1025, 7
    %v1027 = vsub.s32 1, %v1026
    %v1028 = vrot.slane %v1019, %v1027
    %v1029 = vlaneseq
    %v1030 = vshrl.u32 %v1029, 7
    %v1031 = vsub.s32 2, %v1030
    %v1032 = vrot.slane %v1019, %v1031
    %v1033 = vlaneseq
    %v1034 = vshrl.u32 %v1033, 7
    %v1035 = vsub.s32 3, %v1034
    %v1036 = vrot.slane %v1019, %v1035
    %v1037 = vlaneseq
    %v1038 = vshrl.u32 %v1037, 7
    %v1039 = vsub.s32 4, %v1038
    %v1040 = vrot.slane %v1019, %v1039
    %v1286 = vunpack.c.l.b16 %v779
    %v1287 = vunpack.c.h.b16 %v779
    %v1288 = vunpack.c.l.b16 %v780
    %v1289 = vunpack.c.h.b16 %v780
    %v1290 = vunpack.c.l.b16 %v781
    %v1291 = vunpack.c.l.b16 %v782
    %v1292 = vunpack.c.h.b16 %v782
    %v1293 = vunpack.c.l.b16 %v783
    %v1294 = vunpack.c.h.b16 %v783
    %v1295 = vunpack.c.l.b16 %v784
    %v1296 = vunpack.c.l.b16 %v785
    %v1297 = vunpack.c.h.b16 %v785
    %v1298 = vunpack.c.l.b16 %v786
    %v1299 = vunpack.c.h.b16 %v786
    %v1300 = vunpack.c.l.b16 %v787
    %v1301 = vunpack.c.l.b16 %v788
    %v1302 = vunpack.c.h.b16 %v788
    %v1303 = vunpack.c.l.b16 %v789
    %v1304 = vunpack.c.h.b16 %v789
    %v1305 = vunpack.c.l.b16 %v790
    %v1306 = vunpack.c.l.b16 %v791
    %v1307 = vunpack.c.h.b16 %v791
    %v1308 = vunpack.c.l.b16 %v792
    %v1309 = vunpack.c.h.b16 %v792
    %v1310 = vunpack.c.l.b16 %v793
    %v1311 = vunpack.c.l.b16 %v794
    %v1312 = vunpack.c.h.b16 %v794
    %v1313 = vunpack.c.l.b16 %v795
    %v1314 = vunpack.c.h.b16 %v795
    %v1315 = vunpack.c.l.b16 %v796
    %v1316 = vunpack.c.l.b16 %v797
    %v1317 = vunpack.c.h.b16 %v797
    %v1318 = vunpack.c.l.b16 %v798
    %v1319 = vunpack.c.h.b16 %v798
    %v1320 = vunpack.c.l.b16 %v799
    %v1321 = vunpack.c.l.b16 %v800
    %v1322 = vunpack.c.h.b16 %v800
    %v1323 = vunpack.c.l.b16 %v801
    %v1324 = vunpack.c.h.b16 %v801
    %v1325 = vunpack.c.l.b16 %v802
    %v1326 = vunpack.c.l.b16 %v803
    %v1327 = vunpack.c.h.b16 %v803
    %v1328 = vunpack.c.l.b16 %v804
    %v1329 = vunpack.c.h.b16 %v804
    %v1330 = vunpack.c.l.b16 %v805
    %v1331 = vunpack.c.l.b16 %v806
    %v1332 = vunpack.c.h.b16 %v806
    %v1333 = vunpack.c.l.b16 %v807
    %v1334 = vunpack.c.h.b16 %v807
    %v1335 = vunpack.c.l.b16 %v808
    %v1336 = vunpack.c.l.b16 %v809
    %v1337 = vunpack.c.h.b16 %v809
    %v1338 = vunpack.c.l.b16 %v810
    %v1339 = vunpack.c.h.b16 %v810
    %v1340 = vunpack.c.l.b16 %v811
    %v1341 = vunpack.c.l.b16 %v812
    %v1342 = vunpack.c.h.b16 %v812
    %v1343 = vunpack.c.l.b16 %v813
    %v1344 = vunpack.c.h.b16 %v813
    %v1345 = vunpack.c.l.b16 %v814
    %v1346 = vunpack.c.l.b16 %v815
    %v1347 = vunpack.c.h.b16 %v815
    %v1348 = vunpack.c.l.b16 %v816
    %v1349 = vunpack.c.h.b16 %v816
    %v1350 = vunpack.c.l.b16 %v817
    %v1351 = vunpack.c.l.b16 %v818
    %v1352 = vunpack.c.h.b16 %v818
    %v1353 = vunpack.c.l.b16 %v819
    %v1354 = vunpack.c.h.b16 %v819
    %v1355 = vunpack.c.l.b16 %v820
    %v1356 = vunpack.c.l.b16 %v821
    %v1357 = vunpack.c.h.b16 %v821
    %v1358 = vunpack.c.l.b16 %v822
    %v1359 = vunpack.c.h.b16 %v822
    %v1360 = vunpack.c.l.b16 %v823
    %v1361 = vunpack.c.l.b16 %v824
    %v1362 = vunpack.c.h.b16 %v824
    %v1363 = vunpack.c.l.b16 %v825
    %v1364 = vunpack.c.h.b16 %v825
    %v1365 = vunpack.c.l.b16 %v826
    %v1366 = vunpack.c.l.b16 %v827
    %v1367 = vunpack.c.h.b16 %v827
    %v1368 = vunpack.c.l.b16 %v828
    %v1369 = vunpack.c.h.b16 %v828
    %v1370 = vunpack.c.l.b16 %v829
    %v1371 = vunpack.c.l.b16 %v830
    %v1372 = vunpack.c.h.b16 %v830
    %v1373 = vunpack.c.l.b16 %v831
    %v1374 = vunpack.c.h.b16 %v831
    %v1375 = vunpack.c.l.b16 %v832
    %v1376 = vunpack.c.l.b16 %v833
    %v1377 = vunpack.c.h.b16 %v833
    %v1378 = vunpack.c.l.b16 %v834
    %v1379 = vunpack.c.h.b16 %v834
    %v1380 = vunpack.c.l.b16 %v835
    %v1381 = vunpack.c.l.b16 %v836
    %v1382 = vunpack.c.h.b16 %v836
    %v1383 = vunpack.c.l.b16 %v837
    %v1384 = vunpack.c.h.b16 %v837
    %v1385 = vunpack.c.l.b16 %v838
    %v1386 = vunpack.c.l.b16 %v839
    %v1387 = vunpack.c.h.b16 %v839
    %v1388 = vunpack.c.l.b16 %v840
    %v1389 = vunpack.c.h.b16 %v840
    %v1390 = vunpack.c.l.b16 %v841
    %v1391 = vunpack.c.l.b16 %v842
    %v1392 = vunpack.c.h.b16 %v842
    %v1393 = vunpack.c.l.b16 %v843
    %v1394 = vunpack.c.h.b16 %v843
    %v1395 = vunpack.c.l.b16 %v844
    %v1396 = vunpack.c.l.b16 %v845
    %v1397 = vunpack.c.h.b16 %v845
    %v1398 = vunpack.c.l.b16 %v846
    %v1399 = vunpack.c.h.b16 %v846
    %v1400 = vunpack.c.l.b16 %v847
    %v1401 = vunpack.c.l.b16 %v848
    %v1402 = vunpack.c.h.b16 %v848
    %v1403 = vunpack.c.l.b16 %v849
    %v1404 = vunpack.c.h.b16 %v849
    %v1405 = vunpack.c.l.b16 %v850
    %v1406 = vunpack.c.l.b16 %v851
    %v1407 = vunpack.c.h.b16 %v851
    %v1408 = vunpack.c.l.b16 %v852
    %v1409 = vunpack.c.h.b16 %v852
    %v1410 = vunpack.c.l.b16 %v853
    %v1411 = vunpack.c.l.b16 %v854
    %v1412 = vunpack.c.h.b16 %v854
    %v1413 = vunpack.c.l.b16 %v855
    %v1414 = vunpack.c.h.b16 %v855
    %v1415 = vunpack.c.l.b16 %v856
    %v1416 = vunpack.c.l.b16 %v857
    %v1417 = vunpack.c.h.b16 %v857
    %v1418 = vunpack.c.l.b16 %v858
    %v1419 = vunpack.c.h.b16 %v858
    %v1420 = vunpack.c.l.b16 %v859
    %v1421 = vunpack.c.l.b16 %v860
    %v1422 = vunpack.c.h.b16 %v860
    %v1423 = vunpack.c.l.b16 %v861
    %v1424 = vunpack.c.h.b16 %v861
    %v1425 = vunpack.c.l.b16 %v862
    %v1426 = vunpack.c.l.b16 %v863
    %v1427 = vunpack.c.h.b16 %v863
    %v1428 = vunpack.c.l.b16 %v864
    %v1429 = vunpack.c.h.b16 %v864
    %v1430 = vunpack.c.l.b16 %v865
    %v1431 = vunpack.c.l.b16 %v866
    %v1432 = vunpack.c.h.b16 %v866
    %v1433 = vunpack.c.l.b16 %v867
    %v1434 = vunpack.c.h.b16 %v867
    %v1435 = vunpack.c.l.b16 %v868
    %v1436 = vunpack.c.l.b16 %v869
    %v1437 = vunpack.c.h.b16 %v869
    %v1438 = vunpack.c.l.b16 %v870
    %v1439 = vunpack.c.h.b16 %v870
    %v1440 = vunpack.c.l.b16 %v871
    %v1441 = vunpack.c.l.b16 %v872
    %v1442 = vunpack.c.h.b16 %v872
    %v1443 = vunpack.c.l.b16 %v873
    %v1444 = vunpack.c.h.b16 %v873
    %v1445 = vunpack.c.l.b16 %v874
    %v1446 = vunpack.c.l.b16 %v875
    %v1447 = vunpack.c.h.b16 %v875
    %v1448 = vunpack.c.l.b16 %v876
    %v1449 = vunpack.c.h.b16 %v876
    %v1450 = vunpack.c.l.b16 %v877
    %v1451 = vunpack.c.l.b16 %v878
    %v1452 = vunpack.c.h.b16 %v878
    %v1453 = vunpack.c.l.b16 %v879
    %v1454 = vunpack.c.h.b16 %v879
    %v1455 = vunpack.c.l.b16 %v880
    %v1456 = vunpack.c.l.b16 %v881
    %v1457 = vunpack.c.h.b16 %v881
    %v1458 = vunpack.c.l.b16 %v882
    %v1459 = vunpack.c.h.b16 %v882
    %v1460 = vunpack.c.l.b16 %v883
    %v1461 = vunpack.c.l.b16 %v884
    %v1462 = vunpack.c.h.b16 %v884
    %v1463 = vunpack.c.l.b16 %v885
    %v1464 = vunpack.c.h.b16 %v885
    %v1465 = vunpack.c.l.b16 %v886
    %v1466 = vunpack.c.l.b16 %v887
    %v1467 = vunpack.c.h.b16 %v887
    %v1468 = vunpack.c.l.b16 %v888
    %v1469 = vunpack.c.h.b16 %v888
    %v1470 = vunpack.c.l.b16 %v889
    %v1471 = vunpack.c.l.b16 %v890
    %v1472 = vunpack.c.h.b16 %v890
    %v1473 = vunpack.c.l.b16 %v891
    %v1474 = vunpack.c.h.b16 %v891
    %v1475 = vunpack.c.l.b16 %v892
    %v1476 = vunpack.c.l.b16 %v893
    %v1477 = vunpack.c.h.b16 %v893
    %v1478 = vunpack.c.l.b16 %v894
    %v1479 = vunpack.c.h.b16 %v894
    %v1480 = vunpack.c.l.b16 %v895
    %v1481 = vunpack.c.l.b16 %v896
    %v1482 = vunpack.c.h.b16 %v896
    %v1483 = vunpack.c.l.b16 %v897
    %v1484 = vunpack.c.h.b16 %v897
    %v1485 = vunpack.c.l.b16 %v898
    %v1486 = vunpack.c.l.b16 %v899
    %v1487 = vunpack.c.h.b16 %v899
    %v1488 = vunpack.c.l.b16 %v900
    %v1489 = vunpack.c.h.b16 %v900
    %v1490 = vunpack.c.l.b16 %v901
    %v1491 = vunpack.c.l.b16 %v902
    %v1492 = vunpack.c.h.b16 %v902
    %v1493 = vunpack.c.l.b16 %v903
    %v1494 = vunpack.c.h.b16 %v903
    %v1495 = vunpack.c.l.b16 %v904
    %v1496 = vunpack.c.l.b16 %v905
    %v1497 = vunpack.c.h.b16 %v905
    %v1498 = vunpack.c.l.b16 %v906
    %v1499 = vunpack.c.h.b16 %v906
    %v1500 = vunpack.c.l.b16 %v907
    %v1501 = vunpack.c.l.b16 %v908
    %v1502 = vunpack.c.h.b16 %v908
    %v1503 = vunpack.c.l.b16 %v909
    %v1504 = vunpack.c.h.b16 %v909
    %v1505 = vunpack.c.l.b16 %v910
    %v1506 = vunpack.c.l.b16 %v911
    %v1507 = vunpack.c.h.b16 %v911
    %v1508 = vunpack.c.l.b16 %v912
    %v1509 = vunpack.c.h.b16 %v912
    %v1510 = vunpack.c.l.b16 %v913
    %v1511 = vunpack.c.l.b16 %v914
    %v1512 = vunpack.c.h.b16 %v914
    %v1513 = vunpack.c.l.b16 %v915
    %v1514 = vunpack.c.h.b16 %v915
    %v1515 = vunpack.c.l.b16 %v916
    %v1516 = vunpack.c.l.b16 %v917
    %v1517 = vunpack.c.h.b16 %v917
    %v1518 = vunpack.c.l.b16 %v918
    %v1519 = vunpack.c.h.b16 %v918
    %v1520 = vunpack.c.l.b16 %v919
    %v1521 = vunpack.c.l.b16 %v920
    %v1522 = vunpack.c.h.b16 %v920
    %v1523 = vunpack.c.l.b16 %v921
    %v1524 = vunpack.c.h.b16 %v921
    %v1525 = vunpack.c.l.b16 %v922
    %v1526 = vunpack.c.l.b16 %v923
    %v1527 = vunpack.c.h.b16 %v923
    %v1528 = vunpack.c.l.b16 %v924
    %v1529 = vunpack.c.h.b16 %v924
    %v1530 = vunpack.c.l.b16 %v925
    %v1531 = vunpack.c.l.b16 %v926
    %v1532 = vunpack.c.h.b16 %v926
    %v1533 = vunpack.c.l.b16 %v927
    %v1534 = vunpack.c.h.b16 %v927
    %v1535 = vunpack.c.l.b16 %v928
    %v1536 = vunpack.c.l.b16 %v929
    %v1537 = vunpack.c.h.b16 %v929
    %v1538 = vunpack.c.l.b16 %v930
    %v1539 = vunpack.c.h.b16 %v930
    %v1540 = vunpack.c.l.b16 %v931
    %v1541 = vunpack.c.l.b16 %v932
    %v1542 = vunpack.c.h.b16 %v932
    %v1543 = vunpack.c.l.b16 %v933
    %v1544 = vunpack.c.h.b16 %v933
    %v1545 = vunpack.c.l.b16 %v934
    %v1546 = vunpack.c.l.b16 %v935
    %v1547 = vunpack.c.h.b16 %v935
    %v1548 = vunpack.c.l.b16 %v936
    %v1549 = vunpack.c.h.b16 %v936
    %v1550 = vunpack.c.l.b16 %v937
    %v1551 = vunpack.c.l.b16 %v938
    %v1552 = vunpack.c.h.b16 %v938
    %v1553 = vunpack.c.l.b16 %v939
    %v1554 = vunpack.c.h.b16 %v939
    %v1555 = vunpack.c.l.b16 %v940
    %v1556 = vunpack.c.l.b16 %v941
    %v1557 = vunpack.c.h.b16 %v941
    %v1558 = vunpack.c.l.b16 %v942
    %v1559 = vunpack.c.h.b16 %v942
    %v1560 = vunpack.c.l.b16 %v943
    %v1561 = vunpack.c.l.b16 %v944
    %v1562 = vunpack.c.h.b16 %v944
    %v1563 = vunpack.c.l.b16 %v945
    %v1564 = vunpack.c.h.b16 %v945
    %v1565 = vunpack.c.l.b16 %v946
    %v1566 = vunpack.c.l.b16 %v947
    %v1567 = vunpack.c.h.b16 %v947
    %v1568 = vunpack.c.l.b16 %v948
    %v1569 = vunpack.c.h.b16 %v948
    %v1570 = vunpack.c.l.b16 %v949
    %v1571 = vunpack.c.l.b16 %v950
    %v1572 = vunpack.c.h.b16 %v950
    %v1573 = vunpack.c.l.b16 %v951
    %v1574 = vunpack.c.h.b16 %v951
    %v1575 = vunpack.c.l.b16 %v952
    %v1576 = vunpack.c.l.b16 %v953
    %v1577 = vunpack.c.h.b16 %v953
    %v1578 = vunpack.c.l.b16 %v954
    %v1579 = vunpack.c.h.b16 %v954
    %v1580 = vunpack.c.l.b16 %v955
    %v1581 = vunpack.c.l.b16 %v956
    %v1582 = vunpack.c.h.b16 %v956
    %v1583 = vunpack.c.l.b16 %v957
    %v1584 = vunpack.c.h.b16 %v957
    %v1585 = vunpack.c.l.b16 %v958
    %v1586 = vunpack.c.l.b16 %v959
    %v1587 = vunpack.c.h.b16 %v959
    %v1588 = vunpack.c.l.b16 %v960
    %v1589 = vunpack.c.h.b16 %v960
    %v1590 = vunpack.c.l.b16 %v961
    %v1591 = vunpack.c.l.b16 %v962
    %v1592 = vunpack.c.h.b16 %v962
    %v1593 = vunpack.c.l.b16 %v963
    %v1594 = vunpack.c.h.b16 %v963
    %v1595 = vunpack.c.l.b16 %v964
    %v1596 = vunpack.c.l.b16 %v965
    %v1597 = vunpack.c.h.b16 %v965
    %v1598 = vunpack.c.l.b16 %v966
    %v1599 = vunpack.c.h.b16 %v966
    %v1600 = vunpack.c.l.b16 %v967
    %v1601 = vunpack.c.l.b16 %v968
    %v1602 = vunpack.c.h.b16 %v968
    %v1603 = vunpack.c.l.b16 %v969
    %v1604 = vunpack.c.h.b16 %v969
    %v1605 = vunpack.c.l.b16 %v970
    %v1606 = vunpack.c.l.b16 %v971
    %v1607 = vunpack.c.h.b16 %v971
    %v1608 = vunpack.c.l.b16 %v972
    %v1609 = vunpack.c.h.b16 %v972
    %v1610 = vunpack.c.l.b16 %v973
    %v1611 = vunpack.c.l.b16 %v974
    %v1612 = vunpack.c.h.b16 %v974
    %v1613 = vunpack.c.l.b16 %v975
    %v1614 = vunpack.c.h.b16 %v975
    %v1615 = vunpack.c.l.b16 %v976
    %v1616 = vunpack.c.l.b16 %v977
    %v1617 = vunpack.c.h.b16 %v977
    %v1618 = vunpack.c.l.b16 %v978
    %v1619 = vunpack.c.h.b16 %v978
    %v1620 = vunpack.c.l.b16 %v979
    %v1621 = vunpack.c.l.b16 %v980
    %v1622 = vunpack.c.h.b16 %v980
    %v1623 = vunpack.c.l.b16 %v981
    %v1624 = vunpack.c.h.b16 %v981
    %v1625 = vunpack.c.l.b16 %v982
    %v1626 = vunpack.c.l.b16 %v983
    %v1627 = vunpack.c.h.b16 %v983
    %v1628 = vunpack.c.l.b16 %v984
    %v1629 = vunpack.c.h.b16 %v984
    %v1630 = vunpack.c.l.b16 %v985
    %v1631 = vunpack.c.l.b16 %v986
    %v1632 = vunpack.c.h.b16 %v986
    %v1633 = vunpack.c.l.b16 %v987
    %v1634 = vunpack.c.h.b16 %v987
    %v1635 = vunpack.c.l.b16 %v988
    %v1636 = vunpack.c.l.b16 %v989
    %v1637 = vunpack.c.h.b16 %v989
    %v1638 = vunpack.c.l.b16 %v990
    %v1639 = vunpack.c.h.b16 %v990
    %v1640 = vunpack.c.l.b16 %v991
    %v1641 = vunpack.c.l.b16 %v992
    %v1642 = vunpack.c.h.b16 %v992
    %v1643 = vunpack.c.l.b16 %v993
    %v1644 = vunpack.c.h.b16 %v993
    %v1645 = vunpack.c.l.b16 %v994
    %v1646 = vunpack.c.l.b16 %v995
    %v1647 = vunpack.c.h.b16 %v995
    %v1648 = vunpack.c.l.b16 %v996
    %v1649 = vunpack.c.h.b16 %v996
    %v1650 = vunpack.c.l.b16 %v997
    %v1651 = vunpack.c.l.b16 %v998
    %v1652 = vunpack.c.h.b16 %v998
    %v1653 = vunpack.c.l.b16 %v999
    %v1654 = vunpack.c.h.b16 %v999
    %v1655 = vunpack.c.l.b16 %v1000
    %v1656 = vunpack.c.l.b16 %v1001
    %v1657 = vunpack.c.h.b16 %v1001
    %v1658 = vunpack.c.l.b16 %v1002
    %v1659 = vunpack.c.h.b16 %v1002
    %v1660 = vunpack.c.l.b16 %v1003
    %v1661 = vunpack.c.l.b16 %v1004
    %v1662 = vunpack.c.h.b16 %v1004
    %v1663 = vunpack.c.l.b16 %v1005
    %v1664 = vunpack.c.h.b16 %v1005
    %v1665 = vunpack.c.l.b16 %v1006
    %v1666 = vunpack.c.l.b16 %v1007
    %v1667 = vunpack.c.h.b16 %v1007
    %v1668 = vunpack.c.l.b16 %v1008
    %v1669 = vunpack.c.h.b16 %v1008
    %v1670 = vunpack.c.l.b16 %v1009
    %v1671 = vunpack.c.l.b16 %v1010
    %v1672 = vunpack.c.h.b16 %v1010
    %v1673 = vunpack.c.l.b16 %v1011
    %v1674 = vunpack.c.h.b16 %v1011
    %v1675 = vunpack.c.l.b16 %v1012
    %v1676 = vunpack.c.l.b16 %v1013
    %v1677 = vunpack.c.h.b16 %v1013
    %v1678 = vunpack.c.l.b16 %v1014
    %v1679 = vunpack.c.h.b16 %v1014
    %v1680 = vunpack.c.l.b16 %v1015
    %v1681 = vunpack.c.l.b16 %v1016
    %v1682 = vunpack.c.h.b16 %v1016
    %v1683 = vunpack.c.l.b16 %v1017
    %v1684 = vunpack.c.h.b16 %v1017
    %v1685 = vunpack.c.l.b16 %v1018
    %v1686 = vpack.c.b16 %v1291, %v1286
    %v1687 = vpack.c.b16 %v1292, %v1287
    %v1688 = vpack.c.b16 %v1293, %v1288
    %v1689 = vpack.c.b16 %v1294, %v1289
    %v1690 = vpack.c.b16 %v1295, %v1290
    %v1691 = vpack.c.b16 %v1301, %v1296
    %v1692 = vpack.c.b16 %v1302, %v1297
    %v1693 = vpack.c.b16 %v1303, %v1298
    %v1694 = vpack.c.b16 %v1304, %v1299
    %v1695 = vpack.c.b16 %v1305, %v1300
    %v1696 = vpack.c.b16 %v1311, %v1306
    %v1697 = vpack.c.b16 %v1312, %v1307
    %v1698 = vpack.c.b16 %v1313, %v1308
    %v1699 = vpack.c.b16 %v1314, %v1309
    %v1700 = vpack.c.b16 %v1315, %v1310
    %v1701 = vpack.c.b16 %v1321, %v1316
    %v1702 = vpack.c.b16 %v1322, %v1317
    %v1703 = vpack.c.b16 %v1323, %v1318
    %v1704 = vpack.c.b16 %v1324, %v1319
    %v1705 = vpack.c.b16 %v1325, %v1320
    %v1706 = vpack.c.b16 %v1331, %v1326
    %v1707 = vpack.c.b16 %v1332, %v1327
    %v1708 = vpack.c.b16 %v1333, %v1328
    %v1709 = vpack.c.b16 %v1334, %v1329
    %v1710 = vpack.c.b16 %v1335, %v1330
    %v1711 = vpack.c.b16 %v1341, %v1336
    %v1712 = vpack.c.b16 %v1342, %v1337
    %v1713 = vpack.c.b16 %v1343, %v1338
    %v1714 = vpack.c.b16 %v1344, %v1339
    %v1715 = vpack.c.b16 %v1345, %v1340
    %v1716 = vpack.c.b16 %v1351, %v1346
    %v1717 = vpack.c.b16 %v1352, %v1347
    %v1718 = vpack.c.b16 %v1353, %v1348
    %v1719 = vpack.c.b16 %v1354, %v1349
    %v1720 = vpack.c.b16 %v1355, %v1350
    %v1721 = vpack.c.b16 %v1361, %v1356
    %v1722 = vpack.c.b16 %v1362, %v1357
    %v1723 = vpack.c.b16 %v1363, %v1358
    %v1724 = vpack.c.b16 %v1364, %v1359
    %v1725 = vpack.c.b16 %v1365, %v1360
    %v1726 = vpack.c.b16 %v1371, %v1366
    %v1727 = vpack.c.b16 %v1372, %v1367
    %v1728 = vpack.c.b16 %v1373, %v1368
    %v1729 = vpack.c.b16 %v1374, %v1369
    %v1730 = vpack.c.b16 %v1375, %v1370
    %v1731 = vpack.c.b16 %v1381, %v1376
    %v1732 = vpack.c.b16 %v1382, %v1377
    %v1733 = vpack.c.b16 %v1383, %v1378
    %v1734 = vpack.c.b16 %v1384, %v1379
    %v1735 = vpack.c.b16 %v1385, %v1380
    %v1736 = vpack.c.b16 %v1391, %v1386
    %v1737 = vpack.c.b16 %v1392, %v1387
    %v1738 = vpack.c.b16 %v1393, %v1388
    %v1739 = vpack.c.b16 %v1394, %v1389
    %v1740 = vpack.c.b16 %v1395, %v1390
    %v1741 = vpack.c.b16 %v1401, %v1396
    %v1742 = vpack.c.b16 %v1402, %v1397
    %v1743 = vpack.c.b16 %v1403, %v1398
    %v1744 = vpack.c.b16 %v1404, %v1399
    %v1745 = vpack.c.b16 %v1405, %v1400
    %v1746 = vpack.c.b16 %v1411, %v1406
    %v1747 = vpack.c.b16 %v1412, %v1407
    %v1748 = vpack.c.b16 %v1413, %v1408
    %v1749 = vpack.c.b16 %v1414, %v1409
    %v1750 = vpack.c.b16 %v1415, %v1410
    %v1751 = vpack.c.b16 %v1421, %v1416
    %v1752 = vpack.c.b16 %v1422, %v1417
    %v1753 = vpack.c.b16 %v1423, %v1418
    %v1754 = vpack.c.b16 %v1424, %v1419
    %v1755 = vpack.c.b16 %v1425, %v1420
    %v1756 = vpack.c.b16 %v1431, %v1426
    %v1757 = vpack.c.b16 %v1432, %v1427
    %v1758 = vpack.c.b16 %v1433, %v1428
    %v1759 = vpack.c.b16 %v1434, %v1429
    %v1760 = vpack.c.b16 %v1435, %v1430
    %v1761 = vpack.c.b16 %v1441, %v1436
    %v1762 = vpack.c.b16 %v1442, %v1437
    %v1763 = vpack.c.b16 %v1443, %v1438
    %v1764 = vpack.c.b16 %v1444, %v1439
    %v1765 = vpack.c.b16 %v1445, %v1440
    %v1766 = vpack.c.b16 %v1451, %v1446
    %v1767 = vpack.c.b16 %v1452, %v1447
    %v1768 = vpack.c.b16 %v1453, %v1448
    %v1769 = vpack.c.b16 %v1454, %v1449
    %v1770 = vpack.c.b16 %v1455, %v1450
    %v1771 = vpack.c.b16 %v1461, %v1456
    %v1772 = vpack.c.b16 %v1462, %v1457
    %v1773 = vpack.c.b16 %v1463, %v1458
    %v1774 = vpack.c.b16 %v1464, %v1459
    %v1775 = vpack.c.b16 %v1465, %v1460
    %v1776 = vpack.c.b16 %v1471, %v1466
    %v1777 = vpack.c.b16 %v1472, %v1467
    %v1778 = vpack.c.b16 %v1473, %v1468
    %v1779 = vpack.c.b16 %v1474, %v1469
    %v1780 = vpack.c.b16 %v1475, %v1470
    %v1781 = vpack.c.b16 %v1481, %v1476
    %v1782 = vpack.c.b16 %v1482, %v1477
    %v1783 = vpack.c.b16 %v1483, %v1478
    %v1784 = vpack.c.b16 %v1484, %v1479
    %v1785 = vpack.c.b16 %v1485, %v1480
    %v1786 = vpack.c.b16 %v1491, %v1486
    %v1787 = vpack.c.b16 %v1492, %v1487
    %v1788 = vpack.c.b16 %v1493, %v1488
    %v1789 = vpack.c.b16 %v1494, %v1489
    %v1790 = vpack.c.b16 %v1495, %v1490
    %v1791 = vpack.c.b16 %v1501, %v1496
    %v1792 = vpack.c.b16 %v1502, %v1497
    %v1793 = vpack.c.b16 %v1503, %v1498
    %v1794 = vpack.c.b16 %v1504, %v1499
    %v1795 = vpack.c.b16 %v1505, %v1500
    %v1796 = vpack.c.b16 %v1511, %v1506
    %v1797 = vpack.c.b16 %v1512, %v1507
    %v1798 = vpack.c.b16 %v1513, %v1508
    %v1799 = vpack.c.b16 %v1514, %v1509
    %v1800 = vpack.c.b16 %v1515, %v1510
    %v1801 = vpack.c.b16 %v1521, %v1516
    %v1802 = vpack.c.b16 %v1522, %v1517
    %v1803 = vpack.c.b16 %v1523, %v1518
    %v1804 = vpack.c.b16 %v1524, %v1519
    %v1805 = vpack.c.b16 %v1525, %v1520
    %v1806 = vpack.c.b16 %v1531, %v1526
    %v1807 = vpack.c.b16 %v1532, %v1527
    %v1808 = vpack.c.b16 %v1533, %v1528
    %v1809 = vpack.c.b16 %v1534, %v1529
    %v1810 = vpack.c.b16 %v1535, %v1530
    %v1811 = vpack.c.b16 %v1541, %v1536
    %v1812 = vpack.c.b16 %v1542, %v1537
    %v1813 = vpack.c.b16 %v1543, %v1538
    %v1814 = vpack.c.b16 %v1544, %v1539
    %v1815 = vpack.c.b16 %v1545, %v1540
    %v1816 = vpack.c.b16 %v1551, %v1546
    %v1817 = vpack.c.b16 %v1552, %v1547
    %v1818 = vpack.c.b16 %v1553, %v1548
    %v1819 = vpack.c.b16 %v1554, %v1549
    %v1820 = vpack.c.b16 %v1555, %v1550
    %v1821 = vpack.c.b16 %v1561, %v1556
    %v1822 = vpack.c.b16 %v1562, %v1557
    %v1823 = vpack.c.b16 %v1563, %v1558
    %v1824 = vpack.c.b16 %v1564, %v1559
    %v1825 = vpack.c.b16 %v1565, %v1560
    %v1826 = vpack.c.b16 %v1571, %v1566
    %v1827 = vpack.c.b16 %v1572, %v1567
    %v1828 = vpack.c.b16 %v1573, %v1568
    %v1829 = vpack.c.b16 %v1574, %v1569
    %v1830 = vpack.c.b16 %v1575, %v1570
    %v1831 = vpack.c.b16 %v1581, %v1576
    %v1832 = vpack.c.b16 %v1582, %v1577
    %v1833 = vpack.c.b16 %v1583, %v1578
    %v1834 = vpack.c.b16 %v1584, %v1579
    %v1835 = vpack.c.b16 %v1585, %v1580
    %v1836 = vpack.c.b16 %v1591, %v1586
    %v1837 = vpack.c.b16 %v1592, %v1587
    %v1838 = vpack.c.b16 %v1593, %v1588
    %v1839 = vpack.c.b16 %v1594, %v1589
    %v1840 = vpack.c.b16 %v1595, %v1590
    %v1841 = vpack.c.b16 %v1601, %v1596
    %v1842 = vpack.c.b16 %v1602, %v1597
    %v1843 = vpack.c.b16 %v1603, %v1598
    %v1844 = vpack.c.b16 %v1604, %v1599
    %v1845 = vpack.c.b16 %v1605, %v1600
    %v1846 = vpack.c.b16 %v1611, %v1606
    %v1847 = vpack.c.b16 %v1612, %v1607
    %v1848 = vpack.c.b16 %v1613, %v1608
    %v1849 = vpack.c.b16 %v1614, %v1609
    %v1850 = vpack.c.b16 %v1615, %v1610
    %v1851 = vpack.c.b16 %v1621, %v1616
    %v1852 = vpack.c.b16 %v1622, %v1617
    %v1853 = vpack.c.b16 %v1623, %v1618
    %v1854 = vpack.c.b16 %v1624, %v1619
    %v1855 = vpack.c.b16 %v1625, %v1620
    %v1856 = vpack.c.b16 %v1631, %v1626
    %v1857 = vpack.c.b16 %v1632, %v1627
    %v1858 = vpack.c.b16 %v1633, %v1628
    %v1859 = vpack.c.b16 %v1634, %v1629
    %v1860 = vpack.c.b16 %v1635, %v1630
    %v1861 = vpack.c.b16 %v1641, %v1636
    %v1862 = vpack.c.b16 %v1642, %v1637
    %v1863 = vpack.c.b16 %v1643, %v1638
    %v1864 = vpack.c.b16 %v1644, %v1639
    %v1865 = vpack.c.b16 %v1645, %v1640
    %v1866 = vpack.c.b16 %v1651, %v1646
    %v1867 = vpack.c.b16 %v1652, %v1647
    %v1868 = vpack.c.b16 %v1653, %v1648
    %v1869 = vpack.c.b16 %v1654, %v1649
    %v1870 = vpack.c.b16 %v1655, %v1650
    %v1871 = vpack.c.b16 %v1661, %v1656
    %v1872 = vpack.c.b16 %v1662, %v1657
    %v1873 = vpack.c.b16 %v1663, %v1658
    %v1874 = vpack.c.b16 %v1664, %v1659
    %v1875 = vpack.c.b16 %v1665, %v1660
    %v1876 = vpack.c.b16 %v1671, %v1666
    %v1877 = vpack.c.b16 %v1672, %v1667
    %v1878 = vpack.c.b16 %v1673, %v1668
    %v1879 = vpack.c.b16 %v1674, %v1669
    %v1880 = vpack.c.b16 %v1675, %v1670
    %v1881 = vpack.c.b16 %v1681, %v1676
    %v1882 = vpack.c.b16 %v1682, %v1677
    %v1883 = vpack.c.b16 %v1683, %v1678
    %v1884 = vpack.c.b16 %v1684, %v1679
    %v1885 = vpack.c.b16 %v1685, %v1680
    %2086 = vmatprep.subr.bf16.mxu0 %v1687
    %2087 = vmatpush1.bf16.msra.mxu0 %v1686
    %2088 = vmatprep.subr.bf16.mxu0 %v1692
    %2089 = vmatpush1.bf16.msra.mxu0 %v1691
    %2090 = vmatprep.subr.bf16.mxu0 %v1697
    %2091 = vmatpush1.bf16.msra.mxu0 %v1696
    %2092 = vmatprep.subr.bf16.mxu0 %v1702
    %2093 = vmatpush1.bf16.msra.mxu0 %v1701
    %2094 = vmatprep.subr.bf16.mxu0 %v1707
    %2095 = vmatpush1.bf16.msra.mxu0 %v1706
    %2096 = vmatprep.subr.bf16.mxu0 %v1712
    %2097 = vmatpush1.bf16.msra.mxu0 %v1711
    %2098 = vmatprep.subr.bf16.mxu0 %v1717
    %2099 = vmatpush1.bf16.msra.mxu0 %v1716
    %2100 = vmatprep.subr.bf16.mxu0 %v1722
    %2101 = vmatpush1.bf16.msra.mxu0 %v1721
    %2102 = vmatprep.subr.bf16.mxu0 %v1727
    %2103 = vmatpush1.bf16.msra.mxu0 %v1726
    %2104 = vmatprep.subr.bf16.mxu0 %v1732
    %2105 = vmatpush1.bf16.msra.mxu0 %v1731
    %2106 = vmatprep.subr.bf16.mxu0 %v1737
    %2107 = vmatpush1.bf16.msra.mxu0 %v1736
    %2108 = vmatprep.subr.bf16.mxu0 %v1742
    %2109 = vmatpush1.bf16.msra.mxu0 %v1741
    %2110 = vmatprep.subr.bf16.mxu0 %v1747
    %2111 = vmatpush1.bf16.msra.mxu0 %v1746
    %2112 = vmatprep.subr.bf16.mxu0 %v1752
    %2113 = vmatpush1.bf16.msra.mxu0 %v1751
    %2114 = vmatprep.subr.bf16.mxu0 %v1757
    %2115 = vmatpush1.bf16.msra.mxu0 %v1756
    %2116 = vmatprep.subr.bf16.mxu0 %v1762
    %2117 = vmatpush1.bf16.msra.mxu0 %v1761
    %2118 = vmatprep.mubr.bf16.mxu0 %v775
    %2119 = vmatmul.mubr.bf16.gmra.mrb[0].mxu0 %v774
    %v2120 = vpop.f32.mrb[0].mxu0
    %v2121 = vadd.f32 %v1024, %v2120
    %v2122 = vpop.f32.mrb[0].mxu0
    %v2123 = vadd.f32 %v1028, %v2122
    %v2124 = vpop.f32.mrb[0].mxu0
    %v2125 = vpop.f32.mrb[0].mxu0
    %2126 = vdwg.mxu0
    %2127 = vmatprep.subr.bf16.mxu0 %v1767
    %2128 = vmatpush1.bf16.msra.mxu0 %v1766
    %2129 = vmatprep.subr.bf16.mxu0 %v1772
    %2130 = vmatpush1.bf16.msra.mxu0 %v1771
    %2131 = vmatprep.subr.bf16.mxu0 %v1777
    %2132 = vmatpush1.bf16.msra.mxu0 %v1776
    %2133 = vmatprep.subr.bf16.mxu0 %v1782
    %2134 = vmatpush1.bf16.msra.mxu0 %v1781
    %2135 = vmatprep.subr.bf16.mxu0 %v1787
    %2136 = vmatpush1.bf16.msra.mxu0 %v1786
    %2137 = vmatprep.subr.bf16.mxu0 %v1792
    %2138 = vmatpush1.bf16.msra.mxu0 %v1791
    %2139 = vmatprep.subr.bf16.mxu0 %v1797
    %2140 = vmatpush1.bf16.msra.mxu0 %v1796
    %2141 = vmatprep.subr.bf16.mxu0 %v1802
    %2142 = vmatpush1.bf16.msra.mxu0 %v1801
    %2143 = vmatprep.subr.bf16.mxu0 %v1807
    %2144 = vmatpush1.bf16.msra.mxu0 %v1806
    %2145 = vmatprep.subr.bf16.mxu0 %v1812
    %2146 = vmatpush1.bf16.msra.mxu0 %v1811
    %2147 = vmatprep.subr.bf16.mxu0 %v1817
    %2148 = vmatpush1.bf16.msra.mxu0 %v1816
    %2149 = vmatprep.subr.bf16.mxu0 %v1822
    %2150 = vmatpush1.bf16.msra.mxu0 %v1821
    %2151 = vmatprep.subr.bf16.mxu0 %v1827
    %2152 = vmatpush1.bf16.msra.mxu0 %v1826
    %2153 = vmatprep.subr.bf16.mxu0 %v1832
    %2154 = vmatpush1.bf16.msra.mxu0 %v1831
    %2155 = vmatprep.subr.bf16.mxu0 %v1837
    %2156 = vmatpush1.bf16.msra.mxu0 %v1836
    %2157 = vmatprep.subr.bf16.mxu0 %v1842
    %2158 = vmatpush1.bf16.msra.mxu0 %v1841
    %2159 = vmatprep.mubr.bf16.mxu0 %v777
    %2160 = vmatmul.mubr.bf16.gmra.mrb[0].mxu0 %v776
    %v2161 = vpop.f32.mrb[0].mxu0
    %v2162 = vadd.f32 %v2121, %v2161
    %v2163 = vpop.f32.mrb[0].mxu0
    %v2164 = vadd.f32 %v2123, %v2163
    %v2165 = vpop.f32.mrb[0].mxu0
    %v2166 = vpop.f32.mrb[0].mxu0
    %2167 = vdwg.mxu0
    %2168 = vmatprep.subr.bf16.mxu0 %v1847
    %2169 = vmatpush1.bf16.msra.mxu0 %v1846
    %2170 = vmatprep.subr.bf16.mxu0 %v1852
    %2171 = vmatpush1.bf16.msra.mxu0 %v1851
    %2172 = vmatprep.subr.bf16.mxu0 %v1857
    %2173 = vmatpush1.bf16.msra.mxu0 %v1856
    %2174 = vmatprep.subr.bf16.mxu0 %v1862
    %2175 = vmatpush1.bf16.msra.mxu0 %v1861
    %2176 = vmatprep.subr.bf16.mxu0 %v1867
    %2177 = vmatpush1.bf16.msra.mxu0 %v1866
    %2178 = vmatprep.subr.bf16.mxu0 %v1872
    %2179 = vmatpush1.bf16.msra.mxu0 %v1871
    %2180 = vmatprep.subr.bf16.mxu0 %v1877
    %2181 = vmatpush1.bf16.msra.mxu0 %v1876
    %2182 = vmatprep.subr.bf16.mxu0 %v1882
    %2183 = vmatpush1.bf16.msra.mxu0 %v1881
    %2184 = vmatprep.subr.bf16.mxu0 0
    %2185 = vmatpush1.bf16.msra.mxu0 0
    %2186 = vmatprep.subr.bf16.mxu0 0
    %2187 = vmatpush1.bf16.msra.mxu0 0
    %2188 = vmatprep.subr.bf16.mxu0 0
    %2189 = vmatpush1.bf16.msra.mxu0 0
    %2190 = vmatprep.subr.bf16.mxu0 0
    %2191 = vmatpush1.bf16.msra.mxu0 0
    %2192 = vmatprep.subr.bf16.mxu0 0
    %2193 = vmatpush1.bf16.msra.mxu0 0
    %2194 = vmatprep.subr.bf16.mxu0 0
    %2195 = vmatpush1.bf16.msra.mxu0 0
    %2196 = vmatprep.subr.bf16.mxu0 0
    %2197 = vmatpush1.bf16.msra.mxu0 0
    %2198 = vmatprep.subr.bf16.mxu0 0
    %2199 = vmatpush1.bf16.msra.mxu0 0
    %2200 = vmatprep.mubr.bf16.mxu0 0
    %2201 = vmatmul.mubr.bf16.gmra.mrb[0].mxu0 %v778
    %v2202 = vpop.f32.mrb[0].mxu0
    %v2203 = vadd.f32 %v2162, %v2202
    %v2204 = vpop.f32.mrb[0].mxu0
    %v2205 = vadd.f32 %v2164, %v2204
    %v2206 = vpop.f32.mrb[0].mxu0
    %v2207 = vpop.f32.mrb[0].mxu0
    %2208 = vdwg.mxu0
    %2209 = vmatprep.subr.bf16.mxu0 %v1689
    %2210 = vmatpush1.bf16.msra.mxu0 %v1688
    %2211 = vmatprep.subr.bf16.mxu0 %v1694
    %2212 = vmatpush1.bf16.msra.mxu0 %v1693
    %2213 = vmatprep.subr.bf16.mxu0 %v1699
    %2214 = vmatpush1.bf16.msra.mxu0 %v1698
    %2215 = vmatprep.subr.bf16.mxu0 %v1704
    %2216 = vmatpush1.bf16.msra.mxu0 %v1703
    %2217 = vmatprep.subr.bf16.mxu0 %v1709
    %2218 = vmatpush1.bf16.msra.mxu0 %v1708
    %2219 = vmatprep.subr.bf16.mxu0 %v1714
    %2220 = vmatpush1.bf16.msra.mxu0 %v1713
    %2221 = vmatprep.subr.bf16.mxu0 %v1719
    %2222 = vmatpush1.bf16.msra.mxu0 %v1718
    %2223 = vmatprep.subr.bf16.mxu0 %v1724
    %2224 = vmatpush1.bf16.msra.mxu0 %v1723
    %2225 = vmatprep.subr.bf16.mxu0 %v1729
    %2226 = vmatpush1.bf16.msra.mxu0 %v1728
    %2227 = vmatprep.subr.bf16.mxu0 %v1734
    %2228 = vmatpush1.bf16.msra.mxu0 %v1733
    %2229 = vmatprep.subr.bf16.mxu0 %v1739
    %2230 = vmatpush1.bf16.msra.mxu0 %v1738
    %2231 = vmatprep.subr.bf16.mxu0 %v1744
    %2232 = vmatpush1.bf16.msra.mxu0 %v1743
    %2233 = vmatprep.subr.bf16.mxu0 %v1749
    %2234 = vmatpush1.bf16.msra.mxu0 %v1748
    %2235 = vmatprep.subr.bf16.mxu0 %v1754
    %2236 = vmatpush1.bf16.msra.mxu0 %v1753
    %2237 = vmatprep.subr.bf16.mxu0 %v1759
    %2238 = vmatpush1.bf16.msra.mxu0 %v1758
    %2239 = vmatprep.subr.bf16.mxu0 %v1764
    %2240 = vmatpush1.bf16.msra.mxu0 %v1763
    %2241 = vmatprep.mubr.bf16.mxu0 %v775
    %2242 = vmatmul.mubr.bf16.gmra.mrb[0].mxu0 %v774
    %v2243 = vpop.f32.mrb[0].mxu0
    %v2244 = vadd.f32 %v1032, %v2243
    %v2245 = vpop.f32.mrb[0].mxu0
    %v2246 = vadd.f32 %v1036, %v2245
    %v2247 = vpop.f32.mrb[0].mxu0
    %v2248 = vpop.f32.mrb[0].mxu0
    %2249 = vdwg.mxu0
    %2250 = vmatprep.subr.bf16.mxu0 %v1769
    %2251 = vmatpush1.bf16.msra.mxu0 %v1768
    %2252 = vmatprep.subr.bf16.mxu0 %v1774
    %2253 = vmatpush1.bf16.msra.mxu0 %v1773
    %2254 = vmatprep.subr.bf16.mxu0 %v1779
    %2255 = vmatpush1.bf16.msra.mxu0 %v1778
    %2256 = vmatprep.subr.bf16.mxu0 %v1784
    %2257 = vmatpush1.bf16.msra.mxu0 %v1783
    %2258 = vmatprep.subr.bf16.mxu0 %v1789
    %2259 = vmatpush1.bf16.msra.mxu0 %v1788
    %2260 = vmatprep.subr.bf16.mxu0 %v1794
    %2261 = vmatpush1.bf16.msra.mxu0 %v1793
    %2262 = vmatprep.subr.bf16.mxu0 %v1799
    %2263 = vmatpush1.bf16.msra.mxu0 %v1798
    %2264 = vmatprep.subr.bf16.mxu0 %v1804
    %2265 = vmatpush1.bf16.msra.mxu0 %v1803
    %2266 = vmatprep.subr.bf16.mxu0 %v1809
    %2267 = vmatpush1.bf16.msra.mxu0 %v1808
    %2268 = vmatprep.subr.bf16.mxu0 %v1814
    %2269 = vmatpush1.bf16.msra.mxu0 %v1813
    %2270 = vmatprep.subr.bf16.mxu0 %v1819
    %2271 = vmatpush1.bf16.msra.mxu0 %v1818
    %2272 = vmatprep.subr.bf16.mxu0 %v1824
    %2273 = vmatpush1.bf16.msra.mxu0 %v1823
    %2274 = vmatprep.subr.bf16.mxu0 %v1829
    %2275 = vmatpush1.bf16.msra.mxu0 %v1828
    %2276 = vmatprep.subr.bf16.mxu0 %v1834
    %2277 = vmatpush1.bf16.msra.mxu0 %v1833
    %2278 = vmatprep.subr.bf16.mxu0 %v1839
    %2279 = vmatpush1.bf16.msra.mxu0 %v1838
    %2280 = vmatprep.subr.bf16.mxu0 %v1844
    %2281 = vmatpush1.bf16.msra.mxu0 %v1843
    %2282 = vmatprep.mubr.bf16.mxu0 %v777
    %2283 = vmatmul.mubr.bf16.gmra.mrb[0].mxu0 %v776
    %v2284 = vpop.f32.mrb[0].mxu0
    %v2285 = vadd.f32 %v2244, %v2284
    %v2286 = vpop.f32.mrb[0].mxu0
    %v2287 = vadd.f32 %v2246, %v2286
    %v2288 = vpop.f32.mrb[0].mxu0
    %v2289 = vpop.f32.mrb[0].mxu0
    %2290 = vdwg.mxu0
    %2291 = vmatprep.subr.bf16.mxu0 %v1849
    %2292 = vmatpush1.bf16.msra.mxu0 %v1848
    %2293 = vmatprep.subr.bf16.mxu0 %v1854
    %2294 = vmatpush1.bf16.msra.mxu0 %v1853
    %2295 = vmatprep.subr.bf16.mxu0 %v1859
    %2296 = vmatpush1.bf16.msra.mxu0 %v1858
    %2297 = vmatprep.subr.bf16.mxu0 %v1864
    %2298 = vmatpush1.bf16.msra.mxu0 %v1863
    %2299 = vmatprep.subr.bf16.mxu0 %v1869
    %2300 = vmatpush1.bf16.msra.mxu0 %v1868
    %2301 = vmatprep.subr.bf16.mxu0 %v1874
    %2302 = vmatpush1.bf16.msra.mxu0 %v1873
    %2303 = vmatprep.subr.bf16.mxu0 %v1879
    %2304 = vmatpush1.bf16.msra.mxu0 %v1878
    %2305 = vmatprep.subr.bf16.mxu0 %v1884
    %2306 = vmatpush1.bf16.msra.mxu0 %v1883
    %2307 = vmatprep.subr.bf16.mxu0 0
    %2308 = vmatpush1.bf16.msra.mxu0 0
    %2309 = vmatprep.subr.bf16.mxu0 0
    %2310 = vmatpush1.bf16.msra.mxu0 0
    %2311 = vmatprep.subr.bf16.mxu0 0
    %2312 = vmatpush1.bf16.msra.mxu0 0
    %2313 = vmatprep.subr.bf16.mxu0 0
    %2314 = vmatpush1.bf16.msra.mxu0 0
    %2315 = vmatprep.subr.bf16.mxu0 0
    %2316 = vmatpush1.bf16.msra.mxu0 0
    %2317 = vmatprep.subr.bf16.mxu0 0
    %2318 = vmatpush1.bf16.msra.mxu0 0
    %2319 = vmatprep.subr.bf16.mxu0 0
    %2320 = vmatpush1.bf16.msra.mxu0 0
    %2321 = vmatprep.subr.bf16.mxu0 0
    %2322 = vmatpush1.bf16.msra.mxu0 0
    %2323 = vmatprep.mubr.bf16.mxu0 0
    %2324 = vmatmul.mubr.bf16.gmra.mrb[0].mxu0 %v778
    %v2325 = vpop.f32.mrb[0].mxu0
    %v2326 = vadd.f32 %v2285, %v2325
    %v2327 = vpop.f32.mrb[0].mxu0
    %v2328 = vadd.f32 %v2287, %v2327
    %v2329 = vpop.f32.mrb[0].mxu0
    %v2330 = vpop.f32.mrb[0].mxu0
    %2331 = vdwg.mxu0
    %2332 = vmatprep.subr.bf16.mxu0 0
    %2333 = vmatpush1.bf16.msra.mxu0 %v1690
    %2334 = vmatprep.subr.bf16.mxu0 0
    %2335 = vmatpush1.bf16.msra.mxu0 %v1695
    %2336 = vmatprep.subr.bf16.mxu0 0
    %2337 = vmatpush1.bf16.msra.mxu0 %v1700
    %2338 = vmatprep.subr.bf16.mxu0 0
    %2339 = vmatpush1.bf16.msra.mxu0 %v1705
    %2340 = vmatprep.subr.bf16.mxu0 0
    %2341 = vmatpush1.bf16.msra.mxu0 %v1710
    %2342 = vmatprep.subr.bf16.mxu0 0
    %2343 = vmatpush1.bf16.msra.mxu0 %v1715
    %2344 = vmatprep.subr.bf16.mxu0 0
    %2345 = vmatpush1.bf16.msra.mxu0 %v1720
    %2346 = vmatprep.subr.bf16.mxu0 0
    %2347 = vmatpush1.bf16.msra.mxu0 %v1725
    %2348 = vmatprep.subr.bf16.mxu0 0
    %2349 = vmatpush1.bf16.msra.mxu0 %v1730
    %2350 = vmatprep.subr.bf16.mxu0 0
    %2351 = vmatpush1.bf16.msra.mxu0 %v1735
    %2352 = vmatprep.subr.bf16.mxu0 0
    %2353 = vmatpush1.bf16.msra.mxu0 %v1740
    %2354 = vmatprep.subr.bf16.mxu0 0
    %2355 = vmatpush1.bf16.msra.mxu0 %v1745
    %2356 = vmatprep.subr.bf16.mxu0 0
    %2357 = vmatpush1.bf16.msra.mxu0 %v1750
    %2358 = vmatprep.subr.bf16.mxu0 0
    %2359 = vmatpush1.bf16.msra.mxu0 %v1755
    %2360 = vmatprep.subr.bf16.mxu0 0
    %2361 = vmatpush1.bf16.msra.mxu0 %v1760
    %2362 = vmatprep.subr.bf16.mxu0 0
    %2363 = vmatpush1.bf16.msra.mxu0 %v1765
    %2364 = vmatprep.mubr.bf16.mxu0 %v775
    %2365 = vmatmul.mubr.bf16.gmra.mrb[0].mxu0 %v774
    %v2366 = vpop.f32.mrb[0].mxu0
    %v2367 = vadd.f32 %v1040, %v2366
    %v2368 = vpop.f32.mrb[0].mxu0
    %v2369 = vpop.f32.mrb[0].mxu0
    %v2370 = vpop.f32.mrb[0].mxu0
    %2371 = vdwg.mxu0
    %2372 = vmatprep.subr.bf16.mxu0 0
    %2373 = vmatpush1.bf16.msra.mxu0 %v1770
    %2374 = vmatprep.subr.bf16.mxu0 0
    %2375 = vmatpush1.bf16.msra.mxu0 %v1775
    %2376 = vmatprep.subr.bf16.mxu0 0
    %2377 = vmatpush1.bf16.msra.mxu0 %v1780
    %2378 = vmatprep.subr.bf16.mxu0 0
    %2379 = vmatpush1.bf16.msra.mxu0 %v1785
    %2380 = vmatprep.subr.bf16.mxu0 0
    %2381 = vmatpush1.bf16.msra.mxu0 %v1790
    %2382 = vmatprep.subr.bf16.mxu0 0
    %2383 = vmatpush1.bf16.msra.mxu0 %v1795
    %2384 = vmatprep.subr.bf16.mxu0 0
    %2385 = vmatpush1.bf16.msra.mxu0 %v1800
    %2386 = vmatprep.subr.bf16.mxu0 0
    %2387 = vmatpush1.bf16.msra.mxu0 %v1805
    %2388 = vmatprep.subr.bf16.mxu0 0
    %2389 = vmatpush1.bf16.msra.mxu0 %v1810
    %2390 = vmatprep.subr.bf16.mxu0 0
    %2391 = vmatpush1.bf16.msra.mxu0 %v1815
    %2392 = vmatprep.subr.bf16.mxu0 0
    %2393 = vmatpush1.bf16.msra.mxu0 %v1820
    %2394 = vmatprep.subr.bf16.mxu0 0
    %2395 = vmatpush1.bf16.msra.mxu0 %v1825
    %2396 = vmatprep.subr.bf16.mxu0 0
    %2397 = vmatpush1.bf16.msra.mxu0 %v1830
    %2398 = vmatprep.subr.bf16.mxu0 0
    %2399 = vmatpush1.bf16.msra.mxu0 %v1835
    %2400 = vmatprep.subr.bf16.mxu0 0
    %2401 = vmatpush1.bf16.msra.mxu0 %v1840
    %2402 = vmatprep.subr.bf16.mxu0 0
    %2403 = vmatpush1.bf16.msra.mxu0 %v1845
    %2404 = vmatprep.mubr.bf16.mxu0 %v777
    %2405 = vmatmul.mubr.bf16.gmra.mrb[0].mxu0 %v776
    %v2406 = vpop.f32.mrb[0].mxu0
    %v2407 = vadd.f32 %v2367, %v2406
    %v2408 = vpop.f32.mrb[0].mxu0
    %v2409 = vpop.f32.mrb[0].mxu0
    %v2410 = vpop.f32.mrb[0].mxu0
    %2411 = vdwg.mxu0
    %2412 = vmatprep.subr.bf16.mxu0 0
    %2413 = vmatpush1.bf16.msra.mxu0 %v1850
    %2414 = vmatprep.subr.bf16.mxu0 0
    %2415 = vmatpush1.bf16.msra.mxu0 %v1855
    %2416 = vmatprep.subr.bf16.mxu0 0
    %2417 = vmatpush1.bf16.msra.mxu0 %v1860
    %2418 = vmatprep.subr.bf16.mxu0 0
    %2419 = vmatpush1.bf16.msra.mxu0 %v1865
    %2420 = vmatprep.subr.bf16.mxu0 0
    %2421 = vmatpush1.bf16.msra.mxu0 %v1870
    %2422 = vmatprep.subr.bf16.mxu0 0
    %2423 = vmatpush1.bf16.msra.mxu0 %v1875
    %2424 = vmatprep.subr.bf16.mxu0 0
    %2425 = vmatpush1.bf16.msra.mxu0 %v1880
    %2426 = vmatprep.subr.bf16.mxu0 0
    %2427 = vmatpush1.bf16.msra.mxu0 %v1885
    %2428 = vmatprep.subr.bf16.mxu0 0
    %2429 = vmatpush1.bf16.msra.mxu0 0
    %2430 = vmatprep.subr.bf16.mxu0 0
    %2431 = vmatpush1.bf16.msra.mxu0 0
    %2432 = vmatprep.subr.bf16.mxu0 0
    %2433 = vmatpush1.bf16.msra.mxu0 0
    %2434 = vmatprep.subr.bf16.mxu0 0
    %2435 = vmatpush1.bf16.msra.mxu0 0
    %2436 = vmatprep.subr.bf16.mxu0 0
    %2437 = vmatpush1.bf16.msra.mxu0 0
    %2438 = vmatprep.subr.bf16.mxu0 0
    %2439 = vmatpush1.bf16.msra.mxu0 0
    %2440 = vmatprep.subr.bf16.mxu0 0
    %2441 = vmatpush1.bf16.msra.mxu0 0
    %2442 = vmatprep.subr.bf16.mxu0 0
    %2443 = vmatpush1.bf16.msra.mxu0 0
    %2444 = vmatprep.mubr.bf16.mxu0 0
    %2445 = vmatmul.mubr.bf16.gmra.mrb[0].mxu0 %v778
    %v2446 = vpop.f32.mrb[0].mxu0
    %v2447 = vadd.f32 %v2407, %v2446
    %v2448 = vpop.f32.mrb[0].mxu0
    %v2449 = vpop.f32.mrb[0].mxu0
    %v2450 = vpop.f32.mrb[0].mxu0
    %2451 = vdwg.mxu0
    %v2452 = vmax.f32 %v2203, 0.0
    %v2453 = vmax.f32 %v2205, 0.0
    %v2454 = vmax.f32 %v2326, 0.0
    %v2455 = vmax.f32 %v2328, 0.0
    %v2456 = vmax.f32 %v2447, 0.0
    %v2457 = vpack.c.bf16 %v2452, %v2452
    %v2458 = vpack.c.bf16 %v2453, %v2453
    %v2459 = vpack.c.bf16 %v2454, %v2454
    %v2460 = vpack.c.bf16 %v2455, %v2455
    %v2461 = vpack.c.bf16 %v2456, %v2456
    %v2462 = vld [vmem:[#allocation8] sm:$0xff]
    %v2463 = vld [vmem:[#allocation8 + $0x8] sm:$0xff]
    %v2464 = vld [vmem:[#allocation8 + $0x10] sm:$0xf]
    %v2465 = vld [vmem:[#allocation8 + $0x14] sm:$0xff]
    %v2466 = vld [vmem:[#allocation8 + $0x1c] sm:$0xff]
    %v2467 = vld [vmem:[#allocation8 + $0x24] sm:$0xf]
    %v2468 = vld [vmem:[#allocation8 + $0x28] sm:$0xff]
    %v2469 = vld [vmem:[#allocation8 + $0x30] sm:$0xff]
    %v2470 = vld [vmem:[#allocation8 + $0x38] sm:$0xf]
    %v2471 = vld [vmem:[#allocation8 + $0x3c] sm:$0xff]
    %v2472 = vld [vmem:[#allocation8 + $0x44] sm:$0xff]
    %v2473 = vld [vmem:[#allocation8 + $0x4c] sm:$0xf]
    %v2474 = vld [vmem:[#allocation8 + $0x50] sm:$0xff]
    %v2475 = vld [vmem:[#allocation8 + $0x58] sm:$0xff]
    %v2476 = vld [vmem:[#allocation8 + $0x60] sm:$0xf]
    %v2477 = vld [vmem:[#allocation8 + $0x64] sm:$0xff]
    %v2478 = vld [vmem:[#allocation8 + $0x6c] sm:$0xff]
    %v2479 = vld [vmem:[#allocation8 + $0x74] sm:$0xf]
    %v2480 = vld [vmem:[#allocation8 + $0x78] sm:$0xff]
    %v2481 = vld [vmem:[#allocation8 + $0x80] sm:$0xff]
    %v2482 = vld [vmem:[#allocation8 + $0x88] sm:$0xf]
    %v2483 = vld [vmem:[#allocation8 + $0x8c] sm:$0xff]
    %v2484 = vld [vmem:[#allocation8 + $0x94] sm:$0xff]
    %v2485 = vld [vmem:[#allocation8 + $0x9c] sm:$0xf]
    %v2486 = vld [vmem:[#allocation8 + $0xa0] sm:$0xff]
    %v2487 = vld [vmem:[#allocation8 + $0xa8] sm:$0xff]
    %v2488 = vld [vmem:[#allocation8 + $0xb0] sm:$0xf]
    %v2489 = vld [vmem:[#allocation8 + $0xb4] sm:$0xff]
    %v2490 = vld [vmem:[#allocation8 + $0xbc] sm:$0xff]
    %v2491 = vld [vmem:[#allocation8 + $0xc4] sm:$0xf]
    %v2492 = vld [vmem:[#allocation8 + $0xc8] sm:$0xff]
    %v2493 = vld [vmem:[#allocation8 + $0xd0] sm:$0xff]
    %v2494 = vld [vmem:[#allocation8 + $0xd8] sm:$0xf]
    %v2495 = vld [vmem:[#allocation8 + $0xdc] sm:$0xff]
    %v2496 = vld [vmem:[#allocation8 + $0xe4] sm:$0xff]
    %v2497 = vld [vmem:[#allocation8 + $0xec] sm:$0xf]
    %v2498 = vld [vmem:[#allocation8 + $0xf0] sm:$0xff]
    %v2499 = vld [vmem:[#allocation8 + $0xf8] sm:$0xff]
    %v2500 = vld [vmem:[#allocation8 + $0x100] sm:$0xf]
    %v2501 = vld [vmem:[#allocation8 + $0x104] sm:$0xff]
    %v2502 = vld [vmem:[#allocation8 + $0x10c] sm:$0xff]
    %v2503 = vld [vmem:[#allocation8 + $0x114] sm:$0xf]
    %v2504 = vld [vmem:[#allocation8 + $0x118] sm:$0xff]
    %v2505 = vld [vmem:[#allocation8 + $0x120] sm:$0xff]
    %v2506 = vld [vmem:[#allocation8 + $0x128] sm:$0xf]
    %v2507 = vld [vmem:[#allocation8 + $0x12c] sm:$0xff]
    %v2508 = vld [vmem:[#allocation8 + $0x134] sm:$0xff]
    %v2509 = vld [vmem:[#allocation8 + $0x13c] sm:$0xf]
    %v2510 = vld [vmem:[#allocation8 + $0x140] sm:$0xff]
    %v2511 = vld [vmem:[#allocation8 + $0x148] sm:$0xff]
    %v2512 = vld [vmem:[#allocation8 + $0x150] sm:$0xf]
    %v2513 = vld [vmem:[#allocation8 + $0x154] sm:$0xff]
    %v2514 = vld [vmem:[#allocation8 + $0x15c] sm:$0xff]
    %v2515 = vld [vmem:[#allocation8 + $0x164] sm:$0xf]
    %v2516 = vld [vmem:[#allocation8 + $0x168] sm:$0xff]
    %v2517 = vld [vmem:[#allocation8 + $0x170] sm:$0xff]
    %v2518 = vld [vmem:[#allocation8 + $0x178] sm:$0xf]
    %v2519 = vld [vmem:[#allocation8 + $0x17c] sm:$0xff]
    %v2520 = vld [vmem:[#allocation8 + $0x184] sm:$0xff]
    %v2521 = vld [vmem:[#allocation8 + $0x18c] sm:$0xf]
    %v2522 = vld [vmem:[#allocation8 + $0x190] sm:$0xff]
    %v2523 = vld [vmem:[#allocation8 + $0x198] sm:$0xff]
    %v2524 = vld [vmem:[#allocation8 + $0x1a0] sm:$0xf]
    %v2525 = vld [vmem:[#allocation8 + $0x1a4] sm:$0xff]
    %v2526 = vld [vmem:[#allocation8 + $0x1ac] sm:$0xff]
    %v2527 = vld [vmem:[#allocation8 + $0x1b4] sm:$0xf]
    %v2528 = vld [vmem:[#allocation8 + $0x1b8] sm:$0xff]
    %v2529 = vld [vmem:[#allocation8 + $0x1c0] sm:$0xff]
    %v2530 = vld [vmem:[#allocation8 + $0x1c8] sm:$0xf]
    %v2531 = vld [vmem:[#allocation8 + $0x1cc] sm:$0xff]
    %v2532 = vld [vmem:[#allocation8 + $0x1d4] sm:$0xff]
    %v2533 = vld [vmem:[#allocation8 + $0x1dc] sm:$0xf]
    %v2534 = vld [vmem:[#allocation8 + $0x1e0] sm:$0xff]
    %v2535 = vld [vmem:[#allocation8 + $0x1e8] sm:$0xff]
    %v2536 = vld [vmem:[#allocation8 + $0x1f0] sm:$0xf]
    %v2537 = vld [vmem:[#allocation8 + $0x1f4] sm:$0xff]
    %v2538 = vld [vmem:[#allocation8 + $0x1fc] sm:$0xff]
    %v2539 = vld [vmem:[#allocation8 + $0x204] sm:$0xf]
    %v2540 = vld [vmem:[#allocation8 + $0x208] sm:$0xff]
    %v2541 = vld [vmem:[#allocation8 + $0x210] sm:$0xff]
    %v2542 = vld [vmem:[#allocation8 + $0x218] sm:$0xf]
    %v2543 = vld [vmem:[#allocation8 + $0x21c] sm:$0xff]
    %v2544 = vld [vmem:[#allocation8 + $0x224] sm:$0xff]
    %v2545 = vld [vmem:[#allocation8 + $0x22c] sm:$0xf]
    %v2546 = vld [vmem:[#allocation8 + $0x230] sm:$0xff]
    %v2547 = vld [vmem:[#allocation8 + $0x238] sm:$0xff]
    %v2548 = vld [vmem:[#allocation8 + $0x240] sm:$0xf]
    %v2549 = vld [vmem:[#allocation8 + $0x244] sm:$0xff]
    %v2550 = vld [vmem:[#allocation8 + $0x24c] sm:$0xff]
    %v2551 = vld [vmem:[#allocation8 + $0x254] sm:$0xf]
    %v2552 = vld [vmem:[#allocation8 + $0x258] sm:$0xff]
    %v2553 = vld [vmem:[#allocation8 + $0x260] sm:$0xff]
    %v2554 = vld [vmem:[#allocation8 + $0x268] sm:$0xf]
    %v2555 = vld [vmem:[#allocation8 + $0x26c] sm:$0xff]
    %v2556 = vld [vmem:[#allocation8 + $0x274] sm:$0xff]
    %v2557 = vld [vmem:[#allocation8 + $0x27c] sm:$0xf]
    %v2558 = vld [vmem:[#allocation8 + $0x280] sm:$0xff]
    %v2559 = vld [vmem:[#allocation8 + $0x288] sm:$0xff]
    %v2560 = vld [vmem:[#allocation8 + $0x290] sm:$0xf]
    %v2561 = vld [vmem:[#allocation8 + $0x294] sm:$0xff]
    %v2562 = vld [vmem:[#allocation8 + $0x29c] sm:$0xff]
    %v2563 = vld [vmem:[#allocation8 + $0x2a4] sm:$0xf]
    %v2564 = vld [vmem:[#allocation8 + $0x2a8] sm:$0xff]
    %v2565 = vld [vmem:[#allocation8 + $0x2b0] sm:$0xff]
    %v2566 = vld [vmem:[#allocation8 + $0x2b8] sm:$0xf]
    %v2567 = vld [vmem:[#allocation8 + $0x2bc] sm:$0xff]
    %v2568 = vld [vmem:[#allocation8 + $0x2c4] sm:$0xff]
    %v2569 = vld [vmem:[#allocation8 + $0x2cc] sm:$0xf]
    %v2570 = vld [vmem:[#allocation8 + $0x2d0] sm:$0xff]
    %v2571 = vld [vmem:[#allocation8 + $0x2d8] sm:$0xff]
    %v2572 = vld [vmem:[#allocation8 + $0x2e0] sm:$0xf]
    %v2573 = vld [vmem:[#allocation8 + $0x2e4] sm:$0xff]
    %v2574 = vld [vmem:[#allocation8 + $0x2ec] sm:$0xff]
    %v2575 = vld [vmem:[#allocation8 + $0x2f4] sm:$0xf]
    %v2576 = vld [vmem:[#allocation8 + $0x2f8] sm:$0xff]
    %v2577 = vld [vmem:[#allocation8 + $0x300] sm:$0xff]
    %v2578 = vld [vmem:[#allocation8 + $0x308] sm:$0xf]
    %v2579 = vld [vmem:[#allocation8 + $0x30c] sm:$0xff]
    %v2580 = vld [vmem:[#allocation8 + $0x314] sm:$0xff]
    %v2581 = vld [vmem:[#allocation8 + $0x31c] sm:$0xf]
    %v2582 = vld [vmem:[#allocation8 + $0x320] sm:$0xff]
    %v2583 = vld [vmem:[#allocation8 + $0x328] sm:$0xff]
    %v2584 = vld [vmem:[#allocation8 + $0x330] sm:$0xf]
    %v2585 = vld [vmem:[#allocation8 + $0x334] sm:$0xff]
    %v2586 = vld [vmem:[#allocation8 + $0x33c] sm:$0xff]
    %v2587 = vld [vmem:[#allocation8 + $0x344] sm:$0xf]
    %v2588 = vld [vmem:[#allocation8 + $0x348] sm:$0xff]
    %v2589 = vld [vmem:[#allocation8 + $0x350] sm:$0xff]
    %v2590 = vld [vmem:[#allocation8 + $0x358] sm:$0xf]
    %v2591 = vld [vmem:[#allocation8 + $0x35c] sm:$0xff]
    %v2592 = vld [vmem:[#allocation8 + $0x364] sm:$0xff]
    %v2593 = vld [vmem:[#allocation8 + $0x36c] sm:$0xf]
    %v2594 = vld [vmem:[#allocation8 + $0x370] sm:$0xff]
    %v2595 = vld [vmem:[#allocation8 + $0x378] sm:$0xff]
    %v2596 = vld [vmem:[#allocation8 + $0x380] sm:$0xf]
    %v2597 = vld [vmem:[#allocation8 + $0x384] sm:$0xff]
    %v2598 = vld [vmem:[#allocation8 + $0x38c] sm:$0xff]
    %v2599 = vld [vmem:[#allocation8 + $0x394] sm:$0xf]
    %v2600 = vld [vmem:[#allocation8 + $0x398] sm:$0xff]
    %v2601 = vld [vmem:[#allocation8 + $0x3a0] sm:$0xff]
    %v2602 = vld [vmem:[#allocation8 + $0x3a8] sm:$0xf]
    %v2603 = vld [vmem:[#allocation8 + $0x3ac] sm:$0xff]
    %v2604 = vld [vmem:[#allocation8 + $0x3b4] sm:$0xff]
    %v2605 = vld [vmem:[#allocation8 + $0x3bc] sm:$0xf]
    %v2606 = vld [vmem:[#allocation8 + $0x3c0] sm:$0xff]
    %v2607 = vld [vmem:[#allocation8 + $0x3c8] sm:$0xff]
    %v2608 = vld [vmem:[#allocation8 + $0x3d0] sm:$0xf]
    %v2609 = vld [vmem:[#allocation8 + $0x3d4] sm:$0xff]
    %v2610 = vld [vmem:[#allocation8 + $0x3dc] sm:$0xff]
    %v2611 = vld [vmem:[#allocation8 + $0x3e4] sm:$0xf]
    %v2612 = vld [vmem:[#allocation8 + $0x3e8] sm:$0xff]
    %v2613 = vld [vmem:[#allocation8 + $0x3f0] sm:$0xff]
    %v2614 = vld [vmem:[#allocation8 + $0x3f8] sm:$0xf]
    %v2615 = vld [vmem:[#allocation8 + $0x3fc] sm:$0xff]
    %v2616 = vld [vmem:[#allocation8 + $0x404] sm:$0xff]
    %v2617 = vld [vmem:[#allocation8 + $0x40c] sm:$0xf]
    %v2618 = vld [vmem:[#allocation8 + $0x410] sm:$0xff]
    %v2619 = vld [vmem:[#allocation8 + $0x418] sm:$0xff]
    %v2620 = vld [vmem:[#allocation8 + $0x420] sm:$0xf]
    %v2621 = vld [vmem:[#allocation8 + $0x424] sm:$0xff]
    %v2622 = vld [vmem:[#allocation8 + $0x42c] sm:$0xff]
    %v2623 = vld [vmem:[#allocation8 + $0x434] sm:$0xf]
    %v2624 = vld [vmem:[#allocation8 + $0x438] sm:$0xff]
    %v2625 = vld [vmem:[#allocation8 + $0x440] sm:$0xff]
    %v2626 = vld [vmem:[#allocation8 + $0x448] sm:$0xf]
    %v2627 = vld [vmem:[#allocation8 + $0x44c] sm:$0xff]
    %v2628 = vld [vmem:[#allocation8 + $0x454] sm:$0xff]
    %v2629 = vld [vmem:[#allocation8 + $0x45c] sm:$0xf]
    %v2630 = vld [vmem:[#allocation8 + $0x460] sm:$0xff]
    %v2631 = vld [vmem:[#allocation8 + $0x468] sm:$0xff]
    %v2632 = vld [vmem:[#allocation8 + $0x470] sm:$0xf]
    %v2633 = vld [vmem:[#allocation8 + $0x474] sm:$0xff]
    %v2634 = vld [vmem:[#allocation8 + $0x47c] sm:$0xff]
    %v2635 = vld [vmem:[#allocation8 + $0x484] sm:$0xf]
    %v2636 = vld [vmem:[#allocation8 + $0x488] sm:$0xff]
    %v2637 = vld [vmem:[#allocation8 + $0x490] sm:$0xff]
    %v2638 = vld [vmem:[#allocation8 + $0x498] sm:$0xf]
    %v2639 = vld [vmem:[#allocation8 + $0x49c] sm:$0xff]
    %v2640 = vld [vmem:[#allocation8 + $0x4a4] sm:$0xff]
    %v2641 = vld [vmem:[#allocation8 + $0x4ac] sm:$0xf]
    %v2642 = vld [vmem:[#allocation8 + $0x4b0] sm:$0xff]
    %v2643 = vld [vmem:[#allocation8 + $0x4b8] sm:$0xff]
    %v2644 = vld [vmem:[#allocation8 + $0x4c0] sm:$0xf]
    %v2645 = vld [vmem:[#allocation8 + $0x4c4] sm:$0xff]
    %v2646 = vld [vmem:[#allocation8 + $0x4cc] sm:$0xff]
    %v2647 = vld [vmem:[#allocation8 + $0x4d4] sm:$0xf]
    %v2648 = vld [vmem:[#allocation8 + $0x4d8] sm:$0xff]
    %v2649 = vld [vmem:[#allocation8 + $0x4e0] sm:$0xff]
    %v2650 = vld [vmem:[#allocation8 + $0x4e8] sm:$0xf]
    %v2651 = vld [vmem:[#allocation8 + $0x4ec] sm:$0xff]
    %v2652 = vld [vmem:[#allocation8 + $0x4f4] sm:$0xff]
    %v2653 = vld [vmem:[#allocation8 + $0x4fc] sm:$0xf]
    %v2654 = vld [vmem:[#allocation8 + $0x500] sm:$0xff]
    %v2655 = vld [vmem:[#allocation8 + $0x508] sm:$0xff]
    %v2656 = vld [vmem:[#allocation8 + $0x510] sm:$0xf]
    %v2657 = vld [vmem:[#allocation8 + $0x514] sm:$0xff]
    %v2658 = vld [vmem:[#allocation8 + $0x51c] sm:$0xff]
    %v2659 = vld [vmem:[#allocation8 + $0x524] sm:$0xf]
    %v2660 = vld [vmem:[#allocation8 + $0x528] sm:$0xff]
    %v2661 = vld [vmem:[#allocation8 + $0x530] sm:$0xff]
    %v2662 = vld [vmem:[#allocation8 + $0x538] sm:$0xf]
    %v2663 = vld [vmem:[#allocation8 + $0x53c] sm:$0xff]
    %v2664 = vld [vmem:[#allocation8 + $0x544] sm:$0xff]
    %v2665 = vld [vmem:[#allocation8 + $0x54c] sm:$0xf]
    %v2666 = vld [vmem:[#allocation8 + $0x550] sm:$0xff]
    %v2667 = vld [vmem:[#allocation8 + $0x558] sm:$0xff]
    %v2668 = vld [vmem:[#allocation8 + $0x560] sm:$0xf]
    %v2669 = vld [vmem:[#allocation8 + $0x564] sm:$0xff]
    %v2670 = vld [vmem:[#allocation8 + $0x56c] sm:$0xff]
    %v2671 = vld [vmem:[#allocation8 + $0x574] sm:$0xf]
    %v2672 = vld [vmem:[#allocation8 + $0x578] sm:$0xff]
    %v2673 = vld [vmem:[#allocation8 + $0x580] sm:$0xff]
    %v2674 = vld [vmem:[#allocation8 + $0x588] sm:$0xf]
    %v2675 = vld [vmem:[#allocation8 + $0x58c] sm:$0xff]
    %v2676 = vld [vmem:[#allocation8 + $0x594] sm:$0xff]
    %v2677 = vld [vmem:[#allocation8 + $0x59c] sm:$0xf]
    %v2678 = vld [vmem:[#allocation8 + $0x5a0] sm:$0xff]
    %v2679 = vld [vmem:[#allocation8 + $0x5a8] sm:$0xff]
    %v2680 = vld [vmem:[#allocation8 + $0x5b0] sm:$0xf]
    %v2681 = vld [vmem:[#allocation8 + $0x5b4] sm:$0xff]
    %v2682 = vld [vmem:[#allocation8 + $0x5bc] sm:$0xff]
    %v2683 = vld [vmem:[#allocation8 + $0x5c4] sm:$0xf]
    %v2684 = vld [vmem:[#allocation8 + $0x5c8] sm:$0xff]
    %v2685 = vld [vmem:[#allocation8 + $0x5d0] sm:$0xff]
    %v2686 = vld [vmem:[#allocation8 + $0x5d8] sm:$0xf]
    %v2687 = vld [vmem:[#allocation8 + $0x5dc] sm:$0xff]
    %v2688 = vld [vmem:[#allocation8 + $0x5e4] sm:$0xff]
    %v2689 = vld [vmem:[#allocation8 + $0x5ec] sm:$0xf]
    %v2690 = vld [vmem:[#allocation8 + $0x5f0] sm:$0xff]
    %v2691 = vld [vmem:[#allocation8 + $0x5f8] sm:$0xff]
    %v2692 = vld [vmem:[#allocation8 + $0x600] sm:$0xf]
    %v2693 = vld [vmem:[#allocation8 + $0x604] sm:$0xff]
    %v2694 = vld [vmem:[#allocation8 + $0x60c] sm:$0xff]
    %v2695 = vld [vmem:[#allocation8 + $0x614] sm:$0xf]
    %v2696 = vld [vmem:[#allocation8 + $0x618] sm:$0xff]
    %v2697 = vld [vmem:[#allocation8 + $0x620] sm:$0xff]
    %v2698 = vld [vmem:[#allocation8 + $0x628] sm:$0xf]
    %v2699 = vld [vmem:[#allocation8 + $0x62c] sm:$0xff]
    %v2700 = vld [vmem:[#allocation8 + $0x634] sm:$0xff]
    %v2701 = vld [vmem:[#allocation8 + $0x63c] sm:$0xf]
    %v2702 = vld [vmem:[%s6] sm:$0x1f]
    %v2704 = vlaneseq
    %v2705 = vshrl.u32 %v2704, 7
    %v2706 = vsub.s32 0, %v2705
    %v2707 = vrot.slane %v2702, %v2706
    %v2708 = vlaneseq
    %v2709 = vshrl.u32 %v2708, 7
    %v2710 = vsub.s32 1, %v2709
    %v2711 = vrot.slane %v2702, %v2710
    %v2712 = vlaneseq
    %v2713 = vshrl.u32 %v2712, 7
    %v2714 = vsub.s32 2, %v2713
    %v2715 = vrot.slane %v2702, %v2714
    %v2716 = vlaneseq
    %v2717 = vshrl.u32 %v2716, 7
    %v2718 = vsub.s32 3, %v2717
    %v2719 = vrot.slane %v2702, %v2718
    %v2720 = vlaneseq
    %v2721 = vshrl.u32 %v2720, 7
    %v2722 = vsub.s32 4, %v2721
    %v2723 = vrot.slane %v2702, %v2722
    %v2969 = vunpack.c.l.b16 %v2462
    %v2970 = vunpack.c.h.b16 %v2462
    %v2971 = vunpack.c.l.b16 %v2463
    %v2972 = vunpack.c.h.b16 %v2463
    %v2973 = vunpack.c.l.b16 %v2464
    %v2974 = vunpack.c.l.b16 %v2465
    %v2975 = vunpack.c.h.b16 %v2465
    %v2976 = vunpack.c.l.b16 %v2466
    %v2977 = vunpack.c.h.b16 %v2466
    %v2978 = vunpack.c.l.b16 %v2467
    %v2979 = vunpack.c.l.b16 %v2468
    %v2980 = vunpack.c.h.b16 %v2468
    %v2981 = vunpack.c.l.b16 %v2469
    %v2982 = vunpack.c.h.b16 %v2469
    %v2983 = vunpack.c.l.b16 %v2470
    %v2984 = vunpack.c.l.b16 %v2471
    %v2985 = vunpack.c.h.b16 %v2471
    %v2986 = vunpack.c.l.b16 %v2472
    %v2987 = vunpack.c.h.b16 %v2472
    %v2988 = vunpack.c.l.b16 %v2473
    %v2989 = vunpack.c.l.b16 %v2474
    %v2990 = vunpack.c.h.b16 %v2474
    %v2991 = vunpack.c.l.b16 %v2475
    %v2992 = vunpack.c.h.b16 %v2475
    %v2993 = vunpack.c.l.b16 %v2476
    %v2994 = vunpack.c.l.b16 %v2477
    %v2995 = vunpack.c.h.b16 %v2477
    %v2996 = vunpack.c.l.b16 %v2478
    %v2997 = vunpack.c.h.b16 %v2478
    %v2998 = vunpack.c.l.b16 %v2479
    %v2999 = vunpack.c.l.b16 %v2480
    %v3000 = vunpack.c.h.b16 %v2480
    %v3001 = vunpack.c.l.b16 %v2481
    %v3002 = vunpack.c.h.b16 %v2481
    %v3003 = vunpack.c.l.b16 %v2482
    %v3004 = vunpack.c.l.b16 %v2483
    %v3005 = vunpack.c.h.b16 %v2483
    %v3006 = vunpack.c.l.b16 %v2484
    %v3007 = vunpack.c.h.b16 %v2484
    %v3008 = vunpack.c.l.b16 %v2485
    %v3009 = vunpack.c.l.b16 %v2486
    %v3010 = vunpack.c.h.b16 %v2486
    %v3011 = vunpack.c.l.b16 %v2487
    %v3012 = vunpack.c.h.b16 %v2487
    %v3013 = vunpack.c.l.b16 %v2488
    %v3014 = vunpack.c.l.b16 %v2489
    %v3015 = vunpack.c.h.b16 %v2489
    %v3016 = vunpack.c.l.b16 %v2490
    %v3017 = vunpack.c.h.b16 %v2490
    %v3018 = vunpack.c.l.b16 %v2491
    %v3019 = vunpack.c.l.b16 %v2492
    %v3020 = vunpack.c.h.b16 %v2492
    %v3021 = vunpack.c.l.b16 %v2493
    %v3022 = vunpack.c.h.b16 %v2493
    %v3023 = vunpack.c.l.b16 %v2494
    %v3024 = vunpack.c.l.b16 %v2495
    %v3025 = vunpack.c.h.b16 %v2495
    %v3026 = vunpack.c.l.b16 %v2496
    %v3027 = vunpack.c.h.b16 %v2496
    %v3028 = vunpack.c.l.b16 %v2497
    %v3029 = vunpack.c.l.b16 %v2498
    %v3030 = vunpack.c.h.b16 %v2498
    %v3031 = vunpack.c.l.b16 %v2499
    %v3032 = vunpack.c.h.b16 %v2499
    %v3033 = vunpack.c.l.b16 %v2500
    %v3034 = vunpack.c.l.b16 %v2501
    %v3035 = vunpack.c.h.b16 %v2501
    %v3036 = vunpack.c.l.b16 %v2502
    %v3037 = vunpack.c.h.b16 %v2502
    %v3038 = vunpack.c.l.b16 %v2503
    %v3039 = vunpack.c.l.b16 %v2504
    %v3040 = vunpack.c.h.b16 %v2504
    %v3041 = vunpack.c.l.b16 %v2505
    %v3042 = vunpack.c.h.b16 %v2505
    %v3043 = vunpack.c.l.b16 %v2506
    %v3044 = vunpack.c.l.b16 %v2507
    %v3045 = vunpack.c.h.b16 %v2507
    %v3046 = vunpack.c.l.b16 %v2508
    %v3047 = vunpack.c.h.b16 %v2508
    %v3048 = vunpack.c.l.b16 %v2509
    %v3049 = vunpack.c.l.b16 %v2510
    %v3050 = vunpack.c.h.b16 %v2510
    %v3051 = vunpack.c.l.b16 %v2511
    %v3052 = vunpack.c.h.b16 %v2511
    %v3053 = vunpack.c.l.b16 %v2512
    %v3054 = vunpack.c.l.b16 %v2513
    %v3055 = vunpack.c.h.b16 %v2513
    %v3056 = vunpack.c.l.b16 %v2514
    %v3057 = vunpack.c.h.b16 %v2514
    %v3058 = vunpack.c.l.b16 %v2515
    %v3059 = vunpack.c.l.b16 %v2516
    %v3060 = vunpack.c.h.b16 %v2516
    %v3061 = vunpack.c.l.b16 %v2517
    %v3062 = vunpack.c.h.b16 %v2517
    %v3063 = vunpack.c.l.b16 %v2518
    %v3064 = vunpack.c.l.b16 %v2519
    %v3065 = vunpack.c.h.b16 %v2519
    %v3066 = vunpack.c.l.b16 %v2520
    %v3067 = vunpack.c.h.b16 %v2520
    %v3068 = vunpack.c.l.b16 %v2521
    %v3069 = vunpack.c.l.b16 %v2522
    %v3070 = vunpack.c.h.b16 %v2522
    %v3071 = vunpack.c.l.b16 %v2523
    %v3072 = vunpack.c.h.b16 %v2523
    %v3073 = vunpack.c.l.b16 %v2524
    %v3074 = vunpack.c.l.b16 %v2525
    %v3075 = vunpack.c.h.b16 %v2525
    %v3076 = vunpack.c.l.b16 %v2526
    %v3077 = vunpack.c.h.b16 %v2526
    %v3078 = vunpack.c.l.b16 %v2527
    %v3079 = vunpack.c.l.b16 %v2528
    %v3080 = vunpack.c.h.b16 %v2528
    %v3081 = vunpack.c.l.b16 %v2529
    %v3082 = vunpack.c.h.b16 %v2529
    %v3083 = vunpack.c.l.b16 %v2530
    %v3084 = vunpack.c.l.b16 %v2531
    %v3085 = vunpack.c.h.b16 %v2531
    %v3086 = vunpack.c.l.b16 %v2532
    %v3087 = vunpack.c.h.b16 %v2532
    %v3088 = vunpack.c.l.b16 %v2533
    %v3089 = vunpack.c.l.b16 %v2534
    %v3090 = vunpack.c.h.b16 %v2534
    %v3091 = vunpack.c.l.b16 %v2535
    %v3092 = vunpack.c.h.b16 %v2535
    %v3093 = vunpack.c.l.b16 %v2536
    %v3094 = vunpack.c.l.b16 %v2537
    %v3095 = vunpack.c.h.b16 %v2537
    %v3096 = vunpack.c.l.b16 %v2538
    %v3097 = vunpack.c.h.b16 %v2538
    %v3098 = vunpack.c.l.b16 %v2539
    %v3099 = vunpack.c.l.b16 %v2540
    %v3100 = vunpack.c.h.b16 %v2540
    %v3101 = vunpack.c.l.b16 %v2541
    %v3102 = vunpack.c.h.b16 %v2541
    %v3103 = vunpack.c.l.b16 %v2542
    %v3104 = vunpack.c.l.b16 %v2543
    %v3105 = vunpack.c.h.b16 %v2543
    %v3106 = vunpack.c.l.b16 %v2544
    %v3107 = vunpack.c.h.b16 %v2544
    %v3108 = vunpack.c.l.b16 %v2545
    %v3109 = vunpack.c.l.b16 %v2546
    %v3110 = vunpack.c.h.b16 %v2546
    %v3111 = vunpack.c.l.b16 %v2547
    %v3112 = vunpack.c.h.b16 %v2547
    %v3113 = vunpack.c.l.b16 %v2548
    %v3114 = vunpack.c.l.b16 %v2549
    %v3115 = vunpack.c.h.b16 %v2549
    %v3116 = vunpack.c.l.b16 %v2550
    %v3117 = vunpack.c.h.b16 %v2550
    %v3118 = vunpack.c.l.b16 %v2551
    %v3119 = vunpack.c.l.b16 %v2552
    %v3120 = vunpack.c.h.b16 %v2552
    %v3121 = vunpack.c.l.b16 %v2553
    %v3122 = vunpack.c.h.b16 %v2553
    %v3123 = vunpack.c.l.b16 %v2554
    %v3124 = vunpack.c.l.b16 %v2555
    %v3125 = vunpack.c.h.b16 %v2555
    %v3126 = vunpack.c.l.b16 %v2556
    %v3127 = vunpack.c.h.b16 %v2556
    %v3128 = vunpack.c.l.b16 %v2557
    %v3129 = vunpack.c.l.b16 %v2558
    %v3130 = vunpack.c.h.b16 %v2558
    %v3131 = vunpack.c.l.b16 %v2559
    %v3132 = vunpack.c.h.b16 %v2559
    %v3133 = vunpack.c.l.b16 %v2560
    %v3134 = vunpack.c.l.b16 %v2561
    %v3135 = vunpack.c.h.b16 %v2561
    %v3136 = vunpack.c.l.b16 %v2562
    %v3137 = vunpack.c.h.b16 %v2562
    %v3138 = vunpack.c.l.b16 %v2563
    %v3139 = vunpack.c.l.b16 %v2564
    %v3140 = vunpack.c.h.b16 %v2564
    %v3141 = vunpack.c.l.b16 %v2565
    %v3142 = vunpack.c.h.b16 %v2565
    %v3143 = vunpack.c.l.b16 %v2566
    %v3144 = vunpack.c.l.b16 %v2567
    %v3145 = vunpack.c.h.b16 %v2567
    %v3146 = vunpack.c.l.b16 %v2568
    %v3147 = vunpack.c.h.b16 %v2568
    %v3148 = vunpack.c.l.b16 %v2569
    %v3149 = vunpack.c.l.b16 %v2570
    %v3150 = vunpack.c.h.b16 %v2570
    %v3151 = vunpack.c.l.b16 %v2571
    %v3152 = vunpack.c.h.b16 %v2571
    %v3153 = vunpack.c.l.b16 %v2572
    %v3154 = vunpack.c.l.b16 %v2573
    %v3155 = vunpack.c.h.b16 %v2573
    %v3156 = vunpack.c.l.b16 %v2574
    %v3157 = vunpack.c.h.b16 %v2574
    %v3158 = vunpack.c.l.b16 %v2575
    %v3159 = vunpack.c.l.b16 %v2576
    %v3160 = vunpack.c.h.b16 %v2576
    %v3161 = vunpack.c.l.b16 %v2577
    %v3162 = vunpack.c.h.b16 %v2577
    %v3163 = vunpack.c.l.b16 %v2578
    %v3164 = vunpack.c.l.b16 %v2579
    %v3165 = vunpack.c.h.b16 %v2579
    %v3166 = vunpack.c.l.b16 %v2580
    %v3167 = vunpack.c.h.b16 %v2580
    %v3168 = vunpack.c.l.b16 %v2581
    %v3169 = vunpack.c.l.b16 %v2582
    %v3170 = vunpack.c.h.b16 %v2582
    %v3171 = vunpack.c.l.b16 %v2583
    %v3172 = vunpack.c.h.b16 %v2583
    %v3173 = vunpack.c.l.b16 %v2584
    %v3174 = vunpack.c.l.b16 %v2585
    %v3175 = vunpack.c.h.b16 %v2585
    %v3176 = vunpack.c.l.b16 %v2586
    %v3177 = vunpack.c.h.b16 %v2586
    %v3178 = vunpack.c.l.b16 %v2587
    %v3179 = vunpack.c.l.b16 %v2588
    %v3180 = vunpack.c.h.b16 %v2588
    %v3181 = vunpack.c.l.b16 %v2589
    %v3182 = vunpack.c.h.b16 %v2589
    %v3183 = vunpack.c.l.b16 %v2590
    %v3184 = vunpack.c.l.b16 %v2591
    %v3185 = vunpack.c.h.b16 %v2591
    %v3186 = vunpack.c.l.b16 %v2592
    %v3187 = vunpack.c.h.b16 %v2592
    %v3188 = vunpack.c.l.b16 %v2593
    %v3189 = vunpack.c.l.b16 %v2594
    %v3190 = vunpack.c.h.b16 %v2594
    %v3191 = vunpack.c.l.b16 %v2595
    %v3192 = vunpack.c.h.b16 %v2595
    %v3193 = vunpack.c.l.b16 %v2596
    %v3194 = vunpack.c.l.b16 %v2597
    %v3195 = vunpack.c.h.b16 %v2597
    %v3196 = vunpack.c.l.b16 %v2598
    %v3197 = vunpack.c.h.b16 %v2598
    %v3198 = vunpack.c.l.b16 %v2599
    %v3199 = vunpack.c.l.b16 %v2600
    %v3200 = vunpack.c.h.b16 %v2600
    %v3201 = vunpack.c.l.b16 %v2601
    %v3202 = vunpack.c.h.b16 %v2601
    %v3203 = vunpack.c.l.b16 %v2602
    %v3204 = vunpack.c.l.b16 %v2603
    %v3205 = vunpack.c.h.b16 %v2603
    %v3206 = vunpack.c.l.b16 %v2604
    %v3207 = vunpack.c.h.b16 %v2604
    %v3208 = vunpack.c.l.b16 %v2605
    %v3209 = vunpack.c.l.b16 %v2606
    %v3210 = vunpack.c.h.b16 %v2606
    %v3211 = vunpack.c.l.b16 %v2607
    %v3212 = vunpack.c.h.b16 %v2607
    %v3213 = vunpack.c.l.b16 %v2608
    %v3214 = vunpack.c.l.b16 %v2609
    %v3215 = vunpack.c.h.b16 %v2609
    %v3216 = vunpack.c.l.b16 %v2610
    %v3217 = vunpack.c.h.b16 %v2610
    %v3218 = vunpack.c.l.b16 %v2611
    %v3219 = vunpack.c.l.b16 %v2612
    %v3220 = vunpack.c.h.b16 %v2612
    %v3221 = vunpack.c.l.b16 %v2613
    %v3222 = vunpack.c.h.b16 %v2613
    %v3223 = vunpack.c.l.b16 %v2614
    %v3224 = vunpack.c.l.b16 %v2615
    %v3225 = vunpack.c.h.b16 %v2615
    %v3226 = vunpack.c.l.b16 %v2616
    %v3227 = vunpack.c.h.b16 %v2616
    %v3228 = vunpack.c.l.b16 %v2617
    %v3229 = vunpack.c.l.b16 %v2618
    %v3230 = vunpack.c.h.b16 %v2618
    %v3231 = vunpack.c.l.b16 %v2619
    %v3232 = vunpack.c.h.b16 %v2619
    %v3233 = vunpack.c.l.b16 %v2620
    %v3234 = vunpack.c.l.b16 %v2621
    %v3235 = vunpack.c.h.b16 %v2621
    %v3236 = vunpack.c.l.b16 %v2622
    %v3237 = vunpack.c.h.b16 %v2622
    %v3238 = vunpack.c.l.b16 %v2623
    %v3239 = vunpack.c.l.b16 %v2624
    %v3240 = vunpack.c.h.b16 %v2624
    %v3241 = vunpack.c.l.b16 %v2625
    %v3242 = vunpack.c.h.b16 %v2625
    %v3243 = vunpack.c.l.b16 %v2626
    %v3244 = vunpack.c.l.b16 %v2627
    %v3245 = vunpack.c.h.b16 %v2627
    %v3246 = vunpack.c.l.b16 %v2628
    %v3247 = vunpack.c.h.b16 %v2628
    %v3248 = vunpack.c.l.b16 %v2629
    %v3249 = vunpack.c.l.b16 %v2630
    %v3250 = vunpack.c.h.b16 %v2630
    %v3251 = vunpack.c.l.b16 %v2631
    %v3252 = vunpack.c.h.b16 %v2631
    %v3253 = vunpack.c.l.b16 %v2632
    %v3254 = vunpack.c.l.b16 %v2633
    %v3255 = vunpack.c.h.b16 %v2633
    %v3256 = vunpack.c.l.b16 %v2634
    %v3257 = vunpack.c.h.b16 %v2634
    %v3258 = vunpack.c.l.b16 %v2635
    %v3259 = vunpack.c.l.b16 %v2636
    %v3260 = vunpack.c.h.b16 %v2636
    %v3261 = vunpack.c.l.b16 %v2637
    %v3262 = vunpack.c.h.b16 %v2637
    %v3263 = vunpack.c.l.b16 %v2638
    %v3264 = vunpack.c.l.b16 %v2639
    %v3265 = vunpack.c.h.b16 %v2639
    %v3266 = vunpack.c.l.b16 %v2640
    %v3267 = vunpack.c.h.b16 %v2640
    %v3268 = vunpack.c.l.b16 %v2641
    %v3269 = vunpack.c.l.b16 %v2642
    %v3270 = vunpack.c.h.b16 %v2642
    %v3271 = vunpack.c.l.b16 %v2643
    %v3272 = vunpack.c.h.b16 %v2643
    %v3273 = vunpack.c.l.b16 %v2644
    %v3274 = vunpack.c.l.b16 %v2645
    %v3275 = vunpack.c.h.b16 %v2645
    %v3276 = vunpack.c.l.b16 %v2646
    %v3277 = vunpack.c.h.b16 %v2646
    %v3278 = vunpack.c.l.b16 %v2647
    %v3279 = vunpack.c.l.b16 %v2648
    %v3280 = vunpack.c.h.b16 %v2648
    %v3281 = vunpack.c.l.b16 %v2649
    %v3282 = vunpack.c.h.b16 %v2649
    %v3283 = vunpack.c.l.b16 %v2650
    %v3284 = vunpack.c.l.b16 %v2651
    %v3285 = vunpack.c.h.b16 %v2651
    %v3286 = vunpack.c.l.b16 %v2652
    %v3287 = vunpack.c.h.b16 %v2652
    %v3288 = vunpack.c.l.b16 %v2653
    %v3289 = vunpack.c.l.b16 %v2654
    %v3290 = vunpack.c.h.b16 %v2654
    %v3291 = vunpack.c.l.b16 %v2655
    %v3292 = vunpack.c.h.b16 %v2655
    %v3293 = vunpack.c.l.b16 %v2656
    %v3294 = vunpack.c.l.b16 %v2657
    %v3295 = vunpack.c.h.b16 %v2657
    %v3296 = vunpack.c.l.b16 %v2658
    %v3297 = vunpack.c.h.b16 %v2658
    %v3298 = vunpack.c.l.b16 %v2659
    %v3299 = vunpack.c.l.b16 %v2660
    %v3300 = vunpack.c.h.b16 %v2660
    %v3301 = vunpack.c.l.b16 %v2661
    %v3302 = vunpack.c.h.b16 %v2661
    %v3303 = vunpack.c.l.b16 %v2662
    %v3304 = vunpack.c.l.b16 %v2663
    %v3305 = vunpack.c.h.b16 %v2663
    %v3306 = vunpack.c.l.b16 %v2664
    %v3307 = vunpack.c.h.b16 %v2664
    %v3308 = vunpack.c.l.b16 %v2665
    %v3309 = vunpack.c.l.b16 %v2666
    %v3310 = vunpack.c.h.b16 %v2666
    %v3311 = vunpack.c.l.b16 %v2667
    %v3312 = vunpack.c.h.b16 %v2667
    %v3313 = vunpack.c.l.b16 %v2668
    %v3314 = vunpack.c.l.b16 %v2669
    %v3315 = vunpack.c.h.b16 %v2669
    %v3316 = vunpack.c.l.b16 %v2670
    %v3317 = vunpack.c.h.b16 %v2670
    %v3318 = vunpack.c.l.b16 %v2671
    %v3319 = vunpack.c.l.b16 %v2672
    %v3320 = vunpack.c.h.b16 %v2672
    %v3321 = vunpack.c.l.b16 %v2673
    %v3322 = vunpack.c.h.b16 %v2673
    %v3323 = vunpack.c.l.b16 %v2674
    %v3324 = vunpack.c.l.b16 %v2675
    %v3325 = vunpack.c.h.b16 %v2675
    %v3326 = vunpack.c.l.b16 %v2676
    %v3327 = vunpack.c.h.b16 %v2676
    %v3328 = vunpack.c.l.b16 %v2677
    %v3329 = vunpack.c.l.b16 %v2678
    %v3330 = vunpack.c.h.b16 %v2678
    %v3331 = vunpack.c.l.b16 %v2679
    %v3332 = vunpack.c.h.b16 %v2679
    %v3333 = vunpack.c.l.b16 %v2680
    %v3334 = vunpack.c.l.b16 %v2681
    %v3335 = vunpack.c.h.b16 %v2681
    %v3336 = vunpack.c.l.b16 %v2682
    %v3337 = vunpack.c.h.b16 %v2682
    %v3338 = vunpack.c.l.b16 %v2683
    %v3339 = vunpack.c.l.b16 %v2684
    %v3340 = vunpack.c.h.b16 %v2684
    %v3341 = vunpack.c.l.b16 %v2685
    %v3342 = vunpack.c.h.b16 %v2685
    %v3343 = vunpack.c.l.b16 %v2686
    %v3344 = vunpack.c.l.b16 %v2687
    %v3345 = vunpack.c.h.b16 %v2687
    %v3346 = vunpack.c.l.b16 %v2688
    %v3347 = vunpack.c.h.b16 %v2688
    %v3348 = vunpack.c.l.b16 %v2689
    %v3349 = vunpack.c.l.b16 %v2690
    %v3350 = vunpack.c.h.b16 %v2690
    %v3351 = vunpack.c.l.b16 %v2691
    %v3352 = vunpack.c.h.b16 %v2691
    %v3353 = vunpack.c.l.b16 %v2692
    %v3354 = vunpack.c.l.b16 %v2693
    %v3355 = vunpack.c.h.b16 %v2693
    %v3356 = vunpack.c.l.b16 %v2694
    %v3357 = vunpack.c.h.b16 %v2694
    %v3358 = vunpack.c.l.b16 %v2695
    %v3359 = vunpack.c.l.b16 %v2696
    %v3360 = vunpack.c.h.b16 %v2696
    %v3361 = vunpack.c.l.b16 %v2697
    %v3362 = vunpack.c.h.b16 %v2697
    %v3363 = vunpack.c.l.b16 %v2698
    %v3364 = vunpack.c.l.b16 %v2699
    %v3365 = vunpack.c.h.b16 %v2699
    %v3366 = vunpack.c.l.b16 %v2700
    %v3367 = vunpack.c.h.b16 %v2700
    %v3368 = vunpack.c.l.b16 %v2701
    %v3369 = vpack.c.b16 %v2974, %v2969
    %v3370 = vpack.c.b16 %v2975, %v2970
    %v3371 = vpack.c.b16 %v2976, %v2971
    %v3372 = vpack.c.b16 %v2977, %v2972
    %v3373 = vpack.c.b16 %v2978, %v2973
    %v3374 = vpack.c.b16 %v2984, %v2979
    %v3375 = vpack.c.b16 %v2985, %v2980
    %v3376 = vpack.c.b16 %v2986, %v2981
    %v3377 = vpack.c.b16 %v2987, %v2982
    %v3378 = vpack.c.b16 %v2988, %v2983
    %v3379 = vpack.c.b16 %v2994, %v2989
    %v3380 = vpack.c.b16 %v2995, %v2990
    %v3381 = vpack.c.b16 %v2996, %v2991
    %v3382 = vpack.c.b16 %v2997, %v2992
    %v3383 = vpack.c.b16 %v2998, %v2993
    %v3384 = vpack.c.b16 %v3004, %v2999
    %v3385 = vpack.c.b16 %v3005, %v3000
    %v3386 = vpack.c.b16 %v3006, %v3001
    %v3387 = vpack.c.b16 %v3007, %v3002
    %v3388 = vpack.c.b16 %v3008, %v3003
    %v3389 = vpack.c.b16 %v3014, %v3009
    %v3390 = vpack.c.b16 %v3015, %v3010
    %v3391 = vpack.c.b16 %v3016, %v3011
    %v3392 = vpack.c.b16 %v3017, %v3012
    %v3393 = vpack.c.b16 %v3018, %v3013
    %v3394 = vpack.c.b16 %v3024, %v3019
    %v3395 = vpack.c.b16 %v3025, %v3020
    %v3396 = vpack.c.b16 %v3026, %v3021
    %v3397 = vpack.c.b16 %v3027, %v3022
    %v3398 = vpack.c.b16 %v3028, %v3023
    %v3399 = vpack.c.b16 %v3034, %v3029
    %v3400 = vpack.c.b16 %v3035, %v3030
    %v3401 = vpack.c.b16 %v3036, %v3031
    %v3402 = vpack.c.b16 %v3037, %v3032
    %v3403 = vpack.c.b16 %v3038, %v3033
    %v3404 = vpack.c.b16 %v3044, %v3039
    %v3405 = vpack.c.b16 %v3045, %v3040
    %v3406 = vpack.c.b16 %v3046, %v3041
    %v3407 = vpack.c.b16 %v3047, %v3042
    %v3408 = vpack.c.b16 %v3048, %v3043
    %v3409 = vpack.c.b16 %v3054, %v3049
    %v3410 = vpack.c.b16 %v3055, %v3050
    %v3411 = vpack.c.b16 %v3056, %v3051
    %v3412 = vpack.c.b16 %v3057, %v3052
    %v3413 = vpack.c.b16 %v3058, %v3053
    %v3414 = vpack.c.b16 %v3064, %v3059
    %v3415 = vpack.c.b16 %v3065, %v3060
    %v3416 = vpack.c.b16 %v3066, %v3061
    %v3417 = vpack.c.b16 %v3067, %v3062
    %v3418 = vpack.c.b16 %v3068, %v3063
    %v3419 = vpack.c.b16 %v3074, %v3069
    %v3420 = vpack.c.b16 %v3075, %v3070
    %v3421 = vpack.c.b16 %v3076, %v3071
    %v3422 = vpack.c.b16 %v3077, %v3072
    %v3423 = vpack.c.b16 %v3078, %v3073
    %v3424 = vpack.c.b16 %v3084, %v3079
    %v3425 = vpack.c.b16 %v3085, %v3080
    %v3426 = vpack.c.b16 %v3086, %v3081
    %v3427 = vpack.c.b16 %v3087, %v3082
    %v3428 = vpack.c.b16 %v3088, %v3083
    %v3429 = vpack.c.b16 %v3094, %v3089
    %v3430 = vpack.c.b16 %v3095, %v3090
    %v3431 = vpack.c.b16 %v3096, %v3091
    %v3432 = vpack.c.b16 %v3097, %v3092
    %v3433 = vpack.c.b16 %v3098, %v3093
    %v3434 = vpack.c.b16 %v3104, %v3099
    %v3435 = vpack.c.b16 %v3105, %v3100
    %v3436 = vpack.c.b16 %v3106, %v3101
    %v3437 = vpack.c.b16 %v3107, %v3102
    %v3438 = vpack.c.b16 %v3108, %v3103
    %v3439 = vpack.c.b16 %v3114, %v3109
    %v3440 = vpack.c.b16 %v3115, %v3110
    %v3441 = vpack.c.b16 %v3116, %v3111
    %v3442 = vpack.c.b16 %v3117, %v3112
    %v3443 = vpack.c.b16 %v3118, %v3113
    %v3444 = vpack.c.b16 %v3124, %v3119
    %v3445 = vpack.c.b16 %v3125, %v3120
    %v3446 = vpack.c.b16 %v3126, %v3121
    %v3447 = vpack.c.b16 %v3127, %v3122
    %v3448 = vpack.c.b16 %v3128, %v3123
    %v3449 = vpack.c.b16 %v3134, %v3129
    %v3450 = vpack.c.b16 %v3135, %v3130
    %v3451 = vpack.c.b16 %v3136, %v3131
    %v3452 = vpack.c.b16 %v3137, %v3132
    %v3453 = vpack.c.b16 %v3138, %v3133
    %v3454 = vpack.c.b16 %v3144, %v3139
    %v3455 = vpack.c.b16 %v3145, %v3140
    %v3456 = vpack.c.b16 %v3146, %v3141
    %v3457 = vpack.c.b16 %v3147, %v3142
    %v3458 = vpack.c.b16 %v3148, %v3143
    %v3459 = vpack.c.b16 %v3154, %v3149
    %v3460 = vpack.c.b16 %v3155, %v3150
    %v3461 = vpack.c.b16 %v3156, %v3151
    %v3462 = vpack.c.b16 %v3157, %v3152
    %v3463 = vpack.c.b16 %v3158, %v3153
    %v3464 = vpack.c.b16 %v3164, %v3159
    %v3465 = vpack.c.b16 %v3165, %v3160
    %v3466 = vpack.c.b16 %v3166, %v3161
    %v3467 = vpack.c.b16 %v3167, %v3162
    %v3468 = vpack.c.b16 %v3168, %v3163
    %v3469 = vpack.c.b16 %v3174, %v3169
    %v3470 = vpack.c.b16 %v3175, %v3170
    %v3471 = vpack.c.b16 %v3176, %v3171
    %v3472 = vpack.c.b16 %v3177, %v3172
    %v3473 = vpack.c.b16 %v3178, %v3173
    %v3474 = vpack.c.b16 %v3184, %v3179
    %v3475 = vpack.c.b16 %v3185, %v3180
    %v3476 = vpack.c.b16 %v3186, %v3181
    %v3477 = vpack.c.b16 %v3187, %v3182
    %v3478 = vpack.c.b16 %v3188, %v3183
    %v3479 = vpack.c.b16 %v3194, %v3189
    %v3480 = vpack.c.b16 %v3195, %v3190
    %v3481 = vpack.c.b16 %v3196, %v3191
    %v3482 = vpack.c.b16 %v3197, %v3192
    %v3483 = vpack.c.b16 %v3198, %v3193
    %v3484 = vpack.c.b16 %v3204, %v3199
    %v3485 = vpack.c.b16 %v3205, %v3200
    %v3486 = vpack.c.b16 %v3206, %v3201
    %v3487 = vpack.c.b16 %v3207, %v3202
    %v3488 = vpack.c.b16 %v3208, %v3203
    %v3489 = vpack.c.b16 %v3214, %v3209
    %v3490 = vpack.c.b16 %v3215, %v3210
    %v3491 = vpack.c.b16 %v3216, %v3211
    %v3492 = vpack.c.b16 %v3217, %v3212
    %v3493 = vpack.c.b16 %v3218, %v3213
    %v3494 = vpack.c.b16 %v3224, %v3219
    %v3495 = vpack.c.b16 %v3225, %v3220
    %v3496 = vpack.c.b16 %v3226, %v3221
    %v3497 = vpack.c.b16 %v3227, %v3222
    %v3498 = vpack.c.b16 %v3228, %v3223
    %v3499 = vpack.c.b16 %v3234, %v3229
    %v3500 = vpack.c.b16 %v3235, %v3230
    %v3501 = vpack.c.b16 %v3236, %v3231
    %v3502 = vpack.c.b16 %v3237, %v3232
    %v3503 = vpack.c.b16 %v3238, %v3233
    %v3504 = vpack.c.b16 %v3244, %v3239
    %v3505 = vpack.c.b16 %v3245, %v3240
    %v3506 = vpack.c.b16 %v3246, %v3241
    %v3507 = vpack.c.b16 %v3247, %v3242
    %v3508 = vpack.c.b16 %v3248, %v3243
    %v3509 = vpack.c.b16 %v3254, %v3249
    %v3510 = vpack.c.b16 %v3255, %v3250
    %v3511 = vpack.c.b16 %v3256, %v3251
    %v3512 = vpack.c.b16 %v3257, %v3252
    %v3513 = vpack.c.b16 %v3258, %v3253
    %v3514 = vpack.c.b16 %v3264, %v3259
    %v3515 = vpack.c.b16 %v3265, %v3260
    %v3516 = vpack.c.b16 %v3266, %v3261
    %v3517 = vpack.c.b16 %v3267, %v3262
    %v3518 = vpack.c.b16 %v3268, %v3263
    %v3519 = vpack.c.b16 %v3274, %v3269
    %v3520 = vpack.c.b16 %v3275, %v3270
    %v3521 = vpack.c.b16 %v3276, %v3271
    %v3522 = vpack.c.b16 %v3277, %v3272
    %v3523 = vpack.c.b16 %v3278, %v3273
    %v3524 = vpack.c.b16 %v3284, %v3279
    %v3525 = vpack.c.b16 %v3285, %v3280
    %v3526 = vpack.c.b16 %v3286, %v3281
    %v3527 = vpack.c.b16 %v3287, %v3282
    %v3528 = vpack.c.b16 %v3288, %v3283
    %v3529 = vpack.c.b16 %v3294, %v3289
    %v3530 = vpack.c.b16 %v3295, %v3290
    %v3531 = vpack.c.b16 %v3296, %v3291
    %v3532 = vpack.c.b16 %v3297, %v3292
    %v3533 = vpack.c.b16 %v3298, %v3293
    %v3534 = vpack.c.b16 %v3304, %v3299
    %v3535 = vpack.c.b16 %v3305, %v3300
    %v3536 = vpack.c.b16 %v3306, %v3301
    %v3537 = vpack.c.b16 %v3307, %v3302
    %v3538 = vpack.c.b16 %v3308, %v3303
    %v3539 = vpack.c.b16 %v3314, %v3309
    %v3540 = vpack.c.b16 %v3315, %v3310
    %v3541 = vpack.c.b16 %v3316, %v3311
    %v3542 = vpack.c.b16 %v3317, %v3312
    %v3543 = vpack.c.b16 %v3318, %v3313
    %v3544 = vpack.c.b16 %v3324, %v3319
    %v3545 = vpack.c.b16 %v3325, %v3320
    %v3546 = vpack.c.b16 %v3326, %v3321
    %v3547 = vpack.c.b16 %v3327, %v3322
    %v3548 = vpack.c.b16 %v3328, %v3323
    %v3549 = vpack.c.b16 %v3334, %v3329
    %v3550 = vpack.c.b16 %v3335, %v3330
    %v3551 = vpack.c.b16 %v3336, %v3331
    %v3552 = vpack.c.b16 %v3337, %v3332
    %v3553 = vpack.c.b16 %v3338, %v3333
    %v3554 = vpack.c.b16 %v3344, %v3339
    %v3555 = vpack.c.b16 %v3345, %v3340
    %v3556 = vpack.c.b16 %v3346, %v3341
    %v3557 = vpack.c.b16 %v3347, %v3342
    %v3558 = vpack.c.b16 %v3348, %v3343
    %v3559 = vpack.c.b16 %v3354, %v3349
    %v3560 = vpack.c.b16 %v3355, %v3350
    %v3561 = vpack.c.b16 %v3356, %v3351
    %v3562 = vpack.c.b16 %v3357, %v3352
    %v3563 = vpack.c.b16 %v3358, %v3353
    %v3564 = vpack.c.b16 %v3364, %v3359
    %v3565 = vpack.c.b16 %v3365, %v3360
    %v3566 = vpack.c.b16 %v3366, %v3361
    %v3567 = vpack.c.b16 %v3367, %v3362
    %v3568 = vpack.c.b16 %v3368, %v3363
    %3769 = vmatprep.subr.bf16.mxu0 %v3370
    %3770 = vmatpush1.bf16.msra.mxu0 %v3369
    %3771 = vmatprep.subr.bf16.mxu0 %v3375
    %3772 = vmatpush1.bf16.msra.mxu0 %v3374
    %3773 = vmatprep.subr.bf16.mxu0 %v3380
    %3774 = vmatpush1.bf16.msra.mxu0 %v3379
    %3775 = vmatprep.subr.bf16.mxu0 %v3385
    %3776 = vmatpush1.bf16.msra.mxu0 %v3384
    %3777 = vmatprep.subr.bf16.mxu0 %v3390
    %3778 = vmatpush1.bf16.msra.mxu0 %v3389
    %3779 = vmatprep.subr.bf16.mxu0 %v3395
    %3780 = vmatpush1.bf16.msra.mxu0 %v3394
    %3781 = vmatprep.subr.bf16.mxu0 %v3400
    %3782 = vmatpush1.bf16.msra.mxu0 %v3399
    %3783 = vmatprep.subr.bf16.mxu0 %v3405
    %3784 = vmatpush1.bf16.msra.mxu0 %v3404
    %3785 = vmatprep.subr.bf16.mxu0 %v3410
    %3786 = vmatpush1.bf16.msra.mxu0 %v3409
    %3787 = vmatprep.subr.bf16.mxu0 %v3415
    %3788 = vmatpush1.bf16.msra.mxu0 %v3414
    %3789 = vmatprep.subr.bf16.mxu0 %v3420
    %3790 = vmatpush1.bf16.msra.mxu0 %v3419
    %3791 = vmatprep.subr.bf16.mxu0 %v3425
    %3792 = vmatpush1.bf16.msra.mxu0 %v3424
    %3793 = vmatprep.subr.bf16.mxu0 %v3430
    %3794 = vmatpush1.bf16.msra.mxu0 %v3429
    %3795 = vmatprep.subr.bf16.mxu0 %v3435
    %3796 = vmatpush1.bf16.msra.mxu0 %v3434
    %3797 = vmatprep.subr.bf16.mxu0 %v3440
    %3798 = vmatpush1.bf16.msra.mxu0 %v3439
    %3799 = vmatprep.subr.bf16.mxu0 %v3445
    %3800 = vmatpush1.bf16.msra.mxu0 %v3444
    %3801 = vmatprep.mubr.bf16.mxu0 %v2458
    %3802 = vmatmul.mubr.bf16.gmra.mrb[0].mxu0 %v2457
    %v3803 = vpop.f32.mrb[0].mxu0
    %v3804 = vadd.f32 %v2707, %v3803
    %v3805 = vpop.f32.mrb[0].mxu0
    %v3806 = vadd.f32 %v2711, %v3805
    %v3807 = vpop.f32.mrb[0].mxu0
    %v3808 = vpop.f32.mrb[0].mxu0
    %3809 = vdwg.mxu0
    %3810 = vmatprep.subr.bf16.mxu0 %v3450
    %3811 = vmatpush1.bf16.msra.mxu0 %v3449
    %3812 = vmatprep.subr.bf16.mxu0 %v3455
    %3813 = vmatpush1.bf16.msra.mxu0 %v3454
    %3814 = vmatprep.subr.bf16.mxu0 %v3460
    %3815 = vmatpush1.bf16.msra.mxu0 %v3459
    %3816 = vmatprep.subr.bf16.mxu0 %v3465
    %3817 = vmatpush1.bf16.msra.mxu0 %v3464
    %3818 = vmatprep.subr.bf16.mxu0 %v3470
    %3819 = vmatpush1.bf16.msra.mxu0 %v3469
    %3820 = vmatprep.subr.bf16.mxu0 %v3475
    %3821 = vmatpush1.bf16.msra.mxu0 %v3474
    %3822 = vmatprep.subr.bf16.mxu0 %v3480
    %3823 = vmatpush1.bf16.msra.mxu0 %v3479
    %3824 = vmatprep.subr.bf16.mxu0 %v3485
    %3825 = vmatpush1.bf16.msra.mxu0 %v3484
    %3826 = vmatprep.subr.bf16.mxu0 %v3490
    %3827 = vmatpush1.bf16.msra.mxu0 %v3489
    %3828 = vmatprep.subr.bf16.mxu0 %v3495
    %3829 = vmatpush1.bf16.msra.mxu0 %v3494
    %3830 = vmatprep.subr.bf16.mxu0 %v3500
    %3831 = vmatpush1.bf16.msra.mxu0 %v3499
    %3832 = vmatprep.subr.bf16.mxu0 %v3505
    %3833 = vmatpush1.bf16.msra.mxu0 %v3504
    %3834 = vmatprep.subr.bf16.mxu0 %v3510
    %3835 = vmatpush1.bf16.msra.mxu0 %v3509
    %3836 = vmatprep.subr.bf16.mxu0 %v3515
    %3837 = vmatpush1.bf16.msra.mxu0 %v3514
    %3838 = vmatprep.subr.bf16.mxu0 %v3520
    %3839 = vmatpush1.bf16.msra.mxu0 %v3519
    %3840 = vmatprep.subr.bf16.mxu0 %v3525
    %3841 = vmatpush1.bf16.msra.mxu0 %v3524
    %3842 = vmatprep.mubr.bf16.mxu0 %v2460
    %3843 = vmatmul.mubr.bf16.gmra.mrb[0].mxu0 %v2459
    %v3844 = vpop.f32.mrb[0].mxu0
    %v3845 = vadd.f32 %v3804, %v3844
    %v3846 = vpop.f32.mrb[0].mxu0
    %v3847 = vadd.f32 %v3806, %v3846
    %v3848 = vpop.f32.mrb[0].mxu0
    %v3849 = vpop.f32.mrb[0].mxu0
    %3850 = vdwg.mxu0
    %3851 = vmatprep.subr.bf16.mxu0 %v3530
    %3852 = vmatpush1.bf16.msra.mxu0 %v3529
    %3853 = vmatprep.subr.bf16.mxu0 %v3535
    %3854 = vmatpush1.bf16.msra.mxu0 %v3534
    %3855 = vmatprep.subr.bf16.mxu0 %v3540
    %3856 = vmatpush1.bf16.msra.mxu0 %v3539
    %3857 = vmatprep.subr.bf16.mxu0 %v3545
    %3858 = vmatpush1.bf16.msra.mxu0 %v3544
    %3859 = vmatprep.subr.bf16.mxu0 %v3550
    %3860 = vmatpush1.bf16.msra.mxu0 %v3549
    %3861 = vmatprep.subr.bf16.mxu0 %v3555
    %3862 = vmatpush1.bf16.msra.mxu0 %v3554
    %3863 = vmatprep.subr.bf16.mxu0 %v3560
    %3864 = vmatpush1.bf16.msra.mxu0 %v3559
    %3865 = vmatprep.subr.bf16.mxu0 %v3565
    %3866 = vmatpush1.bf16.msra.mxu0 %v3564
    %3867 = vmatprep.subr.bf16.mxu0 0
    %3868 = vmatpush1.bf16.msra.mxu0 0
    %3869 = vmatprep.subr.bf16.mxu0 0
    %3870 = vmatpush1.bf16.msra.mxu0 0
    %3871 = vmatprep.subr.bf16.mxu0 0
    %3872 = vmatpush1.bf16.msra.mxu0 0
    %3873 = vmatprep.subr.bf16.mxu0 0
    %3874 = vmatpush1.bf16.msra.mxu0 0
    %3875 = vmatprep.subr.bf16.mxu0 0
    %3876 = vmatpush1.bf16.msra.mxu0 0
    %3877 = vmatprep.subr.bf16.mxu0 0
    %3878 = vmatpush1.bf16.msra.mxu0 0
    %3879 = vmatprep.subr.bf16.mxu0 0
    %3880 = vmatpush1.bf16.msra.mxu0 0
    %3881 = vmatprep.subr.bf16.mxu0 0
    %3882 = vmatpush1.bf16.msra.mxu0 0
    %3883 = vmatprep.mubr.bf16.mxu0 0
    %3884 = vmatmul.mubr.bf16.gmra.mrb[0].mxu0 %v2461
    %v3885 = vpop.f32.mrb[0].mxu0
    %v3886 = vadd.f32 %v3845, %v3885
    %v3887 = vpop.f32.mrb[0].mxu0
    %v3888 = vadd.f32 %v3847, %v3887
    %v3889 = vpop.f32.mrb[0].mxu0
    %v3890 = vpop.f32.mrb[0].mxu0
    %3891 = vdwg.mxu0
    %3892 = vmatprep.subr.bf16.mxu0 %v3372
    %3893 = vmatpush1.bf16.msra.mxu0 %v3371
    %3894 = vmatprep.subr.bf16.mxu0 %v3377
    %3895 = vmatpush1.bf16.msra.mxu0 %v3376
    %3896 = vmatprep.subr.bf16.mxu0 %v3382
    %3897 = vmatpush1.bf16.msra.mxu0 %v3381
    %3898 = vmatprep.subr.bf16.mxu0 %v3387
    %3899 = vmatpush1.bf16.msra.mxu0 %v3386
    %3900 = vmatprep.subr.bf16.mxu0 %v3392
    %3901 = vmatpush1.bf16.msra.mxu0 %v3391
    %3902 = vmatprep.subr.bf16.mxu0 %v3397
    %3903 = vmatpush1.bf16.msra.mxu0 %v3396
    %3904 = vmatprep.subr.bf16.mxu0 %v3402
    %3905 = vmatpush1.bf16.msra.mxu0 %v3401
    %3906 = vmatprep.subr.bf16.mxu0 %v3407
    %3907 = vmatpush1.bf16.msra.mxu0 %v3406
    %3908 = vmatprep.subr.bf16.mxu0 %v3412
    %3909 = vmatpush1.bf16.msra.mxu0 %v3411
    %3910 = vmatprep.subr.bf16.mxu0 %v3417
    %3911 = vmatpush1.bf16.msra.mxu0 %v3416
    %3912 = vmatprep.subr.bf16.mxu0 %v3422
    %3913 = vmatpush1.bf16.msra.mxu0 %v3421
    %3914 = vmatprep.subr.bf16.mxu0 %v3427
    %3915 = vmatpush1.bf16.msra.mxu0 %v3426
    %3916 = vmatprep.subr.bf16.mxu0 %v3432
    %3917 = vmatpush1.bf16.msra.mxu0 %v3431
    %3918 = vmatprep.subr.bf16.mxu0 %v3437
    %3919 = vmatpush1.bf16.msra.mxu0 %v3436
    %3920 = vmatprep.subr.bf16.mxu0 %v3442
    %3921 = vmatpush1.bf16.msra.mxu0 %v3441
    %3922 = vmatprep.subr.bf16.mxu0 %v3447
    %3923 = vmatpush1.bf16.msra.mxu0 %v3446
    %3924 = vmatprep.mubr.bf16.mxu0 %v2458
    %3925 = vmatmul.mubr.bf16.gmra.mrb[0].mxu0 %v2457
    %v3926 = vpop.f32.mrb[0].mxu0
    %v3927 = vadd.f32 %v2715, %v3926
    %v3928 = vpop.f32.mrb[0].mxu0
    %v3929 = vadd.f32 %v2719, %v3928
    %v3930 = vpop.f32.mrb[0].mxu0
    %v3931 = vpop.f32.mrb[0].mxu0
    %3932 = vdwg.mxu0
    %3933 = vmatprep.subr.bf16.mxu0 %v3452
    %3934 = vmatpush1.bf16.msra.mxu0 %v3451
    %3935 = vmatprep.subr.bf16.mxu0 %v3457
    %3936 = vmatpush1.bf16.msra.mxu0 %v3456
    %3937 = vmatprep.subr.bf16.mxu0 %v3462
    %3938 = vmatpush1.bf16.msra.mxu0 %v3461
    %3939 = vmatprep.subr.bf16.mxu0 %v3467
    %3940 = vmatpush1.bf16.msra.mxu0 %v3466
    %3941 = vmatprep.subr.bf16.mxu0 %v3472
    %3942 = vmatpush1.bf16.msra.mxu0 %v3471
    %3943 = vmatprep.subr.bf16.mxu0 %v3477
    %3944 = vmatpush1.bf16.msra.mxu0 %v3476
    %3945 = vmatprep.subr.bf16.mxu0 %v3482
    %3946 = vmatpush1.bf16.msra.mxu0 %v3481
    %3947 = vmatprep.subr.bf16.mxu0 %v3487
    %3948 = vmatpush1.bf16.msra.mxu0 %v3486
    %3949 = vmatprep.subr.bf16.mxu0 %v3492
    %3950 = vmatpush1.bf16.msra.mxu0 %v3491
    %3951 = vmatprep.subr.bf16.mxu0 %v3497
    %3952 = vmatpush1.bf16.msra.mxu0 %v3496
    %3953 = vmatprep.subr.bf16.mxu0 %v3502
    %3954 = vmatpush1.bf16.msra.mxu0 %v3501
    %3955 = vmatprep.subr.bf16.mxu0 %v3507
    %3956 = vmatpush1.bf16.msra.mxu0 %v3506
    %3957 = vmatprep.subr.bf16.mxu0 %v3512
    %3958 = vmatpush1.bf16.msra.mxu0 %v3511
    %3959 = vmatprep.subr.bf16.mxu0 %v3517
    %3960 = vmatpush1.bf16.msra.mxu0 %v3516
    %3961 = vmatprep.subr.bf16.mxu0 %v3522
    %3962 = vmatpush1.bf16.msra.mxu0 %v3521
    %3963 = vmatprep.subr.bf16.mxu0 %v3527
    %3964 = vmatpush1.bf16.msra.mxu0 %v3526
    %3965 = vmatprep.mubr.bf16.mxu0 %v2460
    %3966 = vmatmul.mubr.bf16.gmra.mrb[0].mxu0 %v2459
    %v3967 = vpop.f32.mrb[0].mxu0
    %v3968 = vadd.f32 %v3927, %v3967
    %v3969 = vpop.f32.mrb[0].mxu0
    %v3970 = vadd.f32 %v3929, %v3969
    %v3971 = vpop.f32.mrb[0].mxu0
    %v3972 = vpop.f32.mrb[0].mxu0
    %3973 = vdwg.mxu0
    %3974 = vmatprep.subr.bf16.mxu0 %v3532
    %3975 = vmatpush1.bf16.msra.mxu0 %v3531
    %3976 = vmatprep.subr.bf16.mxu0 %v3537
    %3977 = vmatpush1.bf16.msra.mxu0 %v3536
    %3978 = vmatprep.subr.bf16.mxu0 %v3542
    %3979 = vmatpush1.bf16.msra.mxu0 %v3541
    %3980 = vmatprep.subr.bf16.mxu0 %v3547
    %3981 = vmatpush1.bf16.msra.mxu0 %v3546
    %3982 = vmatprep.subr.bf16.mxu0 %v3552
    %3983 = vmatpush1.bf16.msra.mxu0 %v3551
    %3984 = vmatprep.subr.bf16.mxu0 %v3557
    %3985 = vmatpush1.bf16.msra.mxu0 %v3556
    %3986 = vmatprep.subr.bf16.mxu0 %v3562
    %3987 = vmatpush1.bf16.msra.mxu0 %v3561
    %3988 = vmatprep.subr.bf16.mxu0 %v3567
    %3989 = vmatpush1.bf16.msra.mxu0 %v3566
    %3990 = vmatprep.subr.bf16.mxu0 0
    %3991 = vmatpush1.bf16.msra.mxu0 0
    %3992 = vmatprep.subr.bf16.mxu0 0
    %3993 = vmatpush1.bf16.msra.mxu0 0
    %3994 = vmatprep.subr.bf16.mxu0 0
    %3995 = vmatpush1.bf16.msra.mxu0 0
    %3996 = vmatprep.subr.bf16.mxu0 0
    %3997 = vmatpush1.bf16.msra.mxu0 0
    %3998 = vmatprep.subr.bf16.mxu0 0
    %3999 = vmatpush1.bf16.msra.mxu0 0
    %4000 = vmatprep.subr.bf16.mxu0 0
    %4001 = vmatpush1.bf16.msra.mxu0 0
    %4002 = vmatprep.subr.bf16.mxu0 0
    %4003 = vmatpush1.bf16.msra.mxu0 0
    %4004 = vmatprep.subr.bf16.mxu0 0
    %4005 = vmatpush1.bf16.msra.mxu0 0
    %4006 = vmatprep.mubr.bf16.mxu0 0
    %4007 = vmatmul.mubr.bf16.gmra.mrb[0].mxu0 %v2461
    %v4008 = vpop.f32.mrb[0].mxu0
    %v4009 = vadd.f32 %v3968, %v4008
    %v4010 = vpop.f32.mrb[0].mxu0
    %v4011 = vadd.f32 %v3970, %v4010
    %v4012 = vpop.f32.mrb[0].mxu0
    %v4013 = vpop.f32.mrb[0].mxu0
    %4014 = vdwg.mxu0
    %4015 = vmatprep.subr.bf16.mxu0 0
    %4016 = vmatpush1.bf16.msra.mxu0 %v3373
    %4017 = vmatprep.subr.bf16.mxu0 0
    %4018 = vmatpush1.bf16.msra.mxu0 %v3378
    %4019 = vmatprep.subr.bf16.mxu0 0
    %4020 = vmatpush1.bf16.msra.mxu0 %v3383
    %4021 = vmatprep.subr.bf16.mxu0 0
    %4022 = vmatpush1.bf16.msra.mxu0 %v3388
    %4023 = vmatprep.subr.bf16.mxu0 0
    %4024 = vmatpush1.bf16.msra.mxu0 %v3393
    %4025 = vmatprep.subr.bf16.mxu0 0
    %4026 = vmatpush1.bf16.msra.mxu0 %v3398
    %4027 = vmatprep.subr.bf16.mxu0 0
    %4028 = vmatpush1.bf16.msra.mxu0 %v3403
    %4029 = vmatprep.subr.bf16.mxu0 0
    %4030 = vmatpush1.bf16.msra.mxu0 %v3408
    %4031 = vmatprep.subr.bf16.mxu0 0
    %4032 = vmatpush1.bf16.msra.mxu0 %v3413
    %4033 = vmatprep.subr.bf16.mxu0 0
    %4034 = vmatpush1.bf16.msra.mxu0 %v3418
    %4035 = vmatprep.subr.bf16.mxu0 0
    %4036 = vmatpush1.bf16.msra.mxu0 %v3423
    %4037 = vmatprep.subr.bf16.mxu0 0
    %4038 = vmatpush1.bf16.msra.mxu0 %v3428
    %4039 = vmatprep.subr.bf16.mxu0 0
    %4040 = vmatpush1.bf16.msra.mxu0 %v3433
    %4041 = vmatprep.subr.bf16.mxu0 0
    %4042 = vmatpush1.bf16.msra.mxu0 %v3438
    %4043 = vmatprep.subr.bf16.mxu0 0
    %4044 = vmatpush1.bf16.msra.mxu0 %v3443
    %4045 = vmatprep.subr.bf16.mxu0 0
    %4046 = vmatpush1.bf16.msra.mxu0 %v3448
    %4047 = vmatprep.mubr.bf16.mxu0 %v2458
    %4048 = vmatmul.mubr.bf16.gmra.mrb[0].mxu0 %v2457
    %v4049 = vpop.f32.mrb[0].mxu0
    %v4050 = vadd.f32 %v2723, %v4049
    %v4051 = vpop.f32.mrb[0].mxu0
    %v4052 = vpop.f32.mrb[0].mxu0
    %v4053 = vpop.f32.mrb[0].mxu0
    %4054 = vdwg.mxu0
    %4055 = vmatprep.subr.bf16.mxu0 0
    %4056 = vmatpush1.bf16.msra.mxu0 %v3453
    %4057 = vmatprep.subr.bf16.mxu0 0
    %4058 = vmatpush1.bf16.msra.mxu0 %v3458
    %4059 = vmatprep.subr.bf16.mxu0 0
    %4060 = vmatpush1.bf16.msra.mxu0 %v3463
    %4061 = vmatprep.subr.bf16.mxu0 0
    %4062 = vmatpush1.bf16.msra.mxu0 %v3468
    %4063 = vmatprep.subr.bf16.mxu0 0
    %4064 = vmatpush1.bf16.msra.mxu0 %v3473
    %4065 = vmatprep.subr.bf16.mxu0 0
    %4066 = vmatpush1.bf16.msra.mxu0 %v3478
    %4067 = vmatprep.subr.bf16.mxu0 0
    %4068 = vmatpush1.bf16.msra.mxu0 %v3483
    %4069 = vmatprep.subr.bf16.mxu0 0
    %4070 = vmatpush1.bf16.msra.mxu0 %v3488
    %4071 = vmatprep.subr.bf16.mxu0 0
    %4072 = vmatpush1.bf16.msra.mxu0 %v3493
    %4073 = vmatprep.subr.bf16.mxu0 0
    %4074 = vmatpush1.bf16.msra.mxu0 %v3498
    %4075 = vmatprep.subr.bf16.mxu0 0
    %4076 = vmatpush1.bf16.msra.mxu0 %v3503
    %4077 = vmatprep.subr.bf16.mxu0 0
    %4078 = vmatpush1.bf16.msra.mxu0 %v3508
    %4079 = vmatprep.subr.bf16.mxu0 0
    %4080 = vmatpush1.bf16.msra.mxu0 %v3513
    %4081 = vmatprep.subr.bf16.mxu0 0
    %4082 = vmatpush1.bf16.msra.mxu0 %v3518
    %4083 = vmatprep.subr.bf16.mxu0 0
    %4084 = vmatpush1.bf16.msra.mxu0 %v3523
    %4085 = vmatprep.subr.bf16.mxu0 0
    %4086 = vmatpush1.bf16.msra.mxu0 %v3528
    %4087 = vmatprep.mubr.bf16.mxu0 %v2460
    %4088 = vmatmul.mubr.bf16.gmra.mrb[0].mxu0 %v2459
    %v4089 = vpop.f32.mrb[0].mxu0
    %v4090 = vadd.f32 %v4050, %v4089
    %v4091 = vpop.f32.mrb[0].mxu0
    %v4092 = vpop.f32.mrb[0].mxu0
    %v4093 = vpop.f32.mrb[0].mxu0
    %4094 = vdwg.mxu0
    %4095 = vmatprep.subr.bf16.mxu0 0
    %4096 = vmatpush1.bf16.msra.mxu0 %v3533
    %4097 = vmatprep.subr.bf16.mxu0 0
    %4098 = vmatpush1.bf16.msra.mxu0 %v3538
    %4099 = vmatprep.subr.bf16.mxu0 0
    %4100 = vmatpush1.bf16.msra.mxu0 %v3543
    %4101 = vmatprep.subr.bf16.mxu0 0
    %4102 = vmatpush1.bf16.msra.mxu0 %v3548
    %4103 = vmatprep.subr.bf16.mxu0 0
    %4104 = vmatpush1.bf16.msra.mxu0 %v3553
    %4105 = vmatprep.subr.bf16.mxu0 0
    %4106 = vmatpush1.bf16.msra.mxu0 %v3558
    %4107 = vmatprep.subr.bf16.mxu0 0
    %4108 = vmatpush1.bf16.msra.mxu0 %v3563
    %4109 = vmatprep.subr.bf16.mxu0 0
    %4110 = vmatpush1.bf16.msra.mxu0 %v3568
    %4111 = vmatprep.subr.bf16.mxu0 0
    %4112 = vmatpush1.bf16.msra.mxu0 0
    %4113 = vmatprep.subr.bf16.mxu0 0
    %4114 = vmatpush1.bf16.msra.mxu0 0
    %4115 = vmatprep.subr.bf16.mxu0 0
    %4116 = vmatpush1.bf16.msra.mxu0 0
    %4117 = vmatprep.subr.bf16.mxu0 0
    %4118 = vmatpush1.bf16.msra.mxu0 0
    %4119 = vmatprep.subr.bf16.mxu0 0
    %4120 = vmatpush1.bf16.msra.mxu0 0
    %4121 = vmatprep.subr.bf16.mxu0 0
    %4122 = vmatpush1.bf16.msra.mxu0 0
    %4123 = vmatprep.subr.bf16.mxu0 0
    %4124 = vmatpush1.bf16.msra.mxu0 0
    %4125 = vmatprep.subr.bf16.mxu0 0
    %4126 = vmatpush1.bf16.msra.mxu0 0
    %4127 = vmatprep.mubr.bf16.mxu0 0
    %4128 = vmatmul.mubr.bf16.gmra.mrb[0].mxu0 %v2461
    %v4129 = vpop.f32.mrb[0].mxu0
    %v4130 = vadd.f32 %v4090, %v4129
    %v4131 = vpop.f32.mrb[0].mxu0
    %v4132 = vpop.f32.mrb[0].mxu0
    %v4133 = vpop.f32.mrb[0].mxu0
    %4134 = vdwg.mxu0
    %v4135 = vmax.f32 %v3886, 0.0
    %v4136 = vmax.f32 %v3888, 0.0
    %v4137 = vmax.f32 %v4009, 0.0
    %v4138 = vmax.f32 %v4011, 0.0
    %v4139 = vmax.f32 %v4130, 0.0
    %v4140 = vpack.c.bf16 %v4135, %v4135
    %v4141 = vpack.c.bf16 %v4136, %v4136
    %v4142 = vpack.c.bf16 %v4137, %v4137
    %v4143 = vpack.c.bf16 %v4138, %v4138
    %v4144 = vpack.c.bf16 %v4139, %v4139
    %v4145 = vld [vmem:[#allocation10] sm:$0xf]
    %v4146 = vld [vmem:[#allocation10 + $0x4] sm:$0xf]
    %v4147 = vld [vmem:[#allocation10 + $0x8] sm:$0xf]
    %v4148 = vld [vmem:[#allocation10 + $0xc] sm:$0xf]
    %v4149 = vld [vmem:[#allocation10 + $0x10] sm:$0xf]
    %v4150 = vld [vmem:[#allocation10 + $0x14] sm:$0xf]
    %v4151 = vld [vmem:[#allocation10 + $0x18] sm:$0xf]
    %v4152 = vld [vmem:[#allocation10 + $0x1c] sm:$0xf]
    %v4153 = vld [vmem:[#allocation10 + $0x20] sm:$0xf]
    %v4154 = vld [vmem:[#allocation10 + $0x24] sm:$0xf]
    %v4155 = vld [vmem:[#allocation10 + $0x28] sm:$0xf]
    %v4156 = vld [vmem:[#allocation10 + $0x2c] sm:$0xf]
    %v4157 = vld [vmem:[#allocation10 + $0x30] sm:$0xf]
    %v4158 = vld [vmem:[#allocation10 + $0x34] sm:$0xf]
    %v4159 = vld [vmem:[#allocation10 + $0x38] sm:$0xf]
    %v4160 = vld [vmem:[#allocation10 + $0x3c] sm:$0xf]
    %v4161 = vld [vmem:[#allocation10 + $0x40] sm:$0xf]
    %v4162 = vld [vmem:[#allocation10 + $0x44] sm:$0xf]
    %v4163 = vld [vmem:[#allocation10 + $0x48] sm:$0xf]
    %v4164 = vld [vmem:[#allocation10 + $0x4c] sm:$0xf]
    %v4165 = vld [vmem:[#allocation10 + $0x50] sm:$0xf]
    %v4166 = vld [vmem:[#allocation10 + $0x54] sm:$0xf]
    %v4167 = vld [vmem:[#allocation10 + $0x58] sm:$0xf]
    %v4168 = vld [vmem:[#allocation10 + $0x5c] sm:$0xf]
    %v4169 = vld [vmem:[#allocation10 + $0x60] sm:$0xf]
    %v4170 = vld [vmem:[#allocation10 + $0x64] sm:$0xf]
    %v4171 = vld [vmem:[#allocation10 + $0x68] sm:$0xf]
    %v4172 = vld [vmem:[#allocation10 + $0x6c] sm:$0xf]
    %v4173 = vld [vmem:[#allocation10 + $0x70] sm:$0xf]
    %v4174 = vld [vmem:[#allocation10 + $0x74] sm:$0xf]
    %v4175 = vld [vmem:[#allocation10 + $0x78] sm:$0xf]
    %v4176 = vld [vmem:[#allocation10 + $0x7c] sm:$0xf]
    %v4177 = vld [vmem:[#allocation10 + $0x80] sm:$0xf]
    %v4178 = vld [vmem:[#allocation10 + $0x84] sm:$0xf]
    %v4179 = vld [vmem:[#allocation10 + $0x88] sm:$0xf]
    %v4180 = vld [vmem:[#allocation10 + $0x8c] sm:$0xf]
    %v4181 = vld [vmem:[#allocation10 + $0x90] sm:$0xf]
    %v4182 = vld [vmem:[#allocation10 + $0x94] sm:$0xf]
    %v4183 = vld [vmem:[#allocation10 + $0x98] sm:$0xf]
    %v4184 = vld [vmem:[#allocation10 + $0x9c] sm:$0xf]
    %v4185 = vld [vmem:[#allocation10 + $0xa0] sm:$0xf]
    %v4186 = vld [vmem:[#allocation10 + $0xa4] sm:$0xf]
    %v4187 = vld [vmem:[#allocation10 + $0xa8] sm:$0xf]
    %v4188 = vld [vmem:[#allocation10 + $0xac] sm:$0xf]
    %v4189 = vld [vmem:[#allocation10 + $0xb0] sm:$0xf]
    %v4190 = vld [vmem:[#allocation10 + $0xb4] sm:$0xf]
    %v4191 = vld [vmem:[#allocation10 + $0xb8] sm:$0xf]
    %v4192 = vld [vmem:[#allocation10 + $0xbc] sm:$0xf]
    %v4193 = vld [vmem:[#allocation10 + $0xc0] sm:$0xf]
    %v4194 = vld [vmem:[#allocation10 + $0xc4] sm:$0xf]
    %v4195 = vld [vmem:[#allocation10 + $0xc8] sm:$0xf]
    %v4196 = vld [vmem:[#allocation10 + $0xcc] sm:$0xf]
    %v4197 = vld [vmem:[#allocation10 + $0xd0] sm:$0xf]
    %v4198 = vld [vmem:[#allocation10 + $0xd4] sm:$0xf]
    %v4199 = vld [vmem:[#allocation10 + $0xd8] sm:$0xf]
    %v4200 = vld [vmem:[#allocation10 + $0xdc] sm:$0xf]
    %v4201 = vld [vmem:[#allocation10 + $0xe0] sm:$0xf]
    %v4202 = vld [vmem:[#allocation10 + $0xe4] sm:$0xf]
    %v4203 = vld [vmem:[#allocation10 + $0xe8] sm:$0xf]
    %v4204 = vld [vmem:[#allocation10 + $0xec] sm:$0xf]
    %v4205 = vld [vmem:[#allocation10 + $0xf0] sm:$0xf]
    %v4206 = vld [vmem:[#allocation10 + $0xf4] sm:$0xf]
    %v4207 = vld [vmem:[#allocation10 + $0xf8] sm:$0xf]
    %v4208 = vld [vmem:[#allocation10 + $0xfc] sm:$0xf]
    %v4209 = vld [vmem:[#allocation10 + $0x100] sm:$0xf]
    %v4210 = vld [vmem:[#allocation10 + $0x104] sm:$0xf]
    %v4211 = vld [vmem:[#allocation10 + $0x108] sm:$0xf]
    %v4212 = vld [vmem:[#allocation10 + $0x10c] sm:$0xf]
    %v4213 = vld [vmem:[#allocation10 + $0x110] sm:$0xf]
    %v4214 = vld [vmem:[#allocation10 + $0x114] sm:$0xf]
    %v4215 = vld [vmem:[#allocation10 + $0x118] sm:$0xf]
    %v4216 = vld [vmem:[#allocation10 + $0x11c] sm:$0xf]
    %v4217 = vld [vmem:[#allocation10 + $0x120] sm:$0xf]
    %v4218 = vld [vmem:[#allocation10 + $0x124] sm:$0xf]
    %v4219 = vld [vmem:[#allocation10 + $0x128] sm:$0xf]
    %v4220 = vld [vmem:[#allocation10 + $0x12c] sm:$0xf]
    %v4221 = vld [vmem:[#allocation10 + $0x130] sm:$0xf]
    %v4222 = vld [vmem:[#allocation10 + $0x134] sm:$0xf]
    %v4223 = vld [vmem:[#allocation10 + $0x138] sm:$0xf]
    %v4224 = vld [vmem:[#allocation10 + $0x13c] sm:$0xf]
    %v4225 = vld [vmem:[%s8] sm:$0x1]
    %v4227 = vlaneseq
    %v4228 = vshrl.u32 %v4227, 7
    %v4229 = vsub.s32 0, %v4228
    %v4230 = vrot.slane %v4225, %v4229
    %v4312 = vunpack.c.l.b16 %v4145
    %v4313 = vunpack.c.l.b16 %v4146
    %v4314 = vunpack.c.l.b16 %v4147
    %v4315 = vunpack.c.l.b16 %v4148
    %v4316 = vunpack.c.l.b16 %v4149
    %v4317 = vunpack.c.l.b16 %v4150
    %v4318 = vunpack.c.l.b16 %v4151
    %v4319 = vunpack.c.l.b16 %v4152
    %v4320 = vunpack.c.l.b16 %v4153
    %v4321 = vunpack.c.l.b16 %v4154
    %v4322 = vunpack.c.l.b16 %v4155
    %v4323 = vunpack.c.l.b16 %v4156
    %v4324 = vunpack.c.l.b16 %v4157
    %v4325 = vunpack.c.l.b16 %v4158
    %v4326 = vunpack.c.l.b16 %v4159
    %v4327 = vunpack.c.l.b16 %v4160
    %v4328 = vunpack.c.l.b16 %v4161
    %v4329 = vunpack.c.l.b16 %v4162
    %v4330 = vunpack.c.l.b16 %v4163
    %v4331 = vunpack.c.l.b16 %v4164
    %v4332 = vunpack.c.l.b16 %v4165
    %v4333 = vunpack.c.l.b16 %v4166
    %v4334 = vunpack.c.l.b16 %v4167
    %v4335 = vunpack.c.l.b16 %v4168
    %v4336 = vunpack.c.l.b16 %v4169
    %v4337 = vunpack.c.l.b16 %v4170
    %v4338 = vunpack.c.l.b16 %v4171
    %v4339 = vunpack.c.l.b16 %v4172
    %v4340 = vunpack.c.l.b16 %v4173
    %v4341 = vunpack.c.l.b16 %v4174
    %v4342 = vunpack.c.l.b16 %v4175
    %v4343 = vunpack.c.l.b16 %v4176
    %v4344 = vunpack.c.l.b16 %v4177
    %v4345 = vunpack.c.l.b16 %v4178
    %v4346 = vunpack.c.l.b16 %v4179
    %v4347 = vunpack.c.l.b16 %v4180
    %v4348 = vunpack.c.l.b16 %v4181
    %v4349 = vunpack.c.l.b16 %v4182
    %v4350 = vunpack.c.l.b16 %v4183
    %v4351 = vunpack.c.l.b16 %v4184
    %v4352 = vunpack.c.l.b16 %v4185
    %v4353 = vunpack.c.l.b16 %v4186
    %v4354 = vunpack.c.l.b16 %v4187
    %v4355 = vunpack.c.l.b16 %v4188
    %v4356 = vunpack.c.l.b16 %v4189
    %v4357 = vunpack.c.l.b16 %v4190
    %v4358 = vunpack.c.l.b16 %v4191
    %v4359 = vunpack.c.l.b16 %v4192
    %v4360 = vunpack.c.l.b16 %v4193
    %v4361 = vunpack.c.l.b16 %v4194
    %v4362 = vunpack.c.l.b16 %v4195
    %v4363 = vunpack.c.l.b16 %v4196
    %v4364 = vunpack.c.l.b16 %v4197
    %v4365 = vunpack.c.l.b16 %v4198
    %v4366 = vunpack.c.l.b16 %v4199
    %v4367 = vunpack.c.l.b16 %v4200
    %v4368 = vunpack.c.l.b16 %v4201
    %v4369 = vunpack.c.l.b16 %v4202
    %v4370 = vunpack.c.l.b16 %v4203
    %v4371 = vunpack.c.l.b16 %v4204
    %v4372 = vunpack.c.l.b16 %v4205
    %v4373 = vunpack.c.l.b16 %v4206
    %v4374 = vunpack.c.l.b16 %v4207
    %v4375 = vunpack.c.l.b16 %v4208
    %v4376 = vunpack.c.l.b16 %v4209
    %v4377 = vunpack.c.l.b16 %v4210
    %v4378 = vunpack.c.l.b16 %v4211
    %v4379 = vunpack.c.l.b16 %v4212
    %v4380 = vunpack.c.l.b16 %v4213
    %v4381 = vunpack.c.l.b16 %v4214
    %v4382 = vunpack.c.l.b16 %v4215
    %v4383 = vunpack.c.l.b16 %v4216
    %v4384 = vunpack.c.l.b16 %v4217
    %v4385 = vunpack.c.l.b16 %v4218
    %v4386 = vunpack.c.l.b16 %v4219
    %v4387 = vunpack.c.l.b16 %v4220
    %v4388 = vunpack.c.l.b16 %v4221
    %v4389 = vunpack.c.l.b16 %v4222
    %v4390 = vunpack.c.l.b16 %v4223
    %v4391 = vunpack.c.l.b16 %v4224
    %v4392 = vpack.c.b16 %v4313, %v4312
    %v4393 = vpack.c.b16 %v4315, %v4314
    %v4394 = vpack.c.b16 %v4317, %v4316
    %v4395 = vpack.c.b16 %v4319, %v4318
    %v4396 = vpack.c.b16 %v4321, %v4320
    %v4397 = vpack.c.b16 %v4323, %v4322
    %v4398 = vpack.c.b16 %v4325, %v4324
    %v4399 = vpack.c.b16 %v4327, %v4326
    %v4400 = vpack.c.b16 %v4329, %v4328
    %v4401 = vpack.c.b16 %v4331, %v4330
    %v4402 = vpack.c.b16 %v4333, %v4332
    %v4403 = vpack.c.b16 %v4335, %v4334
    %v4404 = vpack.c.b16 %v4337, %v4336
    %v4405 = vpack.c.b16 %v4339, %v4338
    %v4406 = vpack.c.b16 %v4341, %v4340
    %v4407 = vpack.c.b16 %v4343, %v4342
    %v4408 = vpack.c.b16 %v4345, %v4344
    %v4409 = vpack.c.b16 %v4347, %v4346
    %v4410 = vpack.c.b16 %v4349, %v4348
    %v4411 = vpack.c.b16 %v4351, %v4350
    %v4412 = vpack.c.b16 %v4353, %v4352
    %v4413 = vpack.c.b16 %v4355, %v4354
    %v4414 = vpack.c.b16 %v4357, %v4356
    %v4415 = vpack.c.b16 %v4359, %v4358
    %v4416 = vpack.c.b16 %v4361, %v4360
    %v4417 = vpack.c.b16 %v4363, %v4362
    %v4418 = vpack.c.b16 %v4365, %v4364
    %v4419 = vpack.c.b16 %v4367, %v4366
    %v4420 = vpack.c.b16 %v4369, %v4368
    %v4421 = vpack.c.b16 %v4371, %v4370
    %v4422 = vpack.c.b16 %v4373, %v4372
    %v4423 = vpack.c.b16 %v4375, %v4374
    %v4424 = vpack.c.b16 %v4377, %v4376
    %v4425 = vpack.c.b16 %v4379, %v4378
    %v4426 = vpack.c.b16 %v4381, %v4380
    %v4427 = vpack.c.b16 %v4383, %v4382
    %v4428 = vpack.c.b16 %v4385, %v4384
    %v4429 = vpack.c.b16 %v4387, %v4386
    %v4430 = vpack.c.b16 %v4389, %v4388
    %v4431 = vpack.c.b16 %v4391, %v4390
    %4472 = vmatprep.subr.bf16.mxu0 0
    %4473 = vmatpush1.bf16.msra.mxu0 %v4392
    %4474 = vmatprep.subr.bf16.mxu0 0
    %4475 = vmatpush1.bf16.msra.mxu0 %v4393
    %4476 = vmatprep.subr.bf16.mxu0 0
    %4477 = vmatpush1.bf16.msra.mxu0 %v4394
    %4478 = vmatprep.subr.bf16.mxu0 0
    %4479 = vmatpush1.bf16.msra.mxu0 %v4395
    %4480 = vmatprep.subr.bf16.mxu0 0
    %4481 = vmatpush1.bf16.msra.mxu0 %v4396
    %4482 = vmatprep.subr.bf16.mxu0 0
    %4483 = vmatpush1.bf16.msra.mxu0 %v4397
    %4484 = vmatprep.subr.bf16.mxu0 0
    %4485 = vmatpush1.bf16.msra.mxu0 %v4398
    %4486 = vmatprep.subr.bf16.mxu0 0
    %4487 = vmatpush1.bf16.msra.mxu0 %v4399
    %4488 = vmatprep.subr.bf16.mxu0 0
    %4489 = vmatpush1.bf16.msra.mxu0 %v4400
    %4490 = vmatprep.subr.bf16.mxu0 0
    %4491 = vmatpush1.bf16.msra.mxu0 %v4401
    %4492 = vmatprep.subr.bf16.mxu0 0
    %4493 = vmatpush1.bf16.msra.mxu0 %v4402
    %4494 = vmatprep.subr.bf16.mxu0 0
    %4495 = vmatpush1.bf16.msra.mxu0 %v4403
    %4496 = vmatprep.subr.bf16.mxu0 0
    %4497 = vmatpush1.bf16.msra.mxu0 %v4404
    %4498 = vmatprep.subr.bf16.mxu0 0
    %4499 = vmatpush1.bf16.msra.mxu0 %v4405
    %4500 = vmatprep.subr.bf16.mxu0 0
    %4501 = vmatpush1.bf16.msra.mxu0 %v4406
    %4502 = vmatprep.subr.bf16.mxu0 0
    %4503 = vmatpush1.bf16.msra.mxu0 %v4407
    %4504 = vmatprep.mubr.bf16.mxu0 %v4141
    %4505 = vmatmul.mubr.bf16.gmra.mrb[0].mxu0 %v4140
    %v4506 = vpop.f32.mrb[0].mxu0
    %v4507 = vadd.f32 %v4230, %v4506
    %v4508 = vpop.f32.mrb[0].mxu0
    %v4509 = vpop.f32.mrb[0].mxu0
    %v4510 = vpop.f32.mrb[0].mxu0
    %4511 = vdwg.mxu0
    %4512 = vmatprep.subr.bf16.mxu0 0
    %4513 = vmatpush1.bf16.msra.mxu0 %v4408
    %4514 = vmatprep.subr.bf16.mxu0 0
    %4515 = vmatpush1.bf16.msra.mxu0 %v4409
    %4516 = vmatprep.subr.bf16.mxu0 0
    %4517 = vmatpush1.bf16.msra.mxu0 %v4410
    %4518 = vmatprep.subr.bf16.mxu0 0
    %4519 = vmatpush1.bf16.msra.mxu0 %v4411
    %4520 = vmatprep.subr.bf16.mxu0 0
    %4521 = vmatpush1.bf16.msra.mxu0 %v4412
    %4522 = vmatprep.subr.bf16.mxu0 0
    %4523 = vmatpush1.bf16.msra.mxu0 %v4413
    %4524 = vmatprep.subr.bf16.mxu0 0
    %4525 = vmatpush1.bf16.msra.mxu0 %v4414
    %4526 = vmatprep.subr.bf16.mxu0 0
    %4527 = vmatpush1.bf16.msra.mxu0 %v4415
    %4528 = vmatprep.subr.bf16.mxu0 0
    %4529 = vmatpush1.bf16.msra.mxu0 %v4416
    %4530 = vmatprep.subr.bf16.mxu0 0
    %4531 = vmatpush1.bf16.msra.mxu0 %v4417
    %4532 = vmatprep.subr.bf16.mxu0 0
    %4533 = vmatpush1.bf16.msra.mxu0 %v4418
    %4534 = vmatprep.subr.bf16.mxu0 0
    %4535 = vmatpush1.bf16.msra.mxu0 %v4419
    %4536 = vmatprep.subr.bf16.mxu0 0
    %4537 = vmatpush1.bf16.msra.mxu0 %v4420
    %4538 = vmatprep.subr.bf16.mxu0 0
    %4539 = vmatpush1.bf16.msra.mxu0 %v4421
    %4540 = vmatprep.subr.bf16.mxu0 0
    %4541 = vmatpush1.bf16.msra.mxu0 %v4422
    %4542 = vmatprep.subr.bf16.mxu0 0
    %4543 = vmatpush1.bf16.msra.mxu0 %v4423
    %4544 = vmatprep.mubr.bf16.mxu0 %v4143
    %4545 = vmatmul.mubr.bf16.gmra.mrb[0].mxu0 %v4142
    %v4546 = vpop.f32.mrb[0].mxu0
    %v4547 = vadd.f32 %v4507, %v4546
    %v4548 = vpop.f32.mrb[0].mxu0
    %v4549 = vpop.f32.mrb[0].mxu0
    %v4550 = vpop.f32.mrb[0].mxu0
    %4551 = vdwg.mxu0
    %4552 = vmatprep.subr.bf16.mxu0 0
    %4553 = vmatpush1.bf16.msra.mxu0 %v4424
    %4554 = vmatprep.subr.bf16.mxu0 0
    %4555 = vmatpush1.bf16.msra.mxu0 %v4425
    %4556 = vmatprep.subr.bf16.mxu0 0
    %4557 = vmatpush1.bf16.msra.mxu0 %v4426
    %4558 = vmatprep.subr.bf16.mxu0 0
    %4559 = vmatpush1.bf16.msra.mxu0 %v4427
    %4560 = vmatprep.subr.bf16.mxu0 0
    %4561 = vmatpush1.bf16.msra.mxu0 %v4428
    %4562 = vmatprep.subr.bf16.mxu0 0
    %4563 = vmatpush1.bf16.msra.mxu0 %v4429
    %4564 = vmatprep.subr.bf16.mxu0 0
    %4565 = vmatpush1.bf16.msra.mxu0 %v4430
    %4566 = vmatprep.subr.bf16.mxu0 0
    %4567 = vmatpush1.bf16.msra.mxu0 %v4431
    %4568 = vmatprep.subr.bf16.mxu0 0
    %4569 = vmatpush1.bf16.msra.mxu0 0
    %4570 = vmatprep.subr.bf16.mxu0 0
    %4571 = vmatpush1.bf16.msra.mxu0 0
    %4572 = vmatprep.subr.bf16.mxu0 0
    %4573 = vmatpush1.bf16.msra.mxu0 0
    %4574 = vmatprep.subr.bf16.mxu0 0
    %4575 = vmatpush1.bf16.msra.mxu0 0
    %4576 = vmatprep.subr.bf16.mxu0 0
    %4577 = vmatpush1.bf16.msra.mxu0 0
    %4578 = vmatprep.subr.bf16.mxu0 0
    %4579 = vmatpush1.bf16.msra.mxu0 0
    %4580 = vmatprep.subr.bf16.mxu0 0
    %4581 = vmatpush1.bf16.msra.mxu0 0
    %4582 = vmatprep.subr.bf16.mxu0 0
    %4583 = vmatpush1.bf16.msra.mxu0 0
    %4584 = vmatprep.mubr.bf16.mxu0 0
    %4585 = vmatmul.mubr.bf16.gmra.mrb[0].mxu0 %v4144
    %v4586 = vpop.f32.mrb[0].mxu0
    %v4587 = vadd.f32 %v4547, %v4586
    %v4588 = vpop.f32.mrb[0].mxu0
    %v4589 = vpop.f32.mrb[0].mxu0
    %v4590 = vpop.f32.mrb[0].mxu0
    %4591 = vdwg.mxu0
    %v4592 = vmax.f32 %v4587, 0.0
    %4593 = vst [vmem:[#allocation11] sm:$0xff] %v4592
    // Predicated region
    $region58: #{tpu_custom_call.1} parent=1 // pred_check
      _
    $region59: #{tpu_custom_call.1} parent=1 // pred_check_branch
      %4595 = sbr.rel (0) target = $region61
    $region60: #{tpu_custom_call.1} parent=1 // pred_region
      %s4597 = ssub.s32 128, 128
      %4598 = vsyncadd [#allocation4], %s4597
      %s4600 = sshll.u32 [#allocation11], 4
      %s4601 = int_to_ptr.vmem [resolvable:$true] %s4600
      %4603 = dma.vmem_to_hbm [thread:$0]  %s4601, 128, %s9, [#allocation4]
    $region61: #{tpu_custom_call.1} parent=1 // pred_fallthru
      _
    // Predicated region
    $region62: #{tpu_custom_call.1} parent=1 // pred_check
      _
    $region63: #{tpu_custom_call.1} parent=1 // pred_check_branch
      %4605 = sbr.rel (0) target = $region65
    $region64: #{tpu_custom_call.1} parent=1 // pred_region
      %4606 = dma.done [#allocation4], 128
    $region65: #{tpu_custom_call.1} parent=1 // pred_fallthru
      _
    %4607 = vsyncpa [#allocation3], 1
    %4608 = vsyncpa [#allocation6], 1
    %4609 = vsyncpa [#allocation9], 1
    %4610 = vsyncpa [#allocation4], 1

</llo_original>
